<compile_context>
chip_gen: v5e
topology: v5e:2x2
jax: 0.10.0
libtpu: 0.0.40
codegen_flags: <defaults>
</compile_context>

<pallas_src>
import numpy as np
import jax
import jax.numpy as jnp
from jax.experimental import pallas as pl
from jax.experimental.pallas import tpu as pltpu

# ----------------------- small config consistent with the module -----------------------
TOP_N = 4
CAT_NUM = 4
N_CLASSES = 100            # module default
NC_PAD = 128               # lane-dense padded head width (sliced back to N_CLASSES)
IMG_H = IMG_W = 32         # small image (module default is 224; shapes scale the same way)
C_IN = 3
PS = 8                     # backbone downsampling stride (stand-in for ResNet-50's /32)
FEAT_DIM = 512 * 4         # 2048, hardcoded in the module's Linear heads
NAV_HIDDEN = 128
SCALES = (8, 16, 24)       # anchor box sizes
NUM_SCALES = len(SCALES)
PAD_SIDE = IMG_W           # self.pad_side = image_width
K_RAW = C_IN * PS * PS     # 192
K_PAD = 256                # stem contraction dim padded to a clean 128-multiple
MAX_TILE_IMGS = 8          # images per backbone grid step (sublane-aligned pooled block)


# ------------------------------- Pallas kernels ----------------------------------------
def _make_backbone_kernel(tile_imgs, s, with_nav):
    """Fused backbone tile: patch-embed projection + ReLU -> per-image global average
    pool -> linear head, optionally with the navigator 1x1-conv stack fused in.
    The [tile_m, 2048] feature map lives only in VMEM (never stored to HBM)."""
    def kernel(*refs):
        if with_nav:
            (patches_ref, stem_w_ref, stem_b_ref, head_w_ref, head_b_ref,
             nav_w1_ref, nav_b1_ref, nav_w2_ref, nav_b2_ref,
             pooled_ref, logits_ref, scores_ref) = refs
        else:
            (patches_ref, stem_w_ref, stem_b_ref, head_w_ref, head_b_ref,
             pooled_ref, logits_ref) = refs

        feat = jnp.dot(patches_ref[...], stem_w_ref[...],
                       preferred_element_type=jnp.float32)
        feat = jnp.maximum(feat + stem_b_ref[...], 0.0)          # [tile_m, 2048] f32, VMEM only

        if with_nav:
            # navigator fused: no HBM round-trip of the feature map
            h = (jnp.dot(feat.astype(jnp.bfloat16), nav_w1_ref[...],
                         preferred_element_type=jnp.float32) + nav_b1_ref[...])
            h = jnp.maximum(h, 0.0)
            scores_ref[...] = (jnp.dot(h.astype(jnp.bfloat16), nav_w2_ref[...],
                                       preferred_element_type=jnp.float32) + nav_b2_ref[...])

        # per-image global average pool: VPU/XLU reduction, no pool-matrix DMA
        pooled = jnp.mean(feat.reshape(tile_imgs, s, feat.shape[-1]), axis=1)
        pooled_ref[...] = pooled
        logits_ref[...] = (jnp.dot(pooled.astype(jnp.bfloat16), head_w_ref[...],
                                   preferred_element_type=jnp.float32) + head_b_ref[...])
    return kernel


def _linear_kernel(x_ref, w_ref, b_ref, o_ref):
    """y = x @ w + b with bf16 operands, f32 accumulation, lane-dense (128-wide) output."""
    o_ref[...] = (jnp.dot(x_ref[...].astype(jnp.bfloat16), w_ref[...],
                          preferred_element_type=jnp.float32) + b_ref[...])


def _make_resize_kernel(T, C, H):
    """Bilinear crop+resize as separable matmuls, one image per grid cell.
    x_ref:(C*H, W) bf16, wy_ref:(T, oh, H) bf16, wxt_ref:(T, W, ow) bf16,
    o_ref:(T*C, oh, ow) f32 -- each (t, c) crop written straight to its NCHW slab."""
    def kernel(x_ref, wy_ref, wxt_ref, o_ref):
        x = x_ref[...]
        for t in range(T):                                       # static small loops
            # width interpolation on all channels at once: 1 matmul instead of C
            tmp = jnp.dot(x, wxt_ref[t], preferred_element_type=jnp.float32)   # (C*H, ow)
            tmp_bf = tmp.astype(jnp.bfloat16)
            wy_t = wy_ref[t]                                     # (oh, H)
            for c in range(C):
                o_ref[t * C + c] = jnp.dot(wy_t, tmp_bf[c * H:(c + 1) * H, :],
                                           preferred_element_type=jnp.float32)
    return kernel


# ------------------------------- kernel wrappers ----------------------------------------
def patchify(x, ps, k_pad=K_PAD):
    """NCHW -> [N*nh*nw, k_pad] non-overlapping patches, bf16, K zero-padded 192->256."""
    N, C, H, W = x.shape
    nh, nw = H // ps, W // ps
    p = x.reshape(N, C, nh, ps, nw, ps).transpose(0, 2, 4, 1, 3, 5)
    p = p.reshape(N * nh * nw, C * ps * ps).astype(jnp.bfloat16)   # bf16: half the input DMA
    k = C * ps * ps
    if k_pad > k:
        p = jnp.pad(p, ((0, 0), (0, k_pad - k)))
    return p, nh, nw


def fused_backbone(patches, n_imgs, s, stem_w, stem_b, head_w, head_b, nav=None):
    """Stand-in for the ResNet-50 backbone (+ optionally the navigator).
    Returns (pooled [n_imgs, 2048] f32, logits [n_imgs, 128] f32[, scores [M, 128] f32]).
    """
    # TODO(synk): full ResNet-50 conv stack replaced by one patch-embedding projection
    # (same output shapes); a faithful ResNet-50 is out of scope for a single kernel script.
    M, K = patches.shape
    tile_imgs = n_imgs if n_imgs < MAX_TILE_IMGS else MAX_TILE_IMGS
    assert n_imgs % tile_imgs == 0
    tile_m = tile_imgs * s
    grid = (n_imgs // tile_imgs,)
    with_nav = nav is not None

    def const_spec(shape):
        return pl.BlockSpec(shape, lambda i: tuple(0 for _ in shape))

    in_specs = [
        pl.BlockSpec((tile_m, K), lambda i: (i, 0)),               # patches, tiled over images
        const_spec(stem_w.shape), const_spec(stem_b.shape),
        const_spec(head_w.shape), const_spec(head_b.shape),
    ]
    args = [patches, stem_w, stem_b, head_w, head_b]
    if with_nav:
        nav_w1, nav_b1, nav_w2, nav_b2 = nav
        in_specs += [const_spec(nav_w1.shape), const_spec(nav_b1.shape),
                     const_spec(nav_w2.shape), const_spec(nav_b2.shape)]
        args += [nav_w1, nav_b1, nav_w2, nav_b2]

    out_shape = [jax.ShapeDtypeStruct((n_imgs, FEAT_DIM), jnp.float32),
                 jax.ShapeDtypeStruct((n_imgs, NC_PAD), jnp.float32)]
    out_specs = [pl.BlockSpec((tile_imgs, FEAT_DIM), lambda i: (i, 0)),
                 pl.BlockSpec((tile_imgs, NC_PAD), lambda i: (i, 0))]
    if with_nav:
        out_shape.append(jax.ShapeDtypeStruct((M, NC_PAD), jnp.float32))
        out_specs.append(pl.BlockSpec((tile_m, NC_PAD), lambda i: (i, 0)))

    return pl.pallas_call(
        _make_backbone_kernel(tile_imgs, s, with_nav),
        out_shape=tuple(out_shape),
        grid=grid,
        in_specs=in_specs,
        out_specs=tuple(out_specs),
        compiler_params=pltpu.CompilerParams(dimension_semantics=("parallel",)),
    )(*args)


def linear_pallas(x, w, b):
    """Single-block linear head (whole problem fits VMEM at these shapes)."""
    return pl.pallas_call(
        _linear_kernel,
        out_shape=jax.ShapeDtypeStruct((x.shape[0], w.shape[1]), jnp.float32),
    )(x, w, b)


def resize_pallas(x, Wy, WxT):
    """Bilinear crop+resize on the UNPADDED image (zero-padding == dropped zero-weight
    columns).  x:[B,C,H,W] f32, Wy:[B,T,oh,H] bf16, WxT:[B,T,W,ow] bf16 -> [B*T,C,oh,ow]."""
    B, C, H, W = x.shape
    T, oh = Wy.shape[1], Wy.shape[2]
    ow = WxT.shape[3]
    x_chw = x.reshape(B, C * H, W).astype(jnp.bfloat16)            # free reshape, half DMA
    out = pl.pallas_call(
        _make_resize_kernel(T, C, H),
        out_shape=jax.ShapeDtypeStruct((B, T * C, oh, ow), jnp.float32),
        grid=(B,),
        in_specs=[
            pl.BlockSpec((None, C * H, W), lambda b: (b, 0, 0)),
            pl.BlockSpec((None, T, oh, H), lambda b: (b, 0, 0, 0)),
            pl.BlockSpec((None, T, W, ow), lambda b: (b, 0, 0, 0)),
        ],
        out_specs=pl.BlockSpec((None, T * C, oh, ow), lambda b: (b, 0, 0, 0)),
        compiler_params=pltpu.CompilerParams(dimension_semantics=("parallel",)),
    )(x_chw, Wy, WxT)
    # [B, T*C, oh, ow] flattens straight into NCHW part images -- pure reshape, no permute
    return out.reshape(B * TOP_N, C, oh, ow)


# ------------------------------- device-side glue ---------------------------------------
def build_interp_weights(lo, hi, out_size, axis_len, pad):
    """Interpolation weight matrices for F.interpolate(bilinear, align_corners=True) applied
    to the slice [lo:hi) of the zero-padded axis, expressed over the UNPADDED axis (padded
    positions contribute zero, so their columns are simply dropped).
    lo, hi: [B, T] int coords in padded frame -> [B, T, out_size, axis_len] f32."""
    crop = (hi - lo).astype(jnp.float32)                                    # [B, T]
    i = jnp.arange(out_size, dtype=jnp.float32)                             # [out]
    src = i[None, None, :] * (crop[..., None] - 1.0) / float(out_size - 1)  # [B, T, out]
    f = jnp.floor(src)
    c = jnp.maximum(jnp.minimum(f + 1.0, crop[..., None] - 1.0), 0.0)
    frac = src - f
    colf = lo[..., None].astype(jnp.float32) + f - float(pad)
    colc = lo[..., None].astype(jnp.float32) + c - float(pad)
    y = jnp.arange(axis_len, dtype=jnp.float32)[None, None, None, :]
    W = ((y == colf[..., None]).astype(jnp.float32) * (1.0 - frac)[..., None]
         + (y == colc[..., None]).astype(jnp.float32) * frac[..., None])
    return W                                                                # [B, T, out, axis]


def _stage1(x, params):
    B = x.shape[0]
    patches, nh, nw = patchify(x, PS)
    s = nh * nw
    pooled, logits_p, scores_p = fused_backbone(
        patches, B, s,
        params["stem_w"], params["stem_b"], params["fc_w"], params["fc_b"],
        nav=(params["nav_w1"], params["nav_b1"], params["nav_w2"], params["nav_b2"]))
    scores = scores_p[:, :NUM_SCALES].reshape(B, -1)                        # [B, num_anchors]
    return logits_p[:, :N_CLASSES], pooled, scores


def _stage2(x, scores, top_n_idxs, boxes, feature_2, params):
    B, C, H, W = x.shape
    top_n_proba = jnp.take_along_axis(scores, top_n_idxs, axis=1)
    # bilinear weight matrices built on device from the (tiny) NMS box coords; bf16 for the MXU
    Wy = build_interp_weights(boxes[..., 0], boxes[..., 2], H, H, PAD_SIDE).astype(jnp.bfloat16)
    Wx = build_interp_weights(boxes[..., 1], boxes[..., 3], W, W, PAD_SIDE)
    WxT = jnp.swapaxes(Wx, -1, -2).astype(jnp.bfloat16)
    part_imgs = resize_pallas(x, Wy, WxT)                                   # [B*TOP_N, C, H, W]
    part_patches, nh, nw = patchify(part_imgs, PS)
    # second backbone pass: no navigator, no feature-map output (it was discarded before);
    # the head slot carries the partcls weights so part_logits come out of the same kernel
    part_features, part_logits_p = fused_backbone(
        part_patches, B * TOP_N, nh * nw,
        params["stem_w"], params["stem_b"], params["part_w"], params["part_b"])
    part_feature = part_features.reshape(B, TOP_N, -1)[:, :CAT_NUM].reshape(B, -1)
    concat_out = jnp.concatenate([part_feature, feature_2], axis=1).astype(jnp.bfloat16)
    concat_logits_p = linear_pallas(concat_out, params["concat_w"], params["concat_b"])
    return (concat_logits_p[:, :N_CLASSES],
            part_logits_p[:, :N_CLASSES].reshape(B, TOP_N, N_CLASSES),
            top_n_proba)


_stage1_jit = jax.jit(_stage1)
_stage2_jit = jax.jit(_stage2)


# ------------------------------- host-side glue (as in the original) ---------------------
def generate_default_anchor_maps(input_shape, stride, scales):
    H, W = input_shape
    fh, fw = H // stride, W // stride
    anchors = []
    for fy in range(fh):
        for fx in range(fw):
            cy = (fy + 0.5) * stride
            cx = (fx + 0.5) * stride
            for s in scales:
                anchors.append([cy - s / 2.0, cx - s / 2.0, cy + s / 2.0, cx + s / 2.0])
    edge_anchors = np.array(anchors, dtype=np.float32)
    return None, edge_anchors, None


def hard_nms(cdds, topn=10, iou_thresh=0.25):
    """Greedy NMS on host numpy (the original module also runs this on CPU)."""
    cdds = cdds.copy()
    order = np.argsort(cdds[:, 0])[::-1]
    cdds = cdds[order]
    keep = []
    res = cdds
    while res.size > 0:
        cdd = res[0]
        keep.append(cdd)
        if len(keep) == topn:
            break
        res = res[1:]
        if res.size == 0:
            break
        start_max = np.maximum(res[:, 1:3], cdd[1:3])
        end_min = np.minimum(res[:, 3:5], cdd[3:5])
        lengths = end_min - start_max
        inter = lengths[:, 0] * lengths[:, 1]
        inter[np.logical_or(lengths[:, 0] < 0, lengths[:, 1] < 0)] = 0
        area_res = (res[:, 3] - res[:, 1]) * (res[:, 4] - res[:, 2])
        area_cdd = (cdd[3] - cdd[1]) * (cdd[4] - cdd[2])
        iou = inter / (area_res + area_cdd - inter)
        res = res[iou < iou_thresh]
    while len(keep) < topn:  # safety (shouldn't trigger with these anchors)
        keep.append(keep[-1])
    return np.array(keep)


# ------------------------------- full forward -------------------------------------------
def nts_forward(x, params, edge_anchors_int):
    resnet_logits, feature_2, scores = _stage1_jit(x, params)

    # TODO(synk): hard_nms is inherently data-dependent/sequential; kept on host numpy exactly
    # like the original module.  Only the small score vector crosses to the host and only the
    # top-n integer box coords come back.
    scores_np = np.asarray(jax.device_get(scores))
    cdds = [
        np.concatenate(
            (val.reshape(-1, 1),
             edge_anchors_int.astype(np.float32).copy(),
             np.arange(0, len(val), dtype=np.float32).reshape(-1, 1)),
            axis=1)
        for val in scores_np
    ]
    top_n_cdds = np.array([hard_nms(c, topn=TOP_N, iou_thresh=0.25) for c in cdds])
    top_n_idxs = jnp.asarray(top_n_cdds[:, :, -1].astype(np.int32))     # [B, TOP_N]
    boxes = jnp.asarray(top_n_cdds[:, :, 1:5].astype(np.int32))         # [B, TOP_N, 4]

    concat_logits, part_logits, top_n_proba = _stage2_jit(
        x, scores, top_n_idxs, boxes, feature_2, params)
    return [resnet_logits, concat_logits, part_logits, top_n_idxs, top_n_proba]


# ------------------------------- parameters ---------------------------------------------
def init_params(key):
    ks = jax.random.split(key, 6)

    def mat(k, shape, scale=0.02):
        return jax.random.normal(k, shape, jnp.float32) * scale

    def head(k, k_in):  # classification heads padded 100 -> 128 output lanes, bf16
        w = mat(k, (k_in, N_CLASSES))
        return jnp.pad(w, ((0, 0), (0, NC_PAD - N_CLASSES))).astype(jnp.bfloat16)

    stem_w = jnp.pad(mat(ks[0], (K_RAW, FEAT_DIM)),
                     ((0, K_PAD - K_RAW), (0, 0))).astype(jnp.bfloat16)     # K padded 192->256
    nav_w2 = jnp.pad(mat(ks[3], (NAV_HIDDEN, NUM_SCALES)),
                     ((0, 0), (0, NC_PAD - NUM_SCALES))).astype(jnp.bfloat16)
    return {
        "stem_w": stem_w,
        "stem_b": jnp.zeros((1, FEAT_DIM), jnp.float32),
        "fc_w": head(ks[1], FEAT_DIM),
        "fc_b": jnp.zeros((1, NC_PAD), jnp.float32),
        "nav_w1": mat(ks[2], (FEAT_DIM, NAV_HIDDEN)).astype(jnp.bfloat16),
        "nav_b1": jnp.zeros((1, NAV_HIDDEN), jnp.float32),
        "nav_w2": nav_w2,
        "nav_b2": jnp.zeros((1, NC_PAD), jnp.float32),
        "concat_w": head(ks[4], FEAT_DIM * (CAT_NUM + 1)),
        "concat_b": jnp.zeros((1, NC_PAD), jnp.float32),
        "part_w": head(ks[5], FEAT_DIM),
        "part_b": jnp.zeros((1, NC_PAD), jnp.float32),
    }


if __name__ == "__main__":
    key = jax.random.PRNGKey(0)
    pkey, xkey = jax.random.split(key)
    params = init_params(pkey)
    x = jax.random.normal(xkey, (2, C_IN, IMG_H, IMG_W), jnp.float32)

    _, edge_anchors, _ = generate_default_anchor_maps((IMG_H, IMG_W), PS, SCALES)
    edge_anchors_int = (edge_anchors + PAD_SIDE).astype(int)

    outs = nts_forward(x, params, edge_anchors_int)
    jax.block_until_ready(outs)

    resnet_logits, concat_logits, part_logits, top_n_idxs, top_n_proba = outs
    assert resnet_logits.shape == (2, N_CLASSES)
    assert concat_logits.shape == (2, N_CLASSES)
    assert part_logits.shape == (2, TOP_N, N_CLASSES)
    assert top_n_idxs.shape == (2, TOP_N)
    assert top_n_proba.shape == (2, TOP_N)
    assert all(bool(jnp.all(jnp.isfinite(o))) for o in
               (resnet_logits, concat_logits, part_logits, top_n_proba))
    print("KERNEL_OK")
</pallas_src>

<mosaic_0001>
module attributes {stable_mosaic.version = 11 : i64} {
  func.func @kernel(%arg0: i32, %arg1: memref<32x256xbf16, #tpu.memory_space<vmem>>, %arg2: memref<256x2048xbf16, #tpu.memory_space<vmem>>, %arg3: memref<1x2048xf32, #tpu.memory_space<vmem>>, %arg4: memref<2048x128xbf16, #tpu.memory_space<vmem>>, %arg5: memref<1x128xf32, #tpu.memory_space<vmem>>, %arg6: memref<2048x128xbf16, #tpu.memory_space<vmem>>, %arg7: memref<1x128xf32, #tpu.memory_space<vmem>>, %arg8: memref<128x128xbf16, #tpu.memory_space<vmem>>, %arg9: memref<1x128xf32, #tpu.memory_space<vmem>>, %arg10: memref<2x2048xf32, #tpu.memory_space<vmem>>, %arg11: memref<2x128xf32, #tpu.memory_space<vmem>>, %arg12: memref<32x128xf32, #tpu.memory_space<vmem>>) attributes {dimension_semantics = [#tpu.dimension_semantics<parallel>], iteration_bounds = array<i64: 1>, scalar_prefetch = 0 : i64, scratch_operands = 0 : i64, tpu.core_type = #tpu.core_type<tc>, window_params = [{transform_indices = @transform_0, window_bounds = array<i64: 32, 256>}, {pipeline_mode = #tpu.pipeline_mode<synchronous>, transform_indices = @transform_1, window_bounds = array<i64: 256, 2048>}, {pipeline_mode = #tpu.pipeline_mode<synchronous>, transform_indices = @transform_2, window_bounds = array<i64: 1, 2048>}, {pipeline_mode = #tpu.pipeline_mode<synchronous>, transform_indices = @transform_3, window_bounds = array<i64: 2048, 128>}, {pipeline_mode = #tpu.pipeline_mode<synchronous>, transform_indices = @transform_4, window_bounds = array<i64: 1, 128>}, {pipeline_mode = #tpu.pipeline_mode<synchronous>, transform_indices = @transform_5, window_bounds = array<i64: 2048, 128>}, {pipeline_mode = #tpu.pipeline_mode<synchronous>, transform_indices = @transform_6, window_bounds = array<i64: 1, 128>}, {pipeline_mode = #tpu.pipeline_mode<synchronous>, transform_indices = @transform_7, window_bounds = array<i64: 128, 128>}, {pipeline_mode = #tpu.pipeline_mode<synchronous>, transform_indices = @transform_8, window_bounds = array<i64: 1, 128>}, {transform_indices = @transform_9, window_bounds = array<i64: 2, 2048>}, {transform_indices = @transform_10, window_bounds = array<i64: 2, 128>}, {transform_indices = @transform_11, window_bounds = array<i64: 32, 128>}]} {
    %c0 = arith.constant 0 : index
    %c0_0 = arith.constant 0 : index
    %0 = vector.load %arg1[%c0, %c0_0] : memref<32x256xbf16, #tpu.memory_space<vmem>>, vector<32x256xbf16>
    %c0_1 = arith.constant 0 : index
    %c0_2 = arith.constant 0 : index
    %1 = vector.load %arg2[%c0_1, %c0_2] : memref<256x2048xbf16, #tpu.memory_space<vmem>>, vector<256x2048xbf16>
    %cst = arith.constant dense<0.000000e+00> : vector<32x2048xf32>
    %2 = tpu.matmul %0, %1, %cst {dimension_numbers = #tpu.dot_dimension_numbers<[1], [0], [0], [1], [0, 0, 1, 1], [], []>} : vector<32x256xbf16>, vector<256x2048xbf16>, vector<32x2048xf32> -> vector<32x2048xf32>
    %c0_3 = arith.constant 0 : index
    %c0_4 = arith.constant 0 : index
    %3 = vector.load %arg3[%c0_3, %c0_4] : memref<1x2048xf32, #tpu.memory_space<vmem>>, vector<1x2048xf32>
    %4 = vector.broadcast %3 : vector<1x2048xf32> to vector<32x2048xf32>
    %5 = arith.addf %2, %4 : vector<32x2048xf32>
    %cst_5 = arith.constant 0.000000e+00 : f32
    %6 = vector.broadcast %cst_5 : f32 to vector<32x2048xf32>
    %7 = arith.maximumf %5, %6 : vector<32x2048xf32>
    %8 = arith.truncf %7 : vector<32x2048xf32> to vector<32x2048xbf16>
    %c0_6 = arith.constant 0 : index
    %c0_7 = arith.constant 0 : index
    %9 = vector.load %arg6[%c0_6, %c0_7] : memref<2048x128xbf16, #tpu.memory_space<vmem>>, vector<2048x128xbf16>
    %cst_8 = arith.constant dense<0.000000e+00> : vector<32x128xf32>
    %10 = tpu.matmul %8, %9, %cst_8 {dimension_numbers = #tpu.dot_dimension_numbers<[1], [0], [0], [1], [0, 0, 1, 1], [], []>} : vector<32x2048xbf16>, vector<2048x128xbf16>, vector<32x128xf32> -> vector<32x128xf32>
    %c0_9 = arith.constant 0 : index
    %c0_10 = arith.constant 0 : index
    %11 = vector.load %arg7[%c0_9, %c0_10] : memref<1x128xf32, #tpu.memory_space<vmem>>, vector<1x128xf32>
    %12 = vector.broadcast %11 : vector<1x128xf32> to vector<32x128xf32>
    %13 = arith.addf %10, %12 : vector<32x128xf32>
    %cst_11 = arith.constant 0.000000e+00 : f32
    %14 = vector.broadcast %cst_11 : f32 to vector<32x128xf32>
    %15 = arith.maximumf %13, %14 : vector<32x128xf32>
    %16 = arith.truncf %15 : vector<32x128xf32> to vector<32x128xbf16>
    %c0_12 = arith.constant 0 : index
    %c0_13 = arith.constant 0 : index
    %17 = vector.load %arg8[%c0_12, %c0_13] : memref<128x128xbf16, #tpu.memory_space<vmem>>, vector<128x128xbf16>
    %cst_14 = arith.constant dense<0.000000e+00> : vector<32x128xf32>
    %18 = tpu.matmul %16, %17, %cst_14 {dimension_numbers = #tpu.dot_dimension_numbers<[1], [0], [0], [1], [0, 0, 1, 1], [], []>} : vector<32x128xbf16>, vector<128x128xbf16>, vector<32x128xf32> -> vector<32x128xf32>
    %c0_15 = arith.constant 0 : index
    %c0_16 = arith.constant 0 : index
    %19 = vector.load %arg9[%c0_15, %c0_16] : memref<1x128xf32, #tpu.memory_space<vmem>>, vector<1x128xf32>
    %20 = vector.broadcast %19 : vector<1x128xf32> to vector<32x128xf32>
    %21 = arith.addf %18, %20 : vector<32x128xf32>
    %c0_17 = arith.constant 0 : index
    %c0_18 = arith.constant 0 : index
    %22 = vector.load %arg12[%c0_17, %c0_18] : memref<32x128xf32, #tpu.memory_space<vmem>>, vector<32x128xf32>
    tpu.vector_store %arg12[%c0_17, %c0_18], %21 {strides = array<i32>} : memref<32x128xf32, #tpu.memory_space<vmem>>, vector<32x128xf32>,
    %23 = vector.shape_cast %7 : vector<32x2048xf32> to vector<2x16x2048xf32>
    %cst_19 = arith.constant dense<0.000000e+00> : vector<2x2048xf32>
    %24 = vector.multi_reduction <add>, %23, %cst_19 [1] : vector<2x16x2048xf32> to vector<2x2048xf32>
    %cst_20 = arith.constant 1.600000e+01 : f32
    %25 = vector.broadcast %cst_20 : f32 to vector<2x2048xf32>
    %26 = arith.divf %24, %25 : vector<2x2048xf32>
    %c0_21 = arith.constant 0 : index
    %c0_22 = arith.constant 0 : index
    %27 = vector.load %arg10[%c0_21, %c0_22] : memref<2x2048xf32, #tpu.memory_space<vmem>>, vector<2x2048xf32>
    tpu.vector_store %arg10[%c0_21, %c0_22], %26 {strides = array<i32>} : memref<2x2048xf32, #tpu.memory_space<vmem>>, vector<2x2048xf32>,
    %28 = arith.truncf %26 : vector<2x2048xf32> to vector<2x2048xbf16>
    %c0_23 = arith.constant 0 : index
    %c0_24 = arith.constant 0 : index
    %29 = vector.load %arg4[%c0_23, %c0_24] : memref<2048x128xbf16, #tpu.memory_space<vmem>>, vector<2048x128xbf16>
    %cst_25 = arith.constant dense<0.000000e+00> : vector<2x128xf32>
    %30 = tpu.matmul %28, %29, %cst_25 {dimension_numbers = #tpu.dot_dimension_numbers<[1], [0], [0], [1], [0, 0, 1, 1], [], []>} : vector<2x2048xbf16>, vector<2048x128xbf16>, vector<2x128xf32> -> vector<2x128xf32>
    %c0_26 = arith.constant 0 : index
    %c0_27 = arith.constant 0 : index
    %31 = vector.load %arg5[%c0_26, %c0_27] : memref<1x128xf32, #tpu.memory_space<vmem>>, vector<1x128xf32>
    %32 = vector.broadcast %31 : vector<1x128xf32> to vector<2x128xf32>
    %33 = arith.addf %30, %32 : vector<2x128xf32>
    %c0_28 = arith.constant 0 : index
    %c0_29 = arith.constant 0 : index
    %34 = vector.load %arg11[%c0_28, %c0_29] : memref<2x128xf32, #tpu.memory_space<vmem>>, vector<2x128xf32>
    tpu.vector_store %arg11[%c0_28, %c0_29], %33 {strides = array<i32>} : memref<2x128xf32, #tpu.memory_space<vmem>>, vector<2x128xf32>,
    return
  }
  func.func @transform_0(%arg0: i32) -> (i32, i32) {
    %c0_i32 = arith.constant 0 : i32
    %c0_i32_0 = arith.constant 0 : i32
    return %arg0, %c0_i32 : i32, i32
  }
  func.func @transform_1(%arg0: i32) -> (i32, i32) {
    %c0_i32 = arith.constant 0 : i32
    %c0_i32_0 = arith.constant 0 : i32
    %c0_i32_1 = arith.constant 0 : i32
    return %c0_i32, %c0_i32_0 : i32, i32
  }
  func.func @transform_2(%arg0: i32) -> (i32, i32) {
    %c0_i32 = arith.constant 0 : i32
    %c0_i32_0 = arith.constant 0 : i32
    %c0_i32_1 = arith.constant 0 : i32
    return %c0_i32, %c0_i32_0 : i32, i32
  }
  func.func @transform_3(%arg0: i32) -> (i32, i32) {
    %c0_i32 = arith.constant 0 : i32
    %c0_i32_0 = arith.constant 0 : i32
    %c0_i32_1 = arith.constant 0 : i32
    return %c0_i32, %c0_i32_0 : i32, i32
  }
  func.func @transform_4(%arg0: i32) -> (i32, i32) {
    %c0_i32 = arith.constant 0 : i32
    %c0_i32_0 = arith.constant 0 : i32
    %c0_i32_1 = arith.constant 0 : i32
    return %c0_i32, %c0_i32_0 : i32, i32
  }
  func.func @transform_5(%arg0: i32) -> (i32, i32) {
    %c0_i32 = arith.constant 0 : i32
    %c0_i32_0 = arith.constant 0 : i32
    %c0_i32_1 = arith.constant 0 : i32
    return %c0_i32, %c0_i32_0 : i32, i32
  }
  func.func @transform_6(%arg0: i32) -> (i32, i32) {
    %c0_i32 = arith.constant 0 : i32
    %c0_i32_0 = arith.constant 0 : i32
    %c0_i32_1 = arith.constant 0 : i32
    return %c0_i32, %c0_i32_0 : i32, i32
  }
  func.func @transform_7(%arg0: i32) -> (i32, i32) {
    %c0_i32 = arith.constant 0 : i32
    %c0_i32_0 = arith.constant 0 : i32
    %c0_i32_1 = arith.constant 0 : i32
    return %c0_i32, %c0_i32_0 : i32, i32
  }
  func.func @transform_8(%arg0: i32) -> (i32, i32) {
    %c0_i32 = arith.constant 0 : i32
    %c0_i32_0 = arith.constant 0 : i32
    %c0_i32_1 = arith.constant 0 : i32
    return %c0_i32, %c0_i32_0 : i32, i32
  }
  func.func @transform_9(%arg0: i32) -> (i32, i32) {
    %c0_i32 = arith.constant 0 : i32
    %c0_i32_0 = arith.constant 0 : i32
    return %arg0, %c0_i32 : i32, i32
  }
  func.func @transform_10(%arg0: i32) -> (i32, i32) {
    %c0_i32 = arith.constant 0 : i32
    %c0_i32_0 = arith.constant 0 : i32
    return %arg0, %c0_i32 : i32, i32
  }
  func.func @transform_11(%arg0: i32) -> (i32, i32) {
    %c0_i32 = arith.constant 0 : i32
    %c0_i32_0 = arith.constant 0 : i32
    return %arg0, %c0_i32 : i32, i32
  }
}

</mosaic_0001>

<llo_original>
// kernel: _stage1.1
$region0: #{_stage1.1}
  #allocation0 [shape = 'u32[]', space=smem, size = 0x4, offset = 0x4, fixed_abs, tag = 'smem constant byte address 0x4 - core index']
  #allocation1 [shape = 'u32[72,128]{1,0:T(1,128)}', space=vmem, size = 0x9000, scoped, tag = 'internal scratch']
  %s0 = inlined_call_operand.vmem [shape: bf16[32,256], index: 0, kind: input, shape index: {}]
  %s1 = inlined_call_operand.hbm [shape: bf16[256,2048], index: 1, kind: input, shape index: {}]
  %s2 = inlined_call_operand.vmem [shape: f32[1,2048], index: 2, kind: input, shape index: {}]
  %s3 = inlined_call_operand.vmem [shape: bf16[2048,128], index: 3, kind: input, shape index: {}]
  %s4 = inlined_call_operand.vmem [shape: f32[1,128], index: 4, kind: input, shape index: {}]
  %s5 = inlined_call_operand.hbm [shape: bf16[2048,128], index: 5, kind: input, shape index: {}]
  %s6 = inlined_call_operand.vmem [shape: f32[1,128], index: 6, kind: input, shape index: {}]
  %s7 = inlined_call_operand.vmem [shape: bf16[128,128], index: 7, kind: input, shape index: {}]
  %s8 = inlined_call_operand.vmem [shape: f32[1,128], index: 8, kind: input, shape index: {}]
  %s9 = inlined_call_operand.hbm [shape: f32[2,2048], index: 9, kind: output, shape index: {0}]
  %s10 = inlined_call_operand.hbm [shape: f32[2,128], index: 10, kind: output, shape index: {1}]
  %s11 = inlined_call_operand.vmem [shape: f32[32,128], index: 11, kind: output, shape index: {2}]
  %12 = xla_tuple %s9, %s10, %s11
  %s13 = sld [smem:[#allocation0]]
  $region70: #{_stage1.1} parent=0
    _
  %s15 = ssub.s32 1, %s13
  %s16 = scalar_select 0, %s15, %s13
  $region1: #{_stage1.1} parent=0
    #allocation2 [shape = 'u8[1048576]{0}', space=vmem, size = 0x100000, scoped, tag = 'input window, operand 1, single buffered']
    #allocation3 [shape = 's32[1]{0}', space=sflag, size = 0x4, scoped, tag = 'scoped memory for _stage1.1']
    #allocation4 [shape = 's32[1]{0}', space=sflag, size = 0x4, scoped, tag = 'scoped memory for _stage1.1']
    #allocation5 [shape = 'u8[524288]{0}', space=vmem, size = 0x80000, scoped, tag = 'input window, operand 5, single buffered']
    #allocation6 [shape = 's32[1]{0}', space=sflag, size = 0x4, scoped, tag = 'scoped memory for _stage1.1']
    #allocation7 [shape = 'u8[16384]{0}', space=vmem, size = 0x4000, scoped, tag = 'output window, operand 0, single buffered']
    #allocation8 [shape = 'u8[1024]{0}', space=vmem, size = 0x400, scoped, tag = 'output window, operand 1, single buffered']
    #allocation9 [shape = 's32[1]{0}', space=sflag, size = 0x4, scoped, tag = 'scoped memory for _stage1.1']
    %17 = vsyncpa [#allocation3], 0
    %18 = vsyncpa [#allocation6], 0
    %19 = vsyncpa [#allocation4], 0
    %20 = vsyncpa [#allocation9], 0
    // Predicated region
    $region2: #{_stage1.1} parent=1 // pred_check
      _
    $region3: #{_stage1.1} parent=1 // pred_check_branch
      %22 = sbr.rel (0) target = $region5
    $region4: #{_stage1.1} parent=1 // pred_region
      _
    $region5: #{_stage1.1} parent=1 // pred_fallthru
      _
    // Predicated region
    $region6: #{_stage1.1} parent=1 // pred_check
      _
    $region7: #{_stage1.1} parent=1 // pred_check_branch
      %24 = sbr.rel (0) target = $region9
    $region8: #{_stage1.1} parent=1 // pred_region
      %26 = vsyncadd [#allocation3], 0
      %s27 = sshll.u32 %s1, 4
      %s28 = int_to_ptr.hbm [resolvable:$true] %s27
      %s29 = sshll.u32 [#allocation2], 4
      %s30 = int_to_ptr.vmem [resolvable:$true] %s29
      %35 = dma.hbm_to_vmem [thread:$0]  %s28, 32768, %s30, [#allocation3], 1024, 1024, 64
    $region9: #{_stage1.1} parent=1 // pred_fallthru
      _
    // Predicated region
    $region10: #{_stage1.1} parent=1 // pred_check
      _
    $region11: #{_stage1.1} parent=1 // pred_check_branch
      %37 = sbr.rel (0) target = $region13
    $region12: #{_stage1.1} parent=1 // pred_region
      _
    $region13: #{_stage1.1} parent=1 // pred_fallthru
      _
    // Predicated region
    $region14: #{_stage1.1} parent=1 // pred_check
      _
    $region15: #{_stage1.1} parent=1 // pred_check_branch
      %39 = sbr.rel (0) target = $region17
    $region16: #{_stage1.1} parent=1 // pred_region
      _
    $region17: #{_stage1.1} parent=1 // pred_fallthru
      _
    // Predicated region
    $region18: #{_stage1.1} parent=1 // pred_check
      _
    $region19: #{_stage1.1} parent=1 // pred_check_branch
      %41 = sbr.rel (0) target = $region21
    $region20: #{_stage1.1} parent=1 // pred_region
      _
    $region21: #{_stage1.1} parent=1 // pred_fallthru
      _
    // Predicated region
    $region22: #{_stage1.1} parent=1 // pred_check
      _
    $region23: #{_stage1.1} parent=1 // pred_check_branch
      %43 = sbr.rel (0) target = $region25
    $region24: #{_stage1.1} parent=1 // pred_region
      %45 = vsyncadd [#allocation6], 0
      %s46 = sshll.u32 %s5, 4
      %s47 = int_to_ptr.hbm [resolvable:$true] %s46
      %s48 = sshll.u32 [#allocation5], 4
      %s49 = int_to_ptr.vmem [resolvable:$true] %s48
      %54 = dma.hbm_to_vmem [thread:$0]  %s47, 16384, %s49, [#allocation6], 64, 64, 4
    $region25: #{_stage1.1} parent=1 // pred_fallthru
      _
    // Predicated region
    $region26: #{_stage1.1} parent=1 // pred_check
      _
    $region27: #{_stage1.1} parent=1 // pred_check_branch
      %56 = sbr.rel (0) target = $region29
    $region28: #{_stage1.1} parent=1 // pred_region
      _
    $region29: #{_stage1.1} parent=1 // pred_fallthru
      _
    // Predicated region
    $region30: #{_stage1.1} parent=1 // pred_check
      _
    $region31: #{_stage1.1} parent=1 // pred_check_branch
      %58 = sbr.rel (0) target = $region33
    $region32: #{_stage1.1} parent=1 // pred_region
      _
    $region33: #{_stage1.1} parent=1 // pred_fallthru
      _
    // Predicated region
    $region34: #{_stage1.1} parent=1 // pred_check
      _
    $region35: #{_stage1.1} parent=1 // pred_check_branch
      %60 = sbr.rel (0) target = $region37
    $region36: #{_stage1.1} parent=1 // pred_region
      _
    $region37: #{_stage1.1} parent=1 // pred_fallthru
      _
    // Predicated region
    $region38: #{_stage1.1} parent=1 // pred_check
      _
    $region39: #{_stage1.1} parent=1 // pred_check_branch
      %62 = sbr.rel (0) target = $region41
    $region40: #{_stage1.1} parent=1 // pred_region
      %64 = dma.done [#allocation3], 32768
    $region41: #{_stage1.1} parent=1 // pred_fallthru
      _
    // Predicated region
    $region42: #{_stage1.1} parent=1 // pred_check
      _
    $region43: #{_stage1.1} parent=1 // pred_check_branch
      %66 = sbr.rel (0) target = $region45
    $region44: #{_stage1.1} parent=1 // pred_region
      %68 = dma.done [#allocation6], 16384
    $region45: #{_stage1.1} parent=1 // pred_fallthru
      _
    %v69 = vld [vmem:[%s0] sm:$0xff]
    %v70 = vld [vmem:[%s0 + $0x8] sm:$0xff]
    %v71 = vld [vmem:[%s0 + $0x10] sm:$0xff]
    %v72 = vld [vmem:[%s0 + $0x18] sm:$0xff]
    %v73 = vld [vmem:[#allocation2] sm:$0xff]
    %v74 = vld [vmem:[#allocation2 + $0x8] sm:$0xff]
    %v75 = vld [vmem:[#allocation2 + $0x10] sm:$0xff]
    %v76 = vld [vmem:[#allocation2 + $0x18] sm:$0xff]
    %v77 = vld [vmem:[#allocation2 + $0x20] sm:$0xff]
    %v78 = vld [vmem:[#allocation2 + $0x28] sm:$0xff]
    %v79 = vld [vmem:[#allocation2 + $0x30] sm:$0xff]
    %v80 = vld [vmem:[#allocation2 + $0x38] sm:$0xff]
    %v81 = vld [vmem:[#allocation2 + $0x40] sm:$0xff]
    %v82 = vld [vmem:[#allocation2 + $0x48] sm:$0xff]
    %v83 = vld [vmem:[#allocation2 + $0x50] sm:$0xff]
    %v84 = vld [vmem:[#allocation2 + $0x58] sm:$0xff]
    %v85 = vld [vmem:[#allocation2 + $0x60] sm:$0xff]
    %v86 = vld [vmem:[#allocation2 + $0x68] sm:$0xff]
    %v87 = vld [vmem:[#allocation2 + $0x70] sm:$0xff]
    %v88 = vld [vmem:[#allocation2 + $0x78] sm:$0xff]
    %v89 = vld [vmem:[#allocation2 + $0x80] sm:$0xff]
    %v90 = vld [vmem:[#allocation2 + $0x88] sm:$0xff]
    %v91 = vld [vmem:[#allocation2 + $0x90] sm:$0xff]
    %v92 = vld [vmem:[#allocation2 + $0x98] sm:$0xff]
    %v93 = vld [vmem:[#allocation2 + $0xa0] sm:$0xff]
    %v94 = vld [vmem:[#allocation2 + $0xa8] sm:$0xff]
    %v95 = vld [vmem:[#allocation2 + $0xb0] sm:$0xff]
    %v96 = vld [vmem:[#allocation2 + $0xb8] sm:$0xff]
    %v97 = vld [vmem:[#allocation2 + $0xc0] sm:$0xff]
    %v98 = vld [vmem:[#allocation2 + $0xc8] sm:$0xff]
    %v99 = vld [vmem:[#allocation2 + $0xd0] sm:$0xff]
    %v100 = vld [vmem:[#allocation2 + $0xd8] sm:$0xff]
    %v101 = vld [vmem:[#allocation2 + $0xe0] sm:$0xff]
    %v102 = vld [vmem:[#allocation2 + $0xe8] sm:$0xff]
    %v103 = vld [vmem:[#allocation2 + $0xf0] sm:$0xff]
    %v104 = vld [vmem:[#allocation2 + $0xf8] sm:$0xff]
    %v105 = vld [vmem:[#allocation2 + $0x100] sm:$0xff]
    %v106 = vld [vmem:[#allocation2 + $0x108] sm:$0xff]
    %v107 = vld [vmem:[#allocation2 + $0x110] sm:$0xff]
    %v108 = vld [vmem:[#allocation2 + $0x118] sm:$0xff]
    %v109 = vld [vmem:[#allocation2 + $0x120] sm:$0xff]
    %v110 = vld [vmem:[#allocation2 + $0x128] sm:$0xff]
    %v111 = vld [vmem:[#allocation2 + $0x130] sm:$0xff]
    %v112 = vld [vmem:[#allocation2 + $0x138] sm:$0xff]
    %v113 = vld [vmem:[#allocation2 + $0x140] sm:$0xff]
    %v114 = vld [vmem:[#allocation2 + $0x148] sm:$0xff]
    %v115 = vld [vmem:[#allocation2 + $0x150] sm:$0xff]
    %v116 = vld [vmem:[#allocation2 + $0x158] sm:$0xff]
    %v117 = vld [vmem:[#allocation2 + $0x160] sm:$0xff]
    %v118 = vld [vmem:[#allocation2 + $0x168] sm:$0xff]
    %v119 = vld [vmem:[#allocation2 + $0x170] sm:$0xff]
    %v120 = vld [vmem:[#allocation2 + $0x178] sm:$0xff]
    %v121 = vld [vmem:[#allocation2 + $0x180] sm:$0xff]
    %v122 = vld [vmem:[#allocation2 + $0x188] sm:$0xff]
    %v123 = vld [vmem:[#allocation2 + $0x190] sm:$0xff]
    %v124 = vld [vmem:[#allocation2 + $0x198] sm:$0xff]
    %v125 = vld [vmem:[#allocation2 + $0x1a0] sm:$0xff]
    %v126 = vld [vmem:[#allocation2 + $0x1a8] sm:$0xff]
    %v127 = vld [vmem:[#allocation2 + $0x1b0] sm:$0xff]
    %v128 = vld [vmem:[#allocation2 + $0x1b8] sm:$0xff]
    %v129 = vld [vmem:[#allocation2 + $0x1c0] sm:$0xff]
    %v130 = vld [vmem:[#allocation2 + $0x1c8] sm:$0xff]
    %v131 = vld [vmem:[#allocation2 + $0x1d0] sm:$0xff]
    %v132 = vld [vmem:[#allocation2 + $0x1d8] sm:$0xff]
    %v133 = vld [vmem:[#allocation2 + $0x1e0] sm:$0xff]
    %v134 = vld [vmem:[#allocation2 + $0x1e8] sm:$0xff]
    %v135 = vld [vmem:[#allocation2 + $0x1f0] sm:$0xff]
    %v136 = vld [vmem:[#allocation2 + $0x1f8] sm:$0xff]
    %v137 = vld [vmem:[#allocation2 + $0x200] sm:$0xff]
    %v138 = vld [vmem:[#allocation2 + $0x208] sm:$0xff]
    %v139 = vld [vmem:[#allocation2 + $0x210] sm:$0xff]
    %v140 = vld [vmem:[#allocation2 + $0x218] sm:$0xff]
    %v141 = vld [vmem:[#allocation2 + $0x220] sm:$0xff]
    %v142 = vld [vmem:[#allocation2 + $0x228] sm:$0xff]
    %v143 = vld [vmem:[#allocation2 + $0x230] sm:$0xff]
    %v144 = vld [vmem:[#allocation2 + $0x238] sm:$0xff]
    %v145 = vld [vmem:[#allocation2 + $0x240] sm:$0xff]
    %v146 = vld [vmem:[#allocation2 + $0x248] sm:$0xff]
    %v147 = vld [vmem:[#allocation2 + $0x250] sm:$0xff]
    %v148 = vld [vmem:[#allocation2 + $0x258] sm:$0xff]
    %v149 = vld [vmem:[#allocation2 + $0x260] sm:$0xff]
    %v150 = vld [vmem:[#allocation2 + $0x268] sm:$0xff]
    %v151 = vld [vmem:[#allocation2 + $0x270] sm:$0xff]
    %v152 = vld [vmem:[#allocation2 + $0x278] sm:$0xff]
    %v153 = vld [vmem:[#allocation2 + $0x280] sm:$0xff]
    %v154 = vld [vmem:[#allocation2 + $0x288] sm:$0xff]
    %v155 = vld [vmem:[#allocation2 + $0x290] sm:$0xff]
    %v156 = vld [vmem:[#allocation2 + $0x298] sm:$0xff]
    %v157 = vld [vmem:[#allocation2 + $0x2a0] sm:$0xff]
    %v158 = vld [vmem:[#allocation2 + $0x2a8] sm:$0xff]
    %v159 = vld [vmem:[#allocation2 + $0x2b0] sm:$0xff]
    %v160 = vld [vmem:[#allocation2 + $0x2b8] sm:$0xff]
    %v161 = vld [vmem:[#allocation2 + $0x2c0] sm:$0xff]
    %v162 = vld [vmem:[#allocation2 + $0x2c8] sm:$0xff]
    %v163 = vld [vmem:[#allocation2 + $0x2d0] sm:$0xff]
    %v164 = vld [vmem:[#allocation2 + $0x2d8] sm:$0xff]
    %v165 = vld [vmem:[#allocation2 + $0x2e0] sm:$0xff]
    %v166 = vld [vmem:[#allocation2 + $0x2e8] sm:$0xff]
    %v167 = vld [vmem:[#allocation2 + $0x2f0] sm:$0xff]
    %v168 = vld [vmem:[#allocation2 + $0x2f8] sm:$0xff]
    %v169 = vld [vmem:[#allocation2 + $0x300] sm:$0xff]
    %v170 = vld [vmem:[#allocation2 + $0x308] sm:$0xff]
    %v171 = vld [vmem:[#allocation2 + $0x310] sm:$0xff]
    %v172 = vld [vmem:[#allocation2 + $0x318] sm:$0xff]
    %v173 = vld [vmem:[#allocation2 + $0x320] sm:$0xff]
    %v174 = vld [vmem:[#allocation2 + $0x328] sm:$0xff]
    %v175 = vld [vmem:[#allocation2 + $0x330] sm:$0xff]
    %v176 = vld [vmem:[#allocation2 + $0x338] sm:$0xff]
    %v177 = vld [vmem:[#allocation2 + $0x340] sm:$0xff]
    %v178 = vld [vmem:[#allocation2 + $0x348] sm:$0xff]
    %v179 = vld [vmem:[#allocation2 + $0x350] sm:$0xff]
    %v180 = vld [vmem:[#allocation2 + $0x358] sm:$0xff]
    %v181 = vld [vmem:[#allocation2 + $0x360] sm:$0xff]
    %v182 = vld [vmem:[#allocation2 + $0x368] sm:$0xff]
    %v183 = vld [vmem:[#allocation2 + $0x370] sm:$0xff]
    %v184 = vld [vmem:[#allocation2 + $0x378] sm:$0xff]
    %v185 = vld [vmem:[#allocation2 + $0x380] sm:$0xff]
    %v186 = vld [vmem:[#allocation2 + $0x388] sm:$0xff]
    %v187 = vld [vmem:[#allocation2 + $0x390] sm:$0xff]
    %v188 = vld [vmem:[#allocation2 + $0x398] sm:$0xff]
    %v189 = vld [vmem:[#allocation2 + $0x3a0] sm:$0xff]
    %v190 = vld [vmem:[#allocation2 + $0x3a8] sm:$0xff]
    %v191 = vld [vmem:[#allocation2 + $0x3b0] sm:$0xff]
    %v192 = vld [vmem:[#allocation2 + $0x3b8] sm:$0xff]
    %v193 = vld [vmem:[#allocation2 + $0x3c0] sm:$0xff]
    %v194 = vld [vmem:[#allocation2 + $0x3c8] sm:$0xff]
    %v195 = vld [vmem:[#allocation2 + $0x3d0] sm:$0xff]
    %v196 = vld [vmem:[#allocation2 + $0x3d8] sm:$0xff]
    %v197 = vld [vmem:[#allocation2 + $0x3e0] sm:$0xff]
    %v198 = vld [vmem:[#allocation2 + $0x3e8] sm:$0xff]
    %v199 = vld [vmem:[#allocation2 + $0x3f0] sm:$0xff]
    %v200 = vld [vmem:[#allocation2 + $0x3f8] sm:$0xff]
    %v201 = vld [vmem:[#allocation2 + $0x400] sm:$0xff]
    %v202 = vld [vmem:[#allocation2 + $0x408] sm:$0xff]
    %v203 = vld [vmem:[#allocation2 + $0x410] sm:$0xff]
    %v204 = vld [vmem:[#allocation2 + $0x418] sm:$0xff]
    %v205 = vld [vmem:[#allocation2 + $0x420] sm:$0xff]
    %v206 = vld [vmem:[#allocation2 + $0x428] sm:$0xff]
    %v207 = vld [vmem:[#allocation2 + $0x430] sm:$0xff]
    %v208 = vld [vmem:[#allocation2 + $0x438] sm:$0xff]
    %v209 = vld [vmem:[#allocation2 + $0x440] sm:$0xff]
    %v210 = vld [vmem:[#allocation2 + $0x448] sm:$0xff]
    %v211 = vld [vmem:[#allocation2 + $0x450] sm:$0xff]
    %v212 = vld [vmem:[#allocation2 + $0x458] sm:$0xff]
    %v213 = vld [vmem:[#allocation2 + $0x460] sm:$0xff]
    %v214 = vld [vmem:[#allocation2 + $0x468] sm:$0xff]
    %v215 = vld [vmem:[#allocation2 + $0x470] sm:$0xff]
    %v216 = vld [vmem:[#allocation2 + $0x478] sm:$0xff]
    %v217 = vld [vmem:[#allocation2 + $0x480] sm:$0xff]
    %v218 = vld [vmem:[#allocation2 + $0x488] sm:$0xff]
    %v219 = vld [vmem:[#allocation2 + $0x490] sm:$0xff]
    %v220 = vld [vmem:[#allocation2 + $0x498] sm:$0xff]
    %v221 = vld [vmem:[#allocation2 + $0x4a0] sm:$0xff]
    %v222 = vld [vmem:[#allocation2 + $0x4a8] sm:$0xff]
    %v223 = vld [vmem:[#allocation2 + $0x4b0] sm:$0xff]
    %v224 = vld [vmem:[#allocation2 + $0x4b8] sm:$0xff]
    %v225 = vld [vmem:[#allocation2 + $0x4c0] sm:$0xff]
    %v226 = vld [vmem:[#allocation2 + $0x4c8] sm:$0xff]
    %v227 = vld [vmem:[#allocation2 + $0x4d0] sm:$0xff]
    %v228 = vld [vmem:[#allocation2 + $0x4d8] sm:$0xff]
    %v229 = vld [vmem:[#allocation2 + $0x4e0] sm:$0xff]
    %v230 = vld [vmem:[#allocation2 + $0x4e8] sm:$0xff]
    %v231 = vld [vmem:[#allocation2 + $0x4f0] sm:$0xff]
    %v232 = vld [vmem:[#allocation2 + $0x4f8] sm:$0xff]
    %v233 = vld [vmem:[#allocation2 + $0x500] sm:$0xff]
    %v234 = vld [vmem:[#allocation2 + $0x508] sm:$0xff]
    %v235 = vld [vmem:[#allocation2 + $0x510] sm:$0xff]
    %v236 = vld [vmem:[#allocation2 + $0x518] sm:$0xff]
    %v237 = vld [vmem:[#allocation2 + $0x520] sm:$0xff]
    %v238 = vld [vmem:[#allocation2 + $0x528] sm:$0xff]
    %v239 = vld [vmem:[#allocation2 + $0x530] sm:$0xff]
    %v240 = vld [vmem:[#allocation2 + $0x538] sm:$0xff]
    %v241 = vld [vmem:[#allocation2 + $0x540] sm:$0xff]
    %v242 = vld [vmem:[#allocation2 + $0x548] sm:$0xff]
    %v243 = vld [vmem:[#allocation2 + $0x550] sm:$0xff]
    %v244 = vld [vmem:[#allocation2 + $0x558] sm:$0xff]
    %v245 = vld [vmem:[#allocation2 + $0x560] sm:$0xff]
    %v246 = vld [vmem:[#allocation2 + $0x568] sm:$0xff]
    %v247 = vld [vmem:[#allocation2 + $0x570] sm:$0xff]
    %v248 = vld [vmem:[#allocation2 + $0x578] sm:$0xff]
    %v249 = vld [vmem:[#allocation2 + $0x580] sm:$0xff]
    %v250 = vld [vmem:[#allocation2 + $0x588] sm:$0xff]
    %v251 = vld [vmem:[#allocation2 + $0x590] sm:$0xff]
    %v252 = vld [vmem:[#allocation2 + $0x598] sm:$0xff]
    %v253 = vld [vmem:[#allocation2 + $0x5a0] sm:$0xff]
    %v254 = vld [vmem:[#allocation2 + $0x5a8] sm:$0xff]
    %v255 = vld [vmem:[#allocation2 + $0x5b0] sm:$0xff]
    %v256 = vld [vmem:[#allocation2 + $0x5b8] sm:$0xff]
    %v257 = vld [vmem:[#allocation2 + $0x5c0] sm:$0xff]
    %v258 = vld [vmem:[#allocation2 + $0x5c8] sm:$0xff]
    %v259 = vld [vmem:[#allocation2 + $0x5d0] sm:$0xff]
    %v260 = vld [vmem:[#allocation2 + $0x5d8] sm:$0xff]
    %v261 = vld [vmem:[#allocation2 + $0x5e0] sm:$0xff]
    %v262 = vld [vmem:[#allocation2 + $0x5e8] sm:$0xff]
    %v263 = vld [vmem:[#allocation2 + $0x5f0] sm:$0xff]
    %v264 = vld [vmem:[#allocation2 + $0x5f8] sm:$0xff]
    %v265 = vld [vmem:[#allocation2 + $0x600] sm:$0xff]
    %v266 = vld [vmem:[#allocation2 + $0x608] sm:$0xff]
    %v267 = vld [vmem:[#allocation2 + $0x610] sm:$0xff]
    %v268 = vld [vmem:[#allocation2 + $0x618] sm:$0xff]
    %v269 = vld [vmem:[#allocation2 + $0x620] sm:$0xff]
    %v270 = vld [vmem:[#allocation2 + $0x628] sm:$0xff]
    %v271 = vld [vmem:[#allocation2 + $0x630] sm:$0xff]
    %v272 = vld [vmem:[#allocation2 + $0x638] sm:$0xff]
    %v273 = vld [vmem:[#allocation2 + $0x640] sm:$0xff]
    %v274 = vld [vmem:[#allocation2 + $0x648] sm:$0xff]
    %v275 = vld [vmem:[#allocation2 + $0x650] sm:$0xff]
    %v276 = vld [vmem:[#allocation2 + $0x658] sm:$0xff]
    %v277 = vld [vmem:[#allocation2 + $0x660] sm:$0xff]
    %v278 = vld [vmem:[#allocation2 + $0x668] sm:$0xff]
    %v279 = vld [vmem:[#allocation2 + $0x670] sm:$0xff]
    %v280 = vld [vmem:[#allocation2 + $0x678] sm:$0xff]
    %v281 = vld [vmem:[#allocation2 + $0x680] sm:$0xff]
    %v282 = vld [vmem:[#allocation2 + $0x688] sm:$0xff]
    %v283 = vld [vmem:[#allocation2 + $0x690] sm:$0xff]
    %v284 = vld [vmem:[#allocation2 + $0x698] sm:$0xff]
    %v285 = vld [vmem:[#allocation2 + $0x6a0] sm:$0xff]
    %v286 = vld [vmem:[#allocation2 + $0x6a8] sm:$0xff]
    %v287 = vld [vmem:[#allocation2 + $0x6b0] sm:$0xff]
    %v288 = vld [vmem:[#allocation2 + $0x6b8] sm:$0xff]
    %v289 = vld [vmem:[#allocation2 + $0x6c0] sm:$0xff]
    %v290 = vld [vmem:[#allocation2 + $0x6c8] sm:$0xff]
    %v291 = vld [vmem:[#allocation2 + $0x6d0] sm:$0xff]
    %v292 = vld [vmem:[#allocation2 + $0x6d8] sm:$0xff]
    %v293 = vld [vmem:[#allocation2 + $0x6e0] sm:$0xff]
    %v294 = vld [vmem:[#allocation2 + $0x6e8] sm:$0xff]
    %v295 = vld [vmem:[#allocation2 + $0x6f0] sm:$0xff]
    %v296 = vld [vmem:[#allocation2 + $0x6f8] sm:$0xff]
    %v297 = vld [vmem:[#allocation2 + $0x700] sm:$0xff]
    %v298 = vld [vmem:[#allocation2 + $0x708] sm:$0xff]
    %v299 = vld [vmem:[#allocation2 + $0x710] sm:$0xff]
    %v300 = vld [vmem:[#allocation2 + $0x718] sm:$0xff]
    %v301 = vld [vmem:[#allocation2 + $0x720] sm:$0xff]
    %v302 = vld [vmem:[#allocation2 + $0x728] sm:$0xff]
    %v303 = vld [vmem:[#allocation2 + $0x730] sm:$0xff]
    %v304 = vld [vmem:[#allocation2 + $0x738] sm:$0xff]
    %v305 = vld [vmem:[#allocation2 + $0x740] sm:$0xff]
    %v306 = vld [vmem:[#allocation2 + $0x748] sm:$0xff]
    %v307 = vld [vmem:[#allocation2 + $0x750] sm:$0xff]
    %v308 = vld [vmem:[#allocation2 + $0x758] sm:$0xff]
    %v309 = vld [vmem:[#allocation2 + $0x760] sm:$0xff]
    %v310 = vld [vmem:[#allocation2 + $0x768] sm:$0xff]
    %v311 = vld [vmem:[#allocation2 + $0x770] sm:$0xff]
    %v312 = vld [vmem:[#allocation2 + $0x778] sm:$0xff]
    %v313 = vld [vmem:[#allocation2 + $0x780] sm:$0xff]
    %v314 = vld [vmem:[#allocation2 + $0x788] sm:$0xff]
    %v315 = vld [vmem:[#allocation2 + $0x790] sm:$0xff]
    %v316 = vld [vmem:[#allocation2 + $0x798] sm:$0xff]
    %v317 = vld [vmem:[#allocation2 + $0x7a0] sm:$0xff]
    %v318 = vld [vmem:[#allocation2 + $0x7a8] sm:$0xff]
    %v319 = vld [vmem:[#allocation2 + $0x7b0] sm:$0xff]
    %v320 = vld [vmem:[#allocation2 + $0x7b8] sm:$0xff]
    %v321 = vld [vmem:[#allocation2 + $0x7c0] sm:$0xff]
    %v322 = vld [vmem:[#allocation2 + $0x7c8] sm:$0xff]
    %v323 = vld [vmem:[#allocation2 + $0x7d0] sm:$0xff]
    %v324 = vld [vmem:[#allocation2 + $0x7d8] sm:$0xff]
    %v325 = vld [vmem:[#allocation2 + $0x7e0] sm:$0xff]
    %v326 = vld [vmem:[#allocation2 + $0x7e8] sm:$0xff]
    %v327 = vld [vmem:[#allocation2 + $0x7f0] sm:$0xff]
    %v328 = vld [vmem:[#allocation2 + $0x7f8] sm:$0xff]
    %v329 = vld [vmem:[%s2] sm:$0xff]
    %v330 = vld [vmem:[%s2 + $0x8] sm:$0xff]
    %v333 = vperm.slane %v329, 0
    %v334 = vperm.slane %v329, 1
    %v335 = vperm.slane %v329, 2
    %v336 = vperm.slane %v329, 3
    %v337 = vperm.slane %v329, 4
    %v338 = vperm.slane %v329, 5
    %v339 = vperm.slane %v329, 6
    %v340 = vperm.slane %v329, 7
    %v341 = vperm.slane %v330, 0
    %v342 = vperm.slane %v330, 1
    %v343 = vperm.slane %v330, 2
    %v344 = vperm.slane %v330, 3
    %v345 = vperm.slane %v330, 4
    %v346 = vperm.slane %v330, 5
    %v347 = vperm.slane %v330, 6
    %v348 = vperm.slane %v330, 7
    %v369 = vunpack.c.l.b16 %v69
    %v370 = vunpack.c.h.b16 %v69
    %v371 = vunpack.c.l.b16 %v70
    %v372 = vunpack.c.h.b16 %v70
    %v373 = vunpack.c.l.b16 %v71
    %v374 = vunpack.c.h.b16 %v71
    %v375 = vunpack.c.l.b16 %v72
    %v376 = vunpack.c.h.b16 %v72
    %v377 = vpack.c.b16 %v371, %v369
    %v378 = vpack.c.b16 %v372, %v370
    %v379 = vpack.c.b16 %v375, %v373
    %v380 = vpack.c.b16 %v376, %v374
    %v641 = vunpack.c.l.b16 %v73
    %v642 = vunpack.c.h.b16 %v73
    %v643 = vunpack.c.l.b16 %v74
    %v644 = vunpack.c.h.b16 %v74
    %v645 = vunpack.c.l.b16 %v75
    %v646 = vunpack.c.h.b16 %v75
    %v647 = vunpack.c.l.b16 %v76
    %v648 = vunpack.c.h.b16 %v76
    %v649 = vunpack.c.l.b16 %v77
    %v650 = vunpack.c.h.b16 %v77
    %v651 = vunpack.c.l.b16 %v78
    %v652 = vunpack.c.h.b16 %v78
    %v653 = vunpack.c.l.b16 %v79
    %v654 = vunpack.c.h.b16 %v79
    %v655 = vunpack.c.l.b16 %v80
    %v656 = vunpack.c.h.b16 %v80
    %v657 = vunpack.c.l.b16 %v81
    %v658 = vunpack.c.h.b16 %v81
    %v659 = vunpack.c.l.b16 %v82
    %v660 = vunpack.c.h.b16 %v82
    %v661 = vunpack.c.l.b16 %v83
    %v662 = vunpack.c.h.b16 %v83
    %v663 = vunpack.c.l.b16 %v84
    %v664 = vunpack.c.h.b16 %v84
    %v665 = vunpack.c.l.b16 %v85
    %v666 = vunpack.c.h.b16 %v85
    %v667 = vunpack.c.l.b16 %v86
    %v668 = vunpack.c.h.b16 %v86
    %v669 = vunpack.c.l.b16 %v87
    %v670 = vunpack.c.h.b16 %v87
    %v671 = vunpack.c.l.b16 %v88
    %v672 = vunpack.c.h.b16 %v88
    %v673 = vunpack.c.l.b16 %v89
    %v674 = vunpack.c.h.b16 %v89
    %v675 = vunpack.c.l.b16 %v90
    %v676 = vunpack.c.h.b16 %v90
    %v677 = vunpack.c.l.b16 %v91
    %v678 = vunpack.c.h.b16 %v91
    %v679 = vunpack.c.l.b16 %v92
    %v680 = vunpack.c.h.b16 %v92
    %v681 = vunpack.c.l.b16 %v93
    %v682 = vunpack.c.h.b16 %v93
    %v683 = vunpack.c.l.b16 %v94
    %v684 = vunpack.c.h.b16 %v94
    %v685 = vunpack.c.l.b16 %v95
    %v686 = vunpack.c.h.b16 %v95
    %v687 = vunpack.c.l.b16 %v96
    %v688 = vunpack.c.h.b16 %v96
    %v689 = vunpack.c.l.b16 %v97
    %v690 = vunpack.c.h.b16 %v97
    %v691 = vunpack.c.l.b16 %v98
    %v692 = vunpack.c.h.b16 %v98
    %v693 = vunpack.c.l.b16 %v99
    %v694 = vunpack.c.h.b16 %v99
    %v695 = vunpack.c.l.b16 %v100
    %v696 = vunpack.c.h.b16 %v100
    %v697 = vunpack.c.l.b16 %v101
    %v698 = vunpack.c.h.b16 %v101
    %v699 = vunpack.c.l.b16 %v102
    %v700 = vunpack.c.h.b16 %v102
    %v701 = vunpack.c.l.b16 %v103
    %v702 = vunpack.c.h.b16 %v103
    %v703 = vunpack.c.l.b16 %v104
    %v704 = vunpack.c.h.b16 %v104
    %v705 = vunpack.c.l.b16 %v105
    %v706 = vunpack.c.h.b16 %v105
    %v707 = vunpack.c.l.b16 %v106
    %v708 = vunpack.c.h.b16 %v106
    %v709 = vunpack.c.l.b16 %v107
    %v710 = vunpack.c.h.b16 %v107
    %v711 = vunpack.c.l.b16 %v108
    %v712 = vunpack.c.h.b16 %v108
    %v713 = vunpack.c.l.b16 %v109
    %v714 = vunpack.c.h.b16 %v109
    %v715 = vunpack.c.l.b16 %v110
    %v716 = vunpack.c.h.b16 %v110
    %v717 = vunpack.c.l.b16 %v111
    %v718 = vunpack.c.h.b16 %v111
    %v719 = vunpack.c.l.b16 %v112
    %v720 = vunpack.c.h.b16 %v112
    %v721 = vunpack.c.l.b16 %v113
    %v722 = vunpack.c.h.b16 %v113
    %v723 = vunpack.c.l.b16 %v114
    %v724 = vunpack.c.h.b16 %v114
    %v725 = vunpack.c.l.b16 %v115
    %v726 = vunpack.c.h.b16 %v115
    %v727 = vunpack.c.l.b16 %v116
    %v728 = vunpack.c.h.b16 %v116
    %v729 = vunpack.c.l.b16 %v117
    %v730 = vunpack.c.h.b16 %v117
    %v731 = vunpack.c.l.b16 %v118
    %v732 = vunpack.c.h.b16 %v118
    %v733 = vunpack.c.l.b16 %v119
    %v734 = vunpack.c.h.b16 %v119
    %v735 = vunpack.c.l.b16 %v120
    %v736 = vunpack.c.h.b16 %v120
    %v737 = vunpack.c.l.b16 %v121
    %v738 = vunpack.c.h.b16 %v121
    %v739 = vunpack.c.l.b16 %v122
    %v740 = vunpack.c.h.b16 %v122
    %v741 = vunpack.c.l.b16 %v123
    %v742 = vunpack.c.h.b16 %v123
    %v743 = vunpack.c.l.b16 %v124
    %v744 = vunpack.c.h.b16 %v124
    %v745 = vunpack.c.l.b16 %v125
    %v746 = vunpack.c.h.b16 %v125
    %v747 = vunpack.c.l.b16 %v126
    %v748 = vunpack.c.h.b16 %v126
    %v749 = vunpack.c.l.b16 %v127
    %v750 = vunpack.c.h.b16 %v127
    %v751 = vunpack.c.l.b16 %v128
    %v752 = vunpack.c.h.b16 %v128
    %v753 = vunpack.c.l.b16 %v129
    %v754 = vunpack.c.h.b16 %v129
    %v755 = vunpack.c.l.b16 %v130
    %v756 = vunpack.c.h.b16 %v130
    %v757 = vunpack.c.l.b16 %v131
    %v758 = vunpack.c.h.b16 %v131
    %v759 = vunpack.c.l.b16 %v132
    %v760 = vunpack.c.h.b16 %v132
    %v761 = vunpack.c.l.b16 %v133
    %v762 = vunpack.c.h.b16 %v133
    %v763 = vunpack.c.l.b16 %v134
    %v764 = vunpack.c.h.b16 %v134
    %v765 = vunpack.c.l.b16 %v135
    %v766 = vunpack.c.h.b16 %v135
    %v767 = vunpack.c.l.b16 %v136
    %v768 = vunpack.c.h.b16 %v136
    %v769 = vunpack.c.l.b16 %v137
    %v770 = vunpack.c.h.b16 %v137
    %v771 = vunpack.c.l.b16 %v138
    %v772 = vunpack.c.h.b16 %v138
    %v773 = vunpack.c.l.b16 %v139
    %v774 = vunpack.c.h.b16 %v139
    %v775 = vunpack.c.l.b16 %v140
    %v776 = vunpack.c.h.b16 %v140
    %v777 = vunpack.c.l.b16 %v141
    %v778 = vunpack.c.h.b16 %v141
    %v779 = vunpack.c.l.b16 %v142
    %v780 = vunpack.c.h.b16 %v142
    %v781 = vunpack.c.l.b16 %v143
    %v782 = vunpack.c.h.b16 %v143
    %v783 = vunpack.c.l.b16 %v144
    %v784 = vunpack.c.h.b16 %v144
    %v785 = vunpack.c.l.b16 %v145
    %v786 = vunpack.c.h.b16 %v145
    %v787 = vunpack.c.l.b16 %v146
    %v788 = vunpack.c.h.b16 %v146
    %v789 = vunpack.c.l.b16 %v147
    %v790 = vunpack.c.h.b16 %v147
    %v791 = vunpack.c.l.b16 %v148
    %v792 = vunpack.c.h.b16 %v148
    %v793 = vunpack.c.l.b16 %v149
    %v794 = vunpack.c.h.b16 %v149
    %v795 = vunpack.c.l.b16 %v150
    %v796 = vunpack.c.h.b16 %v150
    %v797 = vunpack.c.l.b16 %v151
    %v798 = vunpack.c.h.b16 %v151
    %v799 = vunpack.c.l.b16 %v152
    %v800 = vunpack.c.h.b16 %v152
    %v801 = vunpack.c.l.b16 %v153
    %v802 = vunpack.c.h.b16 %v153
    %v803 = vunpack.c.l.b16 %v154
    %v804 = vunpack.c.h.b16 %v154
    %v805 = vunpack.c.l.b16 %v155
    %v806 = vunpack.c.h.b16 %v155
    %v807 = vunpack.c.l.b16 %v156
    %v808 = vunpack.c.h.b16 %v156
    %v809 = vunpack.c.l.b16 %v157
    %v810 = vunpack.c.h.b16 %v157
    %v811 = vunpack.c.l.b16 %v158
    %v812 = vunpack.c.h.b16 %v158
    %v813 = vunpack.c.l.b16 %v159
    %v814 = vunpack.c.h.b16 %v159
    %v815 = vunpack.c.l.b16 %v160
    %v816 = vunpack.c.h.b16 %v160
    %v817 = vunpack.c.l.b16 %v161
    %v818 = vunpack.c.h.b16 %v161
    %v819 = vunpack.c.l.b16 %v162
    %v820 = vunpack.c.h.b16 %v162
    %v821 = vunpack.c.l.b16 %v163
    %v822 = vunpack.c.h.b16 %v163
    %v823 = vunpack.c.l.b16 %v164
    %v824 = vunpack.c.h.b16 %v164
    %v825 = vunpack.c.l.b16 %v165
    %v826 = vunpack.c.h.b16 %v165
    %v827 = vunpack.c.l.b16 %v166
    %v828 = vunpack.c.h.b16 %v166
    %v829 = vunpack.c.l.b16 %v167
    %v830 = vunpack.c.h.b16 %v167
    %v831 = vunpack.c.l.b16 %v168
    %v832 = vunpack.c.h.b16 %v168
    %v833 = vunpack.c.l.b16 %v169
    %v834 = vunpack.c.h.b16 %v169
    %v835 = vunpack.c.l.b16 %v170
    %v836 = vunpack.c.h.b16 %v170
    %v837 = vunpack.c.l.b16 %v171
    %v838 = vunpack.c.h.b16 %v171
    %v839 = vunpack.c.l.b16 %v172
    %v840 = vunpack.c.h.b16 %v172
    %v841 = vunpack.c.l.b16 %v173
    %v842 = vunpack.c.h.b16 %v173
    %v843 = vunpack.c.l.b16 %v174
    %v844 = vunpack.c.h.b16 %v174
    %v845 = vunpack.c.l.b16 %v175
    %v846 = vunpack.c.h.b16 %v175
    %v847 = vunpack.c.l.b16 %v176
    %v848 = vunpack.c.h.b16 %v176
    %v849 = vunpack.c.l.b16 %v177
    %v850 = vunpack.c.h.b16 %v177
    %v851 = vunpack.c.l.b16 %v178
    %v852 = vunpack.c.h.b16 %v178
    %v853 = vunpack.c.l.b16 %v179
    %v854 = vunpack.c.h.b16 %v179
    %v855 = vunpack.c.l.b16 %v180
    %v856 = vunpack.c.h.b16 %v180
    %v857 = vunpack.c.l.b16 %v181
    %v858 = vunpack.c.h.b16 %v181
    %v859 = vunpack.c.l.b16 %v182
    %v860 = vunpack.c.h.b16 %v182
    %v861 = vunpack.c.l.b16 %v183
    %v862 = vunpack.c.h.b16 %v183
    %v863 = vunpack.c.l.b16 %v184
    %v864 = vunpack.c.h.b16 %v184
    %v865 = vunpack.c.l.b16 %v185
    %v866 = vunpack.c.h.b16 %v185
    %v867 = vunpack.c.l.b16 %v186
    %v868 = vunpack.c.h.b16 %v186
    %v869 = vunpack.c.l.b16 %v187
    %v870 = vunpack.c.h.b16 %v187
    %v871 = vunpack.c.l.b16 %v188
    %v872 = vunpack.c.h.b16 %v188
    %v873 = vunpack.c.l.b16 %v189
    %v874 = vunpack.c.h.b16 %v189
    %v875 = vunpack.c.l.b16 %v190
    %v876 = vunpack.c.h.b16 %v190
    %v877 = vunpack.c.l.b16 %v191
    %v878 = vunpack.c.h.b16 %v191
    %v879 = vunpack.c.l.b16 %v192
    %v880 = vunpack.c.h.b16 %v192
    %v881 = vunpack.c.l.b16 %v193
    %v882 = vunpack.c.h.b16 %v193
    %v883 = vunpack.c.l.b16 %v194
    %v884 = vunpack.c.h.b16 %v194
    %v885 = vunpack.c.l.b16 %v195
    %v886 = vunpack.c.h.b16 %v195
    %v887 = vunpack.c.l.b16 %v196
    %v888 = vunpack.c.h.b16 %v196
    %v889 = vunpack.c.l.b16 %v197
    %v890 = vunpack.c.h.b16 %v197
    %v891 = vunpack.c.l.b16 %v198
    %v892 = vunpack.c.h.b16 %v198
    %v893 = vunpack.c.l.b16 %v199
    %v894 = vunpack.c.h.b16 %v199
    %v895 = vunpack.c.l.b16 %v200
    %v896 = vunpack.c.h.b16 %v200
    %v897 = vunpack.c.l.b16 %v201
    %v898 = vunpack.c.h.b16 %v201
    %v899 = vunpack.c.l.b16 %v202
    %v900 = vunpack.c.h.b16 %v202
    %v901 = vunpack.c.l.b16 %v203
    %v902 = vunpack.c.h.b16 %v203
    %v903 = vunpack.c.l.b16 %v204
    %v904 = vunpack.c.h.b16 %v204
    %v905 = vunpack.c.l.b16 %v205
    %v906 = vunpack.c.h.b16 %v205
    %v907 = vunpack.c.l.b16 %v206
    %v908 = vunpack.c.h.b16 %v206
    %v909 = vunpack.c.l.b16 %v207
    %v910 = vunpack.c.h.b16 %v207
    %v911 = vunpack.c.l.b16 %v208
    %v912 = vunpack.c.h.b16 %v208
    %v913 = vunpack.c.l.b16 %v209
    %v914 = vunpack.c.h.b16 %v209
    %v915 = vunpack.c.l.b16 %v210
    %v916 = vunpack.c.h.b16 %v210
    %v917 = vunpack.c.l.b16 %v211
    %v918 = vunpack.c.h.b16 %v211
    %v919 = vunpack.c.l.b16 %v212
    %v920 = vunpack.c.h.b16 %v212
    %v921 = vunpack.c.l.b16 %v213
    %v922 = vunpack.c.h.b16 %v213
    %v923 = vunpack.c.l.b16 %v214
    %v924 = vunpack.c.h.b16 %v214
    %v925 = vunpack.c.l.b16 %v215
    %v926 = vunpack.c.h.b16 %v215
    %v927 = vunpack.c.l.b16 %v216
    %v928 = vunpack.c.h.b16 %v216
    %v929 = vunpack.c.l.b16 %v217
    %v930 = vunpack.c.h.b16 %v217
    %v931 = vunpack.c.l.b16 %v218
    %v932 = vunpack.c.h.b16 %v218
    %v933 = vunpack.c.l.b16 %v219
    %v934 = vunpack.c.h.b16 %v219
    %v935 = vunpack.c.l.b16 %v220
    %v936 = vunpack.c.h.b16 %v220
    %v937 = vunpack.c.l.b16 %v221
    %v938 = vunpack.c.h.b16 %v221
    %v939 = vunpack.c.l.b16 %v222
    %v940 = vunpack.c.h.b16 %v222
    %v941 = vunpack.c.l.b16 %v223
    %v942 = vunpack.c.h.b16 %v223
    %v943 = vunpack.c.l.b16 %v224
    %v944 = vunpack.c.h.b16 %v224
    %v945 = vunpack.c.l.b16 %v225
    %v946 = vunpack.c.h.b16 %v225
    %v947 = vunpack.c.l.b16 %v226
    %v948 = vunpack.c.h.b16 %v226
    %v949 = vunpack.c.l.b16 %v227
    %v950 = vunpack.c.h.b16 %v227
    %v951 = vunpack.c.l.b16 %v228
    %v952 = vunpack.c.h.b16 %v228
    %v953 = vunpack.c.l.b16 %v229
    %v954 = vunpack.c.h.b16 %v229
    %v955 = vunpack.c.l.b16 %v230
    %v956 = vunpack.c.h.b16 %v230
    %v957 = vunpack.c.l.b16 %v231
    %v958 = vunpack.c.h.b16 %v231
    %v959 = vunpack.c.l.b16 %v232
    %v960 = vunpack.c.h.b16 %v232
    %v961 = vunpack.c.l.b16 %v233
    %v962 = vunpack.c.h.b16 %v233
    %v963 = vunpack.c.l.b16 %v234
    %v964 = vunpack.c.h.b16 %v234
    %v965 = vunpack.c.l.b16 %v235
    %v966 = vunpack.c.h.b16 %v235
    %v967 = vunpack.c.l.b16 %v236
    %v968 = vunpack.c.h.b16 %v236
    %v969 = vunpack.c.l.b16 %v237
    %v970 = vunpack.c.h.b16 %v237
    %v971 = vunpack.c.l.b16 %v238
    %v972 = vunpack.c.h.b16 %v238
    %v973 = vunpack.c.l.b16 %v239
    %v974 = vunpack.c.h.b16 %v239
    %v975 = vunpack.c.l.b16 %v240
    %v976 = vunpack.c.h.b16 %v240
    %v977 = vunpack.c.l.b16 %v241
    %v978 = vunpack.c.h.b16 %v241
    %v979 = vunpack.c.l.b16 %v242
    %v980 = vunpack.c.h.b16 %v242
    %v981 = vunpack.c.l.b16 %v243
    %v982 = vunpack.c.h.b16 %v243
    %v983 = vunpack.c.l.b16 %v244
    %v984 = vunpack.c.h.b16 %v244
    %v985 = vunpack.c.l.b16 %v245
    %v986 = vunpack.c.h.b16 %v245
    %v987 = vunpack.c.l.b16 %v246
    %v988 = vunpack.c.h.b16 %v246
    %v989 = vunpack.c.l.b16 %v247
    %v990 = vunpack.c.h.b16 %v247
    %v991 = vunpack.c.l.b16 %v248
    %v992 = vunpack.c.h.b16 %v248
    %v993 = vunpack.c.l.b16 %v249
    %v994 = vunpack.c.h.b16 %v249
    %v995 = vunpack.c.l.b16 %v250
    %v996 = vunpack.c.h.b16 %v250
    %v997 = vunpack.c.l.b16 %v251
    %v998 = vunpack.c.h.b16 %v251
    %v999 = vunpack.c.l.b16 %v252
    %v1000 = vunpack.c.h.b16 %v252
    %v1001 = vunpack.c.l.b16 %v253
    %v1002 = vunpack.c.h.b16 %v253
    %v1003 = vunpack.c.l.b16 %v254
    %v1004 = vunpack.c.h.b16 %v254
    %v1005 = vunpack.c.l.b16 %v255
    %v1006 = vunpack.c.h.b16 %v255
    %v1007 = vunpack.c.l.b16 %v256
    %v1008 = vunpack.c.h.b16 %v256
    %v1009 = vunpack.c.l.b16 %v257
    %v1010 = vunpack.c.h.b16 %v257
    %v1011 = vunpack.c.l.b16 %v258
    %v1012 = vunpack.c.h.b16 %v258
    %v1013 = vunpack.c.l.b16 %v259
    %v1014 = vunpack.c.h.b16 %v259
    %v1015 = vunpack.c.l.b16 %v260
    %v1016 = vunpack.c.h.b16 %v260
    %v1017 = vunpack.c.l.b16 %v261
    %v1018 = vunpack.c.h.b16 %v261
    %v1019 = vunpack.c.l.b16 %v262
    %v1020 = vunpack.c.h.b16 %v262
    %v1021 = vunpack.c.l.b16 %v263
    %v1022 = vunpack.c.h.b16 %v263
    %v1023 = vunpack.c.l.b16 %v264
    %v1024 = vunpack.c.h.b16 %v264
    %v1025 = vunpack.c.l.b16 %v265
    %v1026 = vunpack.c.h.b16 %v265
    %v1027 = vunpack.c.l.b16 %v266
    %v1028 = vunpack.c.h.b16 %v266
    %v1029 = vunpack.c.l.b16 %v267
    %v1030 = vunpack.c.h.b16 %v267
    %v1031 = vunpack.c.l.b16 %v268
    %v1032 = vunpack.c.h.b16 %v268
    %v1033 = vunpack.c.l.b16 %v269
    %v1034 = vunpack.c.h.b16 %v269
    %v1035 = vunpack.c.l.b16 %v270
    %v1036 = vunpack.c.h.b16 %v270
    %v1037 = vunpack.c.l.b16 %v271
    %v1038 = vunpack.c.h.b16 %v271
    %v1039 = vunpack.c.l.b16 %v272
    %v1040 = vunpack.c.h.b16 %v272
    %v1041 = vunpack.c.l.b16 %v273
    %v1042 = vunpack.c.h.b16 %v273
    %v1043 = vunpack.c.l.b16 %v274
    %v1044 = vunpack.c.h.b16 %v274
    %v1045 = vunpack.c.l.b16 %v275
    %v1046 = vunpack.c.h.b16 %v275
    %v1047 = vunpack.c.l.b16 %v276
    %v1048 = vunpack.c.h.b16 %v276
    %v1049 = vunpack.c.l.b16 %v277
    %v1050 = vunpack.c.h.b16 %v277
    %v1051 = vunpack.c.l.b16 %v278
    %v1052 = vunpack.c.h.b16 %v278
    %v1053 = vunpack.c.l.b16 %v279
    %v1054 = vunpack.c.h.b16 %v279
    %v1055 = vunpack.c.l.b16 %v280
    %v1056 = vunpack.c.h.b16 %v280
    %v1057 = vunpack.c.l.b16 %v281
    %v1058 = vunpack.c.h.b16 %v281
    %v1059 = vunpack.c.l.b16 %v282
    %v1060 = vunpack.c.h.b16 %v282
    %v1061 = vunpack.c.l.b16 %v283
    %v1062 = vunpack.c.h.b16 %v283
    %v1063 = vunpack.c.l.b16 %v284
    %v1064 = vunpack.c.h.b16 %v284
    %v1065 = vunpack.c.l.b16 %v285
    %v1066 = vunpack.c.h.b16 %v285
    %v1067 = vunpack.c.l.b16 %v286
    %v1068 = vunpack.c.h.b16 %v286
    %v1069 = vunpack.c.l.b16 %v287
    %v1070 = vunpack.c.h.b16 %v287
    %v1071 = vunpack.c.l.b16 %v288
    %v1072 = vunpack.c.h.b16 %v288
    %v1073 = vunpack.c.l.b16 %v289
    %v1074 = vunpack.c.h.b16 %v289
    %v1075 = vunpack.c.l.b16 %v290
    %v1076 = vunpack.c.h.b16 %v290
    %v1077 = vunpack.c.l.b16 %v291
    %v1078 = vunpack.c.h.b16 %v291
    %v1079 = vunpack.c.l.b16 %v292
    %v1080 = vunpack.c.h.b16 %v292
    %v1081 = vunpack.c.l.b16 %v293
    %v1082 = vunpack.c.h.b16 %v293
    %v1083 = vunpack.c.l.b16 %v294
    %v1084 = vunpack.c.h.b16 %v294
    %v1085 = vunpack.c.l.b16 %v295
    %v1086 = vunpack.c.h.b16 %v295
    %v1087 = vunpack.c.l.b16 %v296
    %v1088 = vunpack.c.h.b16 %v296
    %v1089 = vunpack.c.l.b16 %v297
    %v1090 = vunpack.c.h.b16 %v297
    %v1091 = vunpack.c.l.b16 %v298
    %v1092 = vunpack.c.h.b16 %v298
    %v1093 = vunpack.c.l.b16 %v299
    %v1094 = vunpack.c.h.b16 %v299
    %v1095 = vunpack.c.l.b16 %v300
    %v1096 = vunpack.c.h.b16 %v300
    %v1097 = vunpack.c.l.b16 %v301
    %v1098 = vunpack.c.h.b16 %v301
    %v1099 = vunpack.c.l.b16 %v302
    %v1100 = vunpack.c.h.b16 %v302
    %v1101 = vunpack.c.l.b16 %v303
    %v1102 = vunpack.c.h.b16 %v303
    %v1103 = vunpack.c.l.b16 %v304
    %v1104 = vunpack.c.h.b16 %v304
    %v1105 = vunpack.c.l.b16 %v305
    %v1106 = vunpack.c.h.b16 %v305
    %v1107 = vunpack.c.l.b16 %v306
    %v1108 = vunpack.c.h.b16 %v306
    %v1109 = vunpack.c.l.b16 %v307
    %v1110 = vunpack.c.h.b16 %v307
    %v1111 = vunpack.c.l.b16 %v308
    %v1112 = vunpack.c.h.b16 %v308
    %v1113 = vunpack.c.l.b16 %v309
    %v1114 = vunpack.c.h.b16 %v309
    %v1115 = vunpack.c.l.b16 %v310
    %v1116 = vunpack.c.h.b16 %v310
    %v1117 = vunpack.c.l.b16 %v311
    %v1118 = vunpack.c.h.b16 %v311
    %v1119 = vunpack.c.l.b16 %v312
    %v1120 = vunpack.c.h.b16 %v312
    %v1121 = vunpack.c.l.b16 %v313
    %v1122 = vunpack.c.h.b16 %v313
    %v1123 = vunpack.c.l.b16 %v314
    %v1124 = vunpack.c.h.b16 %v314
    %v1125 = vunpack.c.l.b16 %v315
    %v1126 = vunpack.c.h.b16 %v315
    %v1127 = vunpack.c.l.b16 %v316
    %v1128 = vunpack.c.h.b16 %v316
    %v1129 = vunpack.c.l.b16 %v317
    %v1130 = vunpack.c.h.b16 %v317
    %v1131 = vunpack.c.l.b16 %v318
    %v1132 = vunpack.c.h.b16 %v318
    %v1133 = vunpack.c.l.b16 %v319
    %v1134 = vunpack.c.h.b16 %v319
    %v1135 = vunpack.c.l.b16 %v320
    %v1136 = vunpack.c.h.b16 %v320
    %v1137 = vunpack.c.l.b16 %v321
    %v1138 = vunpack.c.h.b16 %v321
    %v1139 = vunpack.c.l.b16 %v322
    %v1140 = vunpack.c.h.b16 %v322
    %v1141 = vunpack.c.l.b16 %v323
    %v1142 = vunpack.c.h.b16 %v323
    %v1143 = vunpack.c.l.b16 %v324
    %v1144 = vunpack.c.h.b16 %v324
    %v1145 = vunpack.c.l.b16 %v325
    %v1146 = vunpack.c.h.b16 %v325
    %v1147 = vunpack.c.l.b16 %v326
    %v1148 = vunpack.c.h.b16 %v326
    %v1149 = vunpack.c.l.b16 %v327
    %v1150 = vunpack.c.h.b16 %v327
    %v1151 = vunpack.c.l.b16 %v328
    %v1152 = vunpack.c.h.b16 %v328
    %v1153 = vpack.c.b16 %v657, %v641
    %v1154 = vpack.c.b16 %v658, %v642
    %v1155 = vpack.c.b16 %v659, %v643
    %v1156 = vpack.c.b16 %v660, %v644
    %v1157 = vpack.c.b16 %v661, %v645
    %v1158 = vpack.c.b16 %v662, %v646
    %v1159 = vpack.c.b16 %v663, %v647
    %v1160 = vpack.c.b16 %v664, %v648
    %v1161 = vpack.c.b16 %v665, %v649
    %v1162 = vpack.c.b16 %v666, %v650
    %v1163 = vpack.c.b16 %v667, %v651
    %v1164 = vpack.c.b16 %v668, %v652
    %v1165 = vpack.c.b16 %v669, %v653
    %v1166 = vpack.c.b16 %v670, %v654
    %v1167 = vpack.c.b16 %v671, %v655
    %v1168 = vpack.c.b16 %v672, %v656
    %v1169 = vpack.c.b16 %v689, %v673
    %v1170 = vpack.c.b16 %v690, %v674
    %v1171 = vpack.c.b16 %v691, %v675
    %v1172 = vpack.c.b16 %v692, %v676
    %v1173 = vpack.c.b16 %v693, %v677
    %v1174 = vpack.c.b16 %v694, %v678
    %v1175 = vpack.c.b16 %v695, %v679
    %v1176 = vpack.c.b16 %v696, %v680
    %v1177 = vpack.c.b16 %v697, %v681
    %v1178 = vpack.c.b16 %v698, %v682
    %v1179 = vpack.c.b16 %v699, %v683
    %v1180 = vpack.c.b16 %v700, %v684
    %v1181 = vpack.c.b16 %v701, %v685
    %v1182 = vpack.c.b16 %v702, %v686
    %v1183 = vpack.c.b16 %v703, %v687
    %v1184 = vpack.c.b16 %v704, %v688
    %v1185 = vpack.c.b16 %v721, %v705
    %v1186 = vpack.c.b16 %v722, %v706
    %v1187 = vpack.c.b16 %v723, %v707
    %v1188 = vpack.c.b16 %v724, %v708
    %v1189 = vpack.c.b16 %v725, %v709
    %v1190 = vpack.c.b16 %v726, %v710
    %v1191 = vpack.c.b16 %v727, %v711
    %v1192 = vpack.c.b16 %v728, %v712
    %v1193 = vpack.c.b16 %v729, %v713
    %v1194 = vpack.c.b16 %v730, %v714
    %v1195 = vpack.c.b16 %v731, %v715
    %v1196 = vpack.c.b16 %v732, %v716
    %v1197 = vpack.c.b16 %v733, %v717
    %v1198 = vpack.c.b16 %v734, %v718
    %v1199 = vpack.c.b16 %v735, %v719
    %v1200 = vpack.c.b16 %v736, %v720
    %v1201 = vpack.c.b16 %v753, %v737
    %v1202 = vpack.c.b16 %v754, %v738
    %v1203 = vpack.c.b16 %v755, %v739
    %v1204 = vpack.c.b16 %v756, %v740
    %v1205 = vpack.c.b16 %v757, %v741
    %v1206 = vpack.c.b16 %v758, %v742
    %v1207 = vpack.c.b16 %v759, %v743
    %v1208 = vpack.c.b16 %v760, %v744
    %v1209 = vpack.c.b16 %v761, %v745
    %v1210 = vpack.c.b16 %v762, %v746
    %v1211 = vpack.c.b16 %v763, %v747
    %v1212 = vpack.c.b16 %v764, %v748
    %v1213 = vpack.c.b16 %v765, %v749
    %v1214 = vpack.c.b16 %v766, %v750
    %v1215 = vpack.c.b16 %v767, %v751
    %v1216 = vpack.c.b16 %v768, %v752
    %v1217 = vpack.c.b16 %v785, %v769
    %v1218 = vpack.c.b16 %v786, %v770
    %v1219 = vpack.c.b16 %v787, %v771
    %v1220 = vpack.c.b16 %v788, %v772
    %v1221 = vpack.c.b16 %v789, %v773
    %v1222 = vpack.c.b16 %v790, %v774
    %v1223 = vpack.c.b16 %v791, %v775
    %v1224 = vpack.c.b16 %v792, %v776
    %v1225 = vpack.c.b16 %v793, %v777
    %v1226 = vpack.c.b16 %v794, %v778
    %v1227 = vpack.c.b16 %v795, %v779
    %v1228 = vpack.c.b16 %v796, %v780
    %v1229 = vpack.c.b16 %v797, %v781
    %v1230 = vpack.c.b16 %v798, %v782
    %v1231 = vpack.c.b16 %v799, %v783
    %v1232 = vpack.c.b16 %v800, %v784
    %v1233 = vpack.c.b16 %v817, %v801
    %v1234 = vpack.c.b16 %v818, %v802
    %v1235 = vpack.c.b16 %v819, %v803
    %v1236 = vpack.c.b16 %v820, %v804
    %v1237 = vpack.c.b16 %v821, %v805
    %v1238 = vpack.c.b16 %v822, %v806
    %v1239 = vpack.c.b16 %v823, %v807
    %v1240 = vpack.c.b16 %v824, %v808
    %v1241 = vpack.c.b16 %v825, %v809
    %v1242 = vpack.c.b16 %v826, %v810
    %v1243 = vpack.c.b16 %v827, %v811
    %v1244 = vpack.c.b16 %v828, %v812
    %v1245 = vpack.c.b16 %v829, %v813
    %v1246 = vpack.c.b16 %v830, %v814
    %v1247 = vpack.c.b16 %v831, %v815
    %v1248 = vpack.c.b16 %v832, %v816
    %v1249 = vpack.c.b16 %v849, %v833
    %v1250 = vpack.c.b16 %v850, %v834
    %v1251 = vpack.c.b16 %v851, %v835
    %v1252 = vpack.c.b16 %v852, %v836
    %v1253 = vpack.c.b16 %v853, %v837
    %v1254 = vpack.c.b16 %v854, %v838
    %v1255 = vpack.c.b16 %v855, %v839
    %v1256 = vpack.c.b16 %v856, %v840
    %v1257 = vpack.c.b16 %v857, %v841
    %v1258 = vpack.c.b16 %v858, %v842
    %v1259 = vpack.c.b16 %v859, %v843
    %v1260 = vpack.c.b16 %v860, %v844
    %v1261 = vpack.c.b16 %v861, %v845
    %v1262 = vpack.c.b16 %v862, %v846
    %v1263 = vpack.c.b16 %v863, %v847
    %v1264 = vpack.c.b16 %v864, %v848
    %v1265 = vpack.c.b16 %v881, %v865
    %v1266 = vpack.c.b16 %v882, %v866
    %v1267 = vpack.c.b16 %v883, %v867
    %v1268 = vpack.c.b16 %v884, %v868
    %v1269 = vpack.c.b16 %v885, %v869
    %v1270 = vpack.c.b16 %v886, %v870
    %v1271 = vpack.c.b16 %v887, %v871
    %v1272 = vpack.c.b16 %v888, %v872
    %v1273 = vpack.c.b16 %v889, %v873
    %v1274 = vpack.c.b16 %v890, %v874
    %v1275 = vpack.c.b16 %v891, %v875
    %v1276 = vpack.c.b16 %v892, %v876
    %v1277 = vpack.c.b16 %v893, %v877
    %v1278 = vpack.c.b16 %v894, %v878
    %v1279 = vpack.c.b16 %v895, %v879
    %v1280 = vpack.c.b16 %v896, %v880
    %v1281 = vpack.c.b16 %v913, %v897
    %v1282 = vpack.c.b16 %v914, %v898
    %v1283 = vpack.c.b16 %v915, %v899
    %v1284 = vpack.c.b16 %v916, %v900
    %v1285 = vpack.c.b16 %v917, %v901
    %v1286 = vpack.c.b16 %v918, %v902
    %v1287 = vpack.c.b16 %v919, %v903
    %v1288 = vpack.c.b16 %v920, %v904
    %v1289 = vpack.c.b16 %v921, %v905
    %v1290 = vpack.c.b16 %v922, %v906
    %v1291 = vpack.c.b16 %v923, %v907
    %v1292 = vpack.c.b16 %v924, %v908
    %v1293 = vpack.c.b16 %v925, %v909
    %v1294 = vpack.c.b16 %v926, %v910
    %v1295 = vpack.c.b16 %v927, %v911
    %v1296 = vpack.c.b16 %v928, %v912
    %v1297 = vpack.c.b16 %v945, %v929
    %v1298 = vpack.c.b16 %v946, %v930
    %v1299 = vpack.c.b16 %v947, %v931
    %v1300 = vpack.c.b16 %v948, %v932
    %v1301 = vpack.c.b16 %v949, %v933
    %v1302 = vpack.c.b16 %v950, %v934
    %v1303 = vpack.c.b16 %v951, %v935
    %v1304 = vpack.c.b16 %v952, %v936
    %v1305 = vpack.c.b16 %v953, %v937
    %v1306 = vpack.c.b16 %v954, %v938
    %v1307 = vpack.c.b16 %v955, %v939
    %v1308 = vpack.c.b16 %v956, %v940
    %v1309 = vpack.c.b16 %v957, %v941
    %v1310 = vpack.c.b16 %v958, %v942
    %v1311 = vpack.c.b16 %v959, %v943
    %v1312 = vpack.c.b16 %v960, %v944
    %v1313 = vpack.c.b16 %v977, %v961
    %v1314 = vpack.c.b16 %v978, %v962
    %v1315 = vpack.c.b16 %v979, %v963
    %v1316 = vpack.c.b16 %v980, %v964
    %v1317 = vpack.c.b16 %v981, %v965
    %v1318 = vpack.c.b16 %v982, %v966
    %v1319 = vpack.c.b16 %v983, %v967
    %v1320 = vpack.c.b16 %v984, %v968
    %v1321 = vpack.c.b16 %v985, %v969
    %v1322 = vpack.c.b16 %v986, %v970
    %v1323 = vpack.c.b16 %v987, %v971
    %v1324 = vpack.c.b16 %v988, %v972
    %v1325 = vpack.c.b16 %v989, %v973
    %v1326 = vpack.c.b16 %v990, %v974
    %v1327 = vpack.c.b16 %v991, %v975
    %v1328 = vpack.c.b16 %v992, %v976
    %v1329 = vpack.c.b16 %v1009, %v993
    %v1330 = vpack.c.b16 %v1010, %v994
    %v1331 = vpack.c.b16 %v1011, %v995
    %v1332 = vpack.c.b16 %v1012, %v996
    %v1333 = vpack.c.b16 %v1013, %v997
    %v1334 = vpack.c.b16 %v1014, %v998
    %v1335 = vpack.c.b16 %v1015, %v999
    %v1336 = vpack.c.b16 %v1016, %v1000
    %v1337 = vpack.c.b16 %v1017, %v1001
    %v1338 = vpack.c.b16 %v1018, %v1002
    %v1339 = vpack.c.b16 %v1019, %v1003
    %v1340 = vpack.c.b16 %v1020, %v1004
    %v1341 = vpack.c.b16 %v1021, %v1005
    %v1342 = vpack.c.b16 %v1022, %v1006
    %v1343 = vpack.c.b16 %v1023, %v1007
    %v1344 = vpack.c.b16 %v1024, %v1008
    %v1345 = vpack.c.b16 %v1041, %v1025
    %v1346 = vpack.c.b16 %v1042, %v1026
    %v1347 = vpack.c.b16 %v1043, %v1027
    %v1348 = vpack.c.b16 %v1044, %v1028
    %v1349 = vpack.c.b16 %v1045, %v1029
    %v1350 = vpack.c.b16 %v1046, %v1030
    %v1351 = vpack.c.b16 %v1047, %v1031
    %v1352 = vpack.c.b16 %v1048, %v1032
    %v1353 = vpack.c.b16 %v1049, %v1033
    %v1354 = vpack.c.b16 %v1050, %v1034
    %v1355 = vpack.c.b16 %v1051, %v1035
    %v1356 = vpack.c.b16 %v1052, %v1036
    %v1357 = vpack.c.b16 %v1053, %v1037
    %v1358 = vpack.c.b16 %v1054, %v1038
    %v1359 = vpack.c.b16 %v1055, %v1039
    %v1360 = vpack.c.b16 %v1056, %v1040
    %v1361 = vpack.c.b16 %v1073, %v1057
    %v1362 = vpack.c.b16 %v1074, %v1058
    %v1363 = vpack.c.b16 %v1075, %v1059
    %v1364 = vpack.c.b16 %v1076, %v1060
    %v1365 = vpack.c.b16 %v1077, %v1061
    %v1366 = vpack.c.b16 %v1078, %v1062
    %v1367 = vpack.c.b16 %v1079, %v1063
    %v1368 = vpack.c.b16 %v1080, %v1064
    %v1369 = vpack.c.b16 %v1081, %v1065
    %v1370 = vpack.c.b16 %v1082, %v1066
    %v1371 = vpack.c.b16 %v1083, %v1067
    %v1372 = vpack.c.b16 %v1084, %v1068
    %v1373 = vpack.c.b16 %v1085, %v1069
    %v1374 = vpack.c.b16 %v1086, %v1070
    %v1375 = vpack.c.b16 %v1087, %v1071
    %v1376 = vpack.c.b16 %v1088, %v1072
    %v1377 = vpack.c.b16 %v1105, %v1089
    %v1378 = vpack.c.b16 %v1106, %v1090
    %v1379 = vpack.c.b16 %v1107, %v1091
    %v1380 = vpack.c.b16 %v1108, %v1092
    %v1381 = vpack.c.b16 %v1109, %v1093
    %v1382 = vpack.c.b16 %v1110, %v1094
    %v1383 = vpack.c.b16 %v1111, %v1095
    %v1384 = vpack.c.b16 %v1112, %v1096
    %v1385 = vpack.c.b16 %v1113, %v1097
    %v1386 = vpack.c.b16 %v1114, %v1098
    %v1387 = vpack.c.b16 %v1115, %v1099
    %v1388 = vpack.c.b16 %v1116, %v1100
    %v1389 = vpack.c.b16 %v1117, %v1101
    %v1390 = vpack.c.b16 %v1118, %v1102
    %v1391 = vpack.c.b16 %v1119, %v1103
    %v1392 = vpack.c.b16 %v1120, %v1104
    %v1393 = vpack.c.b16 %v1137, %v1121
    %v1394 = vpack.c.b16 %v1138, %v1122
    %v1395 = vpack.c.b16 %v1139, %v1123
    %v1396 = vpack.c.b16 %v1140, %v1124
    %v1397 = vpack.c.b16 %v1141, %v1125
    %v1398 = vpack.c.b16 %v1142, %v1126
    %v1399 = vpack.c.b16 %v1143, %v1127
    %v1400 = vpack.c.b16 %v1144, %v1128
    %v1401 = vpack.c.b16 %v1145, %v1129
    %v1402 = vpack.c.b16 %v1146, %v1130
    %v1403 = vpack.c.b16 %v1147, %v1131
    %v1404 = vpack.c.b16 %v1148, %v1132
    %v1405 = vpack.c.b16 %v1149, %v1133
    %v1406 = vpack.c.b16 %v1150, %v1134
    %v1407 = vpack.c.b16 %v1151, %v1135
    %v1408 = vpack.c.b16 %v1152, %v1136
    %1665 = vmatpush.bf16.msra.mxu0 %v1265
    %1666 = vmatpush.bf16.msra.mxu0 %v1249
    %1667 = vmatpush.bf16.msra.mxu0 %v1233
    %1668 = vmatpush.bf16.msra.mxu0 %v1217
    %1669 = vmatpush.bf16.msra.mxu0 %v1201
    %1670 = vmatpush.bf16.msra.mxu0 %v1185
    %1671 = vmatpush.bf16.msra.mxu0 %v1169
    %1672 = vmatpush.bf16.msra.mxu0 %v1153
    %1673 = vmatmul.bf16.gmra.mxu0 %v377
    %v1674 = vpop.f32.mrf.mxu0
    %v1675 = vadd.f32 %v333, %v1674
    %v1676 = vpop.f32.mrf.mxu0
    %v1677 = vadd.f32 %v333, %v1676
    %1678 = vmatmul.bf16.gmra.mxu0 %v379
    %v1679 = vpop.f32.mrf.mxu0
    %v1680 = vadd.f32 %v333, %v1679
    %v1681 = vpop.f32.mrf.mxu0
    %v1682 = vadd.f32 %v333, %v1681
    %1683 = vdwg.mxu0
    %1684 = vmatpush.bf16.msra.mxu0 %v1393
    %1685 = vmatpush.bf16.msra.mxu0 %v1377
    %1686 = vmatpush.bf16.msra.mxu0 %v1361
    %1687 = vmatpush.bf16.msra.mxu0 %v1345
    %1688 = vmatpush.bf16.msra.mxu0 %v1329
    %1689 = vmatpush.bf16.msra.mxu0 %v1313
    %1690 = vmatpush.bf16.msra.mxu0 %v1297
    %1691 = vmatpush.bf16.msra.mxu0 %v1281
    %1692 = vmatmul.bf16.gmra.mxu0 %v378
    %v1693 = vpop.f32.mrf.mxu0
    %v1694 = vadd.f32 %v1675, %v1693
    %v1695 = vpop.f32.mrf.mxu0
    %v1696 = vadd.f32 %v1677, %v1695
    %1697 = vmatmul.bf16.gmra.mxu0 %v380
    %v1698 = vpop.f32.mrf.mxu0
    %v1699 = vadd.f32 %v1680, %v1698
    %v1700 = vpop.f32.mrf.mxu0
    %v1701 = vadd.f32 %v1682, %v1700
    %1702 = vdwg.mxu0
    %1703 = vmatpush.bf16.msra.mxu0 %v1266
    %1704 = vmatpush.bf16.msra.mxu0 %v1250
    %1705 = vmatpush.bf16.msra.mxu0 %v1234
    %1706 = vmatpush.bf16.msra.mxu0 %v1218
    %1707 = vmatpush.bf16.msra.mxu0 %v1202
    %1708 = vmatpush.bf16.msra.mxu0 %v1186
    %1709 = vmatpush.bf16.msra.mxu0 %v1170
    %1710 = vmatpush.bf16.msra.mxu0 %v1154
    %1711 = vmatmul.bf16.gmra.mxu0 %v377
    %v1712 = vpop.f32.mrf.mxu0
    %v1713 = vadd.f32 %v334, %v1712
    %v1714 = vpop.f32.mrf.mxu0
    %v1715 = vadd.f32 %v334, %v1714
    %1716 = vmatmul.bf16.gmra.mxu0 %v379
    %v1717 = vpop.f32.mrf.mxu0
    %v1718 = vadd.f32 %v334, %v1717
    %v1719 = vpop.f32.mrf.mxu0
    %v1720 = vadd.f32 %v334, %v1719
    %1721 = vdwg.mxu0
    %1722 = vmatpush.bf16.msra.mxu0 %v1394
    %1723 = vmatpush.bf16.msra.mxu0 %v1378
    %1724 = vmatpush.bf16.msra.mxu0 %v1362
    %1725 = vmatpush.bf16.msra.mxu0 %v1346
    %1726 = vmatpush.bf16.msra.mxu0 %v1330
    %1727 = vmatpush.bf16.msra.mxu0 %v1314
    %1728 = vmatpush.bf16.msra.mxu0 %v1298
    %1729 = vmatpush.bf16.msra.mxu0 %v1282
    %1730 = vmatmul.bf16.gmra.mxu0 %v378
    %v1731 = vpop.f32.mrf.mxu0
    %v1732 = vadd.f32 %v1713, %v1731
    %v1733 = vpop.f32.mrf.mxu0
    %v1734 = vadd.f32 %v1715, %v1733
    %1735 = vmatmul.bf16.gmra.mxu0 %v380
    %v1736 = vpop.f32.mrf.mxu0
    %v1737 = vadd.f32 %v1718, %v1736
    %v1738 = vpop.f32.mrf.mxu0
    %v1739 = vadd.f32 %v1720, %v1738
    %1740 = vdwg.mxu0
    %1741 = vmatpush.bf16.msra.mxu0 %v1267
    %1742 = vmatpush.bf16.msra.mxu0 %v1251
    %1743 = vmatpush.bf16.msra.mxu0 %v1235
    %1744 = vmatpush.bf16.msra.mxu0 %v1219
    %1745 = vmatpush.bf16.msra.mxu0 %v1203
    %1746 = vmatpush.bf16.msra.mxu0 %v1187
    %1747 = vmatpush.bf16.msra.mxu0 %v1171
    %1748 = vmatpush.bf16.msra.mxu0 %v1155
    %1749 = vmatmul.bf16.gmra.mxu0 %v377
    %v1750 = vpop.f32.mrf.mxu0
    %v1751 = vadd.f32 %v335, %v1750
    %v1752 = vpop.f32.mrf.mxu0
    %v1753 = vadd.f32 %v335, %v1752
    %1754 = vmatmul.bf16.gmra.mxu0 %v379
    %v1755 = vpop.f32.mrf.mxu0
    %v1756 = vadd.f32 %v335, %v1755
    %v1757 = vpop.f32.mrf.mxu0
    %v1758 = vadd.f32 %v335, %v1757
    %1759 = vdwg.mxu0
    %1760 = vmatpush.bf16.msra.mxu0 %v1395
    %1761 = vmatpush.bf16.msra.mxu0 %v1379
    %1762 = vmatpush.bf16.msra.mxu0 %v1363
    %1763 = vmatpush.bf16.msra.mxu0 %v1347
    %1764 = vmatpush.bf16.msra.mxu0 %v1331
    %1765 = vmatpush.bf16.msra.mxu0 %v1315
    %1766 = vmatpush.bf16.msra.mxu0 %v1299
    %1767 = vmatpush.bf16.msra.mxu0 %v1283
    %1768 = vmatmul.bf16.gmra.mxu0 %v378
    %v1769 = vpop.f32.mrf.mxu0
    %v1770 = vadd.f32 %v1751, %v1769
    %v1771 = vpop.f32.mrf.mxu0
    %v1772 = vadd.f32 %v1753, %v1771
    %1773 = vmatmul.bf16.gmra.mxu0 %v380
    %v1774 = vpop.f32.mrf.mxu0
    %v1775 = vadd.f32 %v1756, %v1774
    %v1776 = vpop.f32.mrf.mxu0
    %v1777 = vadd.f32 %v1758, %v1776
    %1778 = vdwg.mxu0
    %1779 = vmatpush.bf16.msra.mxu0 %v1268
    %1780 = vmatpush.bf16.msra.mxu0 %v1252
    %1781 = vmatpush.bf16.msra.mxu0 %v1236
    %1782 = vmatpush.bf16.msra.mxu0 %v1220
    %1783 = vmatpush.bf16.msra.mxu0 %v1204
    %1784 = vmatpush.bf16.msra.mxu0 %v1188
    %1785 = vmatpush.bf16.msra.mxu0 %v1172
    %1786 = vmatpush.bf16.msra.mxu0 %v1156
    %1787 = vmatmul.bf16.gmra.mxu0 %v377
    %v1788 = vpop.f32.mrf.mxu0
    %v1789 = vadd.f32 %v336, %v1788
    %v1790 = vpop.f32.mrf.mxu0
    %v1791 = vadd.f32 %v336, %v1790
    %1792 = vmatmul.bf16.gmra.mxu0 %v379
    %v1793 = vpop.f32.mrf.mxu0
    %v1794 = vadd.f32 %v336, %v1793
    %v1795 = vpop.f32.mrf.mxu0
    %v1796 = vadd.f32 %v336, %v1795
    %1797 = vdwg.mxu0
    %1798 = vmatpush.bf16.msra.mxu0 %v1396
    %1799 = vmatpush.bf16.msra.mxu0 %v1380
    %1800 = vmatpush.bf16.msra.mxu0 %v1364
    %1801 = vmatpush.bf16.msra.mxu0 %v1348
    %1802 = vmatpush.bf16.msra.mxu0 %v1332
    %1803 = vmatpush.bf16.msra.mxu0 %v1316
    %1804 = vmatpush.bf16.msra.mxu0 %v1300
    %1805 = vmatpush.bf16.msra.mxu0 %v1284
    %1806 = vmatmul.bf16.gmra.mxu0 %v378
    %v1807 = vpop.f32.mrf.mxu0
    %v1808 = vadd.f32 %v1789, %v1807
    %v1809 = vpop.f32.mrf.mxu0
    %v1810 = vadd.f32 %v1791, %v1809
    %1811 = vmatmul.bf16.gmra.mxu0 %v380
    %v1812 = vpop.f32.mrf.mxu0
    %v1813 = vadd.f32 %v1794, %v1812
    %v1814 = vpop.f32.mrf.mxu0
    %v1815 = vadd.f32 %v1796, %v1814
    %1816 = vdwg.mxu0
    %1817 = vmatpush.bf16.msra.mxu0 %v1269
    %1818 = vmatpush.bf16.msra.mxu0 %v1253
    %1819 = vmatpush.bf16.msra.mxu0 %v1237
    %1820 = vmatpush.bf16.msra.mxu0 %v1221
    %1821 = vmatpush.bf16.msra.mxu0 %v1205
    %1822 = vmatpush.bf16.msra.mxu0 %v1189
    %1823 = vmatpush.bf16.msra.mxu0 %v1173
    %1824 = vmatpush.bf16.msra.mxu0 %v1157
    %1825 = vmatmul.bf16.gmra.mxu0 %v377
    %v1826 = vpop.f32.mrf.mxu0
    %v1827 = vadd.f32 %v337, %v1826
    %v1828 = vpop.f32.mrf.mxu0
    %v1829 = vadd.f32 %v337, %v1828
    %1830 = vmatmul.bf16.gmra.mxu0 %v379
    %v1831 = vpop.f32.mrf.mxu0
    %v1832 = vadd.f32 %v337, %v1831
    %v1833 = vpop.f32.mrf.mxu0
    %v1834 = vadd.f32 %v337, %v1833
    %1835 = vdwg.mxu0
    %1836 = vmatpush.bf16.msra.mxu0 %v1397
    %1837 = vmatpush.bf16.msra.mxu0 %v1381
    %1838 = vmatpush.bf16.msra.mxu0 %v1365
    %1839 = vmatpush.bf16.msra.mxu0 %v1349
    %1840 = vmatpush.bf16.msra.mxu0 %v1333
    %1841 = vmatpush.bf16.msra.mxu0 %v1317
    %1842 = vmatpush.bf16.msra.mxu0 %v1301
    %1843 = vmatpush.bf16.msra.mxu0 %v1285
    %1844 = vmatmul.bf16.gmra.mxu0 %v378
    %v1845 = vpop.f32.mrf.mxu0
    %v1846 = vadd.f32 %v1827, %v1845
    %v1847 = vpop.f32.mrf.mxu0
    %v1848 = vadd.f32 %v1829, %v1847
    %1849 = vmatmul.bf16.gmra.mxu0 %v380
    %v1850 = vpop.f32.mrf.mxu0
    %v1851 = vadd.f32 %v1832, %v1850
    %v1852 = vpop.f32.mrf.mxu0
    %v1853 = vadd.f32 %v1834, %v1852
    %1854 = vdwg.mxu0
    %1855 = vmatpush.bf16.msra.mxu0 %v1270
    %1856 = vmatpush.bf16.msra.mxu0 %v1254
    %1857 = vmatpush.bf16.msra.mxu0 %v1238
    %1858 = vmatpush.bf16.msra.mxu0 %v1222
    %1859 = vmatpush.bf16.msra.mxu0 %v1206
    %1860 = vmatpush.bf16.msra.mxu0 %v1190
    %1861 = vmatpush.bf16.msra.mxu0 %v1174
    %1862 = vmatpush.bf16.msra.mxu0 %v1158
    %1863 = vmatmul.bf16.gmra.mxu0 %v377
    %v1864 = vpop.f32.mrf.mxu0
    %v1865 = vadd.f32 %v338, %v1864
    %v1866 = vpop.f32.mrf.mxu0
    %v1867 = vadd.f32 %v338, %v1866
    %1868 = vmatmul.bf16.gmra.mxu0 %v379
    %v1869 = vpop.f32.mrf.mxu0
    %v1870 = vadd.f32 %v338, %v1869
    %v1871 = vpop.f32.mrf.mxu0
    %v1872 = vadd.f32 %v338, %v1871
    %1873 = vdwg.mxu0
    %1874 = vmatpush.bf16.msra.mxu0 %v1398
    %1875 = vmatpush.bf16.msra.mxu0 %v1382
    %1876 = vmatpush.bf16.msra.mxu0 %v1366
    %1877 = vmatpush.bf16.msra.mxu0 %v1350
    %1878 = vmatpush.bf16.msra.mxu0 %v1334
    %1879 = vmatpush.bf16.msra.mxu0 %v1318
    %1880 = vmatpush.bf16.msra.mxu0 %v1302
    %1881 = vmatpush.bf16.msra.mxu0 %v1286
    %1882 = vmatmul.bf16.gmra.mxu0 %v378
    %v1883 = vpop.f32.mrf.mxu0
    %v1884 = vadd.f32 %v1865, %v1883
    %v1885 = vpop.f32.mrf.mxu0
    %v1886 = vadd.f32 %v1867, %v1885
    %1887 = vmatmul.bf16.gmra.mxu0 %v380
    %v1888 = vpop.f32.mrf.mxu0
    %v1889 = vadd.f32 %v1870, %v1888
    %v1890 = vpop.f32.mrf.mxu0
    %v1891 = vadd.f32 %v1872, %v1890
    %1892 = vdwg.mxu0
    %1893 = vmatpush.bf16.msra.mxu0 %v1271
    %1894 = vmatpush.bf16.msra.mxu0 %v1255
    %1895 = vmatpush.bf16.msra.mxu0 %v1239
    %1896 = vmatpush.bf16.msra.mxu0 %v1223
    %1897 = vmatpush.bf16.msra.mxu0 %v1207
    %1898 = vmatpush.bf16.msra.mxu0 %v1191
    %1899 = vmatpush.bf16.msra.mxu0 %v1175
    %1900 = vmatpush.bf16.msra.mxu0 %v1159
    %1901 = vmatmul.bf16.gmra.mxu0 %v377
    %v1902 = vpop.f32.mrf.mxu0
    %v1903 = vadd.f32 %v339, %v1902
    %v1904 = vpop.f32.mrf.mxu0
    %v1905 = vadd.f32 %v339, %v1904
    %1906 = vmatmul.bf16.gmra.mxu0 %v379
    %v1907 = vpop.f32.mrf.mxu0
    %v1908 = vadd.f32 %v339, %v1907
    %v1909 = vpop.f32.mrf.mxu0
    %v1910 = vadd.f32 %v339, %v1909
    %1911 = vdwg.mxu0
    %1912 = vmatpush.bf16.msra.mxu0 %v1399
    %1913 = vmatpush.bf16.msra.mxu0 %v1383
    %1914 = vmatpush.bf16.msra.mxu0 %v1367
    %1915 = vmatpush.bf16.msra.mxu0 %v1351
    %1916 = vmatpush.bf16.msra.mxu0 %v1335
    %1917 = vmatpush.bf16.msra.mxu0 %v1319
    %1918 = vmatpush.bf16.msra.mxu0 %v1303
    %1919 = vmatpush.bf16.msra.mxu0 %v1287
    %1920 = vmatmul.bf16.gmra.mxu0 %v378
    %v1921 = vpop.f32.mrf.mxu0
    %v1922 = vadd.f32 %v1903, %v1921
    %v1923 = vpop.f32.mrf.mxu0
    %v1924 = vadd.f32 %v1905, %v1923
    %1925 = vmatmul.bf16.gmra.mxu0 %v380
    %v1926 = vpop.f32.mrf.mxu0
    %v1927 = vadd.f32 %v1908, %v1926
    %v1928 = vpop.f32.mrf.mxu0
    %v1929 = vadd.f32 %v1910, %v1928
    %1930 = vdwg.mxu0
    %1931 = vmatpush.bf16.msra.mxu0 %v1272
    %1932 = vmatpush.bf16.msra.mxu0 %v1256
    %1933 = vmatpush.bf16.msra.mxu0 %v1240
    %1934 = vmatpush.bf16.msra.mxu0 %v1224
    %1935 = vmatpush.bf16.msra.mxu0 %v1208
    %1936 = vmatpush.bf16.msra.mxu0 %v1192
    %1937 = vmatpush.bf16.msra.mxu0 %v1176
    %1938 = vmatpush.bf16.msra.mxu0 %v1160
    %1939 = vmatmul.bf16.gmra.mxu0 %v377
    %v1940 = vpop.f32.mrf.mxu0
    %v1941 = vadd.f32 %v340, %v1940
    %v1942 = vpop.f32.mrf.mxu0
    %v1943 = vadd.f32 %v340, %v1942
    %1944 = vmatmul.bf16.gmra.mxu0 %v379
    %v1945 = vpop.f32.mrf.mxu0
    %v1946 = vadd.f32 %v340, %v1945
    %v1947 = vpop.f32.mrf.mxu0
    %v1948 = vadd.f32 %v340, %v1947
    %1949 = vdwg.mxu0
    %1950 = vmatpush.bf16.msra.mxu0 %v1400
    %1951 = vmatpush.bf16.msra.mxu0 %v1384
    %1952 = vmatpush.bf16.msra.mxu0 %v1368
    %1953 = vmatpush.bf16.msra.mxu0 %v1352
    %1954 = vmatpush.bf16.msra.mxu0 %v1336
    %1955 = vmatpush.bf16.msra.mxu0 %v1320
    %1956 = vmatpush.bf16.msra.mxu0 %v1304
    %1957 = vmatpush.bf16.msra.mxu0 %v1288
    %1958 = vmatmul.bf16.gmra.mxu0 %v378
    %v1959 = vpop.f32.mrf.mxu0
    %v1960 = vadd.f32 %v1941, %v1959
    %v1961 = vpop.f32.mrf.mxu0
    %v1962 = vadd.f32 %v1943, %v1961
    %1963 = vmatmul.bf16.gmra.mxu0 %v380
    %v1964 = vpop.f32.mrf.mxu0
    %v1965 = vadd.f32 %v1946, %v1964
    %v1966 = vpop.f32.mrf.mxu0
    %v1967 = vadd.f32 %v1948, %v1966
    %1968 = vdwg.mxu0
    %1969 = vmatpush.bf16.msra.mxu0 %v1273
    %1970 = vmatpush.bf16.msra.mxu0 %v1257
    %1971 = vmatpush.bf16.msra.mxu0 %v1241
    %1972 = vmatpush.bf16.msra.mxu0 %v1225
    %1973 = vmatpush.bf16.msra.mxu0 %v1209
    %1974 = vmatpush.bf16.msra.mxu0 %v1193
    %1975 = vmatpush.bf16.msra.mxu0 %v1177
    %1976 = vmatpush.bf16.msra.mxu0 %v1161
    %1977 = vmatmul.bf16.gmra.mxu0 %v377
    %v1978 = vpop.f32.mrf.mxu0
    %v1979 = vadd.f32 %v341, %v1978
    %v1980 = vpop.f32.mrf.mxu0
    %v1981 = vadd.f32 %v341, %v1980
    %1982 = vmatmul.bf16.gmra.mxu0 %v379
    %v1983 = vpop.f32.mrf.mxu0
    %v1984 = vadd.f32 %v341, %v1983
    %v1985 = vpop.f32.mrf.mxu0
    %v1986 = vadd.f32 %v341, %v1985
    %1987 = vdwg.mxu0
    %1988 = vmatpush.bf16.msra.mxu0 %v1401
    %1989 = vmatpush.bf16.msra.mxu0 %v1385
    %1990 = vmatpush.bf16.msra.mxu0 %v1369
    %1991 = vmatpush.bf16.msra.mxu0 %v1353
    %1992 = vmatpush.bf16.msra.mxu0 %v1337
    %1993 = vmatpush.bf16.msra.mxu0 %v1321
    %1994 = vmatpush.bf16.msra.mxu0 %v1305
    %1995 = vmatpush.bf16.msra.mxu0 %v1289
    %1996 = vmatmul.bf16.gmra.mxu0 %v378
    %v1997 = vpop.f32.mrf.mxu0
    %v1998 = vadd.f32 %v1979, %v1997
    %v1999 = vpop.f32.mrf.mxu0
    %v2000 = vadd.f32 %v1981, %v1999
    %2001 = vmatmul.bf16.gmra.mxu0 %v380
    %v2002 = vpop.f32.mrf.mxu0
    %v2003 = vadd.f32 %v1984, %v2002
    %v2004 = vpop.f32.mrf.mxu0
    %v2005 = vadd.f32 %v1986, %v2004
    %2006 = vdwg.mxu0
    %2007 = vmatpush.bf16.msra.mxu0 %v1274
    %2008 = vmatpush.bf16.msra.mxu0 %v1258
    %2009 = vmatpush.bf16.msra.mxu0 %v1242
    %2010 = vmatpush.bf16.msra.mxu0 %v1226
    %2011 = vmatpush.bf16.msra.mxu0 %v1210
    %2012 = vmatpush.bf16.msra.mxu0 %v1194
    %2013 = vmatpush.bf16.msra.mxu0 %v1178
    %2014 = vmatpush.bf16.msra.mxu0 %v1162
    %2015 = vmatmul.bf16.gmra.mxu0 %v377
    %v2016 = vpop.f32.mrf.mxu0
    %v2017 = vadd.f32 %v342, %v2016
    %v2018 = vpop.f32.mrf.mxu0
    %v2019 = vadd.f32 %v342, %v2018
    %2020 = vmatmul.bf16.gmra.mxu0 %v379
    %v2021 = vpop.f32.mrf.mxu0
    %v2022 = vadd.f32 %v342, %v2021
    %v2023 = vpop.f32.mrf.mxu0
    %v2024 = vadd.f32 %v342, %v2023
    %2025 = vdwg.mxu0
    %2026 = vmatpush.bf16.msra.mxu0 %v1402
    %2027 = vmatpush.bf16.msra.mxu0 %v1386
    %2028 = vmatpush.bf16.msra.mxu0 %v1370
    %2029 = vmatpush.bf16.msra.mxu0 %v1354
    %2030 = vmatpush.bf16.msra.mxu0 %v1338
    %2031 = vmatpush.bf16.msra.mxu0 %v1322
    %2032 = vmatpush.bf16.msra.mxu0 %v1306
    %2033 = vmatpush.bf16.msra.mxu0 %v1290
    %2034 = vmatmul.bf16.gmra.mxu0 %v378
    %v2035 = vpop.f32.mrf.mxu0
    %v2036 = vadd.f32 %v2017, %v2035
    %v2037 = vpop.f32.mrf.mxu0
    %v2038 = vadd.f32 %v2019, %v2037
    %2039 = vmatmul.bf16.gmra.mxu0 %v380
    %v2040 = vpop.f32.mrf.mxu0
    %v2041 = vadd.f32 %v2022, %v2040
    %v2042 = vpop.f32.mrf.mxu0
    %v2043 = vadd.f32 %v2024, %v2042
    %2044 = vdwg.mxu0
    %2045 = vmatpush.bf16.msra.mxu0 %v1275
    %2046 = vmatpush.bf16.msra.mxu0 %v1259
    %2047 = vmatpush.bf16.msra.mxu0 %v1243
    %2048 = vmatpush.bf16.msra.mxu0 %v1227
    %2049 = vmatpush.bf16.msra.mxu0 %v1211
    %2050 = vmatpush.bf16.msra.mxu0 %v1195
    %2051 = vmatpush.bf16.msra.mxu0 %v1179
    %2052 = vmatpush.bf16.msra.mxu0 %v1163
    %2053 = vmatmul.bf16.gmra.mxu0 %v377
    %v2054 = vpop.f32.mrf.mxu0
    %v2055 = vadd.f32 %v343, %v2054
    %v2056 = vpop.f32.mrf.mxu0
    %v2057 = vadd.f32 %v343, %v2056
    %2058 = vmatmul.bf16.gmra.mxu0 %v379
    %v2059 = vpop.f32.mrf.mxu0
    %v2060 = vadd.f32 %v343, %v2059
    %v2061 = vpop.f32.mrf.mxu0
    %v2062 = vadd.f32 %v343, %v2061
    %2063 = vdwg.mxu0
    %2064 = vmatpush.bf16.msra.mxu0 %v1403
    %2065 = vmatpush.bf16.msra.mxu0 %v1387
    %2066 = vmatpush.bf16.msra.mxu0 %v1371
    %2067 = vmatpush.bf16.msra.mxu0 %v1355
    %2068 = vmatpush.bf16.msra.mxu0 %v1339
    %2069 = vmatpush.bf16.msra.mxu0 %v1323
    %2070 = vmatpush.bf16.msra.mxu0 %v1307
    %2071 = vmatpush.bf16.msra.mxu0 %v1291
    %2072 = vmatmul.bf16.gmra.mxu0 %v378
    %v2073 = vpop.f32.mrf.mxu0
    %v2074 = vadd.f32 %v2055, %v2073
    %v2075 = vpop.f32.mrf.mxu0
    %v2076 = vadd.f32 %v2057, %v2075
    %2077 = vmatmul.bf16.gmra.mxu0 %v380
    %v2078 = vpop.f32.mrf.mxu0
    %v2079 = vadd.f32 %v2060, %v2078
    %v2080 = vpop.f32.mrf.mxu0
    %v2081 = vadd.f32 %v2062, %v2080
    %2082 = vdwg.mxu0
    %2083 = vmatpush.bf16.msra.mxu0 %v1276
    %2084 = vmatpush.bf16.msra.mxu0 %v1260
    %2085 = vmatpush.bf16.msra.mxu0 %v1244
    %2086 = vmatpush.bf16.msra.mxu0 %v1228
    %2087 = vmatpush.bf16.msra.mxu0 %v1212
    %2088 = vmatpush.bf16.msra.mxu0 %v1196
    %2089 = vmatpush.bf16.msra.mxu0 %v1180
    %2090 = vmatpush.bf16.msra.mxu0 %v1164
    %2091 = vmatmul.bf16.gmra.mxu0 %v377
    %v2092 = vpop.f32.mrf.mxu0
    %v2093 = vadd.f32 %v344, %v2092
    %v2094 = vpop.f32.mrf.mxu0
    %v2095 = vadd.f32 %v344, %v2094
    %2096 = vmatmul.bf16.gmra.mxu0 %v379
    %v2097 = vpop.f32.mrf.mxu0
    %v2098 = vadd.f32 %v344, %v2097
    %v2099 = vpop.f32.mrf.mxu0
    %v2100 = vadd.f32 %v344, %v2099
    %2101 = vdwg.mxu0
    %2102 = vmatpush.bf16.msra.mxu0 %v1404
    %2103 = vmatpush.bf16.msra.mxu0 %v1388
    %2104 = vmatpush.bf16.msra.mxu0 %v1372
    %2105 = vmatpush.bf16.msra.mxu0 %v1356
    %2106 = vmatpush.bf16.msra.mxu0 %v1340
    %2107 = vmatpush.bf16.msra.mxu0 %v1324
    %2108 = vmatpush.bf16.msra.mxu0 %v1308
    %2109 = vmatpush.bf16.msra.mxu0 %v1292
    %2110 = vmatmul.bf16.gmra.mxu0 %v378
    %v2111 = vpop.f32.mrf.mxu0
    %v2112 = vadd.f32 %v2093, %v2111
    %v2113 = vpop.f32.mrf.mxu0
    %v2114 = vadd.f32 %v2095, %v2113
    %2115 = vmatmul.bf16.gmra.mxu0 %v380
    %v2116 = vpop.f32.mrf.mxu0
    %v2117 = vadd.f32 %v2098, %v2116
    %v2118 = vpop.f32.mrf.mxu0
    %v2119 = vadd.f32 %v2100, %v2118
    %2120 = vdwg.mxu0
    %2121 = vmatpush.bf16.msra.mxu0 %v1277
    %2122 = vmatpush.bf16.msra.mxu0 %v1261
    %2123 = vmatpush.bf16.msra.mxu0 %v1245
    %2124 = vmatpush.bf16.msra.mxu0 %v1229
    %2125 = vmatpush.bf16.msra.mxu0 %v1213
    %2126 = vmatpush.bf16.msra.mxu0 %v1197
    %2127 = vmatpush.bf16.msra.mxu0 %v1181
    %2128 = vmatpush.bf16.msra.mxu0 %v1165
    %2129 = vmatmul.bf16.gmra.mxu0 %v377
    %v2130 = vpop.f32.mrf.mxu0
    %v2131 = vadd.f32 %v345, %v2130
    %v2132 = vpop.f32.mrf.mxu0
    %v2133 = vadd.f32 %v345, %v2132
    %2134 = vmatmul.bf16.gmra.mxu0 %v379
    %v2135 = vpop.f32.mrf.mxu0
    %v2136 = vadd.f32 %v345, %v2135
    %v2137 = vpop.f32.mrf.mxu0
    %v2138 = vadd.f32 %v345, %v2137
    %2139 = vdwg.mxu0
    %2140 = vmatpush.bf16.msra.mxu0 %v1405
    %2141 = vmatpush.bf16.msra.mxu0 %v1389
    %2142 = vmatpush.bf16.msra.mxu0 %v1373
    %2143 = vmatpush.bf16.msra.mxu0 %v1357
    %2144 = vmatpush.bf16.msra.mxu0 %v1341
    %2145 = vmatpush.bf16.msra.mxu0 %v1325
    %2146 = vmatpush.bf16.msra.mxu0 %v1309
    %2147 = vmatpush.bf16.msra.mxu0 %v1293
    %2148 = vmatmul.bf16.gmra.mxu0 %v378
    %v2149 = vpop.f32.mrf.mxu0
    %v2150 = vadd.f32 %v2131, %v2149
    %v2151 = vpop.f32.mrf.mxu0
    %v2152 = vadd.f32 %v2133, %v2151
    %2153 = vmatmul.bf16.gmra.mxu0 %v380
    %v2154 = vpop.f32.mrf.mxu0
    %v2155 = vadd.f32 %v2136, %v2154
    %v2156 = vpop.f32.mrf.mxu0
    %v2157 = vadd.f32 %v2138, %v2156
    %2158 = vdwg.mxu0
    %2159 = vmatpush.bf16.msra.mxu0 %v1278
    %2160 = vmatpush.bf16.msra.mxu0 %v1262
    %2161 = vmatpush.bf16.msra.mxu0 %v1246
    %2162 = vmatpush.bf16.msra.mxu0 %v1230
    %2163 = vmatpush.bf16.msra.mxu0 %v1214
    %2164 = vmatpush.bf16.msra.mxu0 %v1198
    %2165 = vmatpush.bf16.msra.mxu0 %v1182
    %2166 = vmatpush.bf16.msra.mxu0 %v1166
    %2167 = vmatmul.bf16.gmra.mxu0 %v377
    %v2168 = vpop.f32.mrf.mxu0
    %v2169 = vadd.f32 %v346, %v2168
    %v2170 = vpop.f32.mrf.mxu0
    %v2171 = vadd.f32 %v346, %v2170
    %2172 = vmatmul.bf16.gmra.mxu0 %v379
    %v2173 = vpop.f32.mrf.mxu0
    %v2174 = vadd.f32 %v346, %v2173
    %v2175 = vpop.f32.mrf.mxu0
    %v2176 = vadd.f32 %v346, %v2175
    %2177 = vdwg.mxu0
    %2178 = vmatpush.bf16.msra.mxu0 %v1406
    %2179 = vmatpush.bf16.msra.mxu0 %v1390
    %2180 = vmatpush.bf16.msra.mxu0 %v1374
    %2181 = vmatpush.bf16.msra.mxu0 %v1358
    %2182 = vmatpush.bf16.msra.mxu0 %v1342
    %2183 = vmatpush.bf16.msra.mxu0 %v1326
    %2184 = vmatpush.bf16.msra.mxu0 %v1310
    %2185 = vmatpush.bf16.msra.mxu0 %v1294
    %2186 = vmatmul.bf16.gmra.mxu0 %v378
    %v2187 = vpop.f32.mrf.mxu0
    %v2188 = vadd.f32 %v2169, %v2187
    %v2189 = vpop.f32.mrf.mxu0
    %v2190 = vadd.f32 %v2171, %v2189
    %2191 = vmatmul.bf16.gmra.mxu0 %v380
    %v2192 = vpop.f32.mrf.mxu0
    %v2193 = vadd.f32 %v2174, %v2192
    %v2194 = vpop.f32.mrf.mxu0
    %v2195 = vadd.f32 %v2176, %v2194
    %2196 = vdwg.mxu0
    %2197 = vmatpush.bf16.msra.mxu0 %v1279
    %2198 = vmatpush.bf16.msra.mxu0 %v1263
    %2199 = vmatpush.bf16.msra.mxu0 %v1247
    %2200 = vmatpush.bf16.msra.mxu0 %v1231
    %2201 = vmatpush.bf16.msra.mxu0 %v1215
    %2202 = vmatpush.bf16.msra.mxu0 %v1199
    %2203 = vmatpush.bf16.msra.mxu0 %v1183
    %2204 = vmatpush.bf16.msra.mxu0 %v1167
    %2205 = vmatmul.bf16.gmra.mxu0 %v377
    %v2206 = vpop.f32.mrf.mxu0
    %v2207 = vadd.f32 %v347, %v2206
    %v2208 = vpop.f32.mrf.mxu0
    %v2209 = vadd.f32 %v347, %v2208
    %2210 = vmatmul.bf16.gmra.mxu0 %v379
    %v2211 = vpop.f32.mrf.mxu0
    %v2212 = vadd.f32 %v347, %v2211
    %v2213 = vpop.f32.mrf.mxu0
    %v2214 = vadd.f32 %v347, %v2213
    %2215 = vdwg.mxu0
    %2216 = vmatpush.bf16.msra.mxu0 %v1407
    %2217 = vmatpush.bf16.msra.mxu0 %v1391
    %2218 = vmatpush.bf16.msra.mxu0 %v1375
    %2219 = vmatpush.bf16.msra.mxu0 %v1359
    %2220 = vmatpush.bf16.msra.mxu0 %v1343
    %2221 = vmatpush.bf16.msra.mxu0 %v1327
    %2222 = vmatpush.bf16.msra.mxu0 %v1311
    %2223 = vmatpush.bf16.msra.mxu0 %v1295
    %2224 = vmatmul.bf16.gmra.mxu0 %v378
    %v2225 = vpop.f32.mrf.mxu0
    %v2226 = vadd.f32 %v2207, %v2225
    %v2227 = vpop.f32.mrf.mxu0
    %v2228 = vadd.f32 %v2209, %v2227
    %2229 = vmatmul.bf16.gmra.mxu0 %v380
    %v2230 = vpop.f32.mrf.mxu0
    %v2231 = vadd.f32 %v2212, %v2230
    %v2232 = vpop.f32.mrf.mxu0
    %v2233 = vadd.f32 %v2214, %v2232
    %2234 = vdwg.mxu0
    %2235 = vmatpush.bf16.msra.mxu0 %v1280
    %2236 = vmatpush.bf16.msra.mxu0 %v1264
    %2237 = vmatpush.bf16.msra.mxu0 %v1248
    %2238 = vmatpush.bf16.msra.mxu0 %v1232
    %2239 = vmatpush.bf16.msra.mxu0 %v1216
    %2240 = vmatpush.bf16.msra.mxu0 %v1200
    %2241 = vmatpush.bf16.msra.mxu0 %v1184
    %2242 = vmatpush.bf16.msra.mxu0 %v1168
    %2243 = vmatmul.bf16.gmra.mxu0 %v377
    %v2244 = vpop.f32.mrf.mxu0
    %v2245 = vadd.f32 %v348, %v2244
    %v2246 = vpop.f32.mrf.mxu0
    %v2247 = vadd.f32 %v348, %v2246
    %2248 = vmatmul.bf16.gmra.mxu0 %v379
    %v2249 = vpop.f32.mrf.mxu0
    %v2250 = vadd.f32 %v348, %v2249
    %v2251 = vpop.f32.mrf.mxu0
    %v2252 = vadd.f32 %v348, %v2251
    %2253 = vdwg.mxu0
    %2254 = vmatpush.bf16.msra.mxu0 %v1408
    %2255 = vmatpush.bf16.msra.mxu0 %v1392
    %2256 = vmatpush.bf16.msra.mxu0 %v1376
    %2257 = vmatpush.bf16.msra.mxu0 %v1360
    %2258 = vmatpush.bf16.msra.mxu0 %v1344
    %2259 = vmatpush.bf16.msra.mxu0 %v1328
    %2260 = vmatpush.bf16.msra.mxu0 %v1312
    %2261 = vmatpush.bf16.msra.mxu0 %v1296
    %2262 = vmatmul.bf16.gmra.mxu0 %v378
    %v2263 = vpop.f32.mrf.mxu0
    %v2264 = vadd.f32 %v2245, %v2263
    %v2265 = vpop.f32.mrf.mxu0
    %v2266 = vadd.f32 %v2247, %v2265
    %2267 = vmatmul.bf16.gmra.mxu0 %v380
    %v2268 = vpop.f32.mrf.mxu0
    %v2269 = vadd.f32 %v2250, %v2268
    %v2270 = vpop.f32.mrf.mxu0
    %v2271 = vadd.f32 %v2252, %v2270
    %2272 = vdwg.mxu0
    %v2273 = vmax.f32 %v1694, 0.0
    %v2274 = vmax.f32 %v1732, 0.0
    %v2275 = vmax.f32 %v1770, 0.0
    %v2276 = vmax.f32 %v1808, 0.0
    %v2277 = vmax.f32 %v1846, 0.0
    %v2278 = vmax.f32 %v1884, 0.0
    %v2279 = vmax.f32 %v1922, 0.0
    %v2280 = vmax.f32 %v1960, 0.0
    %v2281 = vmax.f32 %v1998, 0.0
    %v2282 = vmax.f32 %v2036, 0.0
    %v2283 = vmax.f32 %v2074, 0.0
    %v2284 = vmax.f32 %v2112, 0.0
    %v2285 = vmax.f32 %v2150, 0.0
    %v2286 = vmax.f32 %v2188, 0.0
    %v2287 = vmax.f32 %v2226, 0.0
    %v2288 = vmax.f32 %v2264, 0.0
    %v2289 = vmax.f32 %v1696, 0.0
    %v2290 = vmax.f32 %v1734, 0.0
    %v2291 = vmax.f32 %v1772, 0.0
    %v2292 = vmax.f32 %v1810, 0.0
    %v2293 = vmax.f32 %v1848, 0.0
    %v2294 = vmax.f32 %v1886, 0.0
    %v2295 = vmax.f32 %v1924, 0.0
    %v2296 = vmax.f32 %v1962, 0.0
    %v2297 = vmax.f32 %v2000, 0.0
    %v2298 = vmax.f32 %v2038, 0.0
    %v2299 = vmax.f32 %v2076, 0.0
    %v2300 = vmax.f32 %v2114, 0.0
    %v2301 = vmax.f32 %v2152, 0.0
    %v2302 = vmax.f32 %v2190, 0.0
    %v2303 = vmax.f32 %v2228, 0.0
    %v2304 = vmax.f32 %v2266, 0.0
    %v2305 = vmax.f32 %v1699, 0.0
    %v2306 = vmax.f32 %v1737, 0.0
    %v2307 = vmax.f32 %v1775, 0.0
    %v2308 = vmax.f32 %v1813, 0.0
    %v2309 = vmax.f32 %v1851, 0.0
    %v2310 = vmax.f32 %v1889, 0.0
    %v2311 = vmax.f32 %v1927, 0.0
    %v2312 = vmax.f32 %v1965, 0.0
    %v2313 = vmax.f32 %v2003, 0.0
    %v2314 = vmax.f32 %v2041, 0.0
    %v2315 = vmax.f32 %v2079, 0.0
    %v2316 = vmax.f32 %v2117, 0.0
    %v2317 = vmax.f32 %v2155, 0.0
    %v2318 = vmax.f32 %v2193, 0.0
    %v2319 = vmax.f32 %v2231, 0.0
    %v2320 = vmax.f32 %v2269, 0.0
    %v2321 = vmax.f32 %v1701, 0.0
    %v2322 = vmax.f32 %v1739, 0.0
    %v2323 = vmax.f32 %v1777, 0.0
    %v2324 = vmax.f32 %v1815, 0.0
    %v2325 = vmax.f32 %v1853, 0.0
    %v2326 = vmax.f32 %v1891, 0.0
    %v2327 = vmax.f32 %v1929, 0.0
    %v2328 = vmax.f32 %v1967, 0.0
    %v2329 = vmax.f32 %v2005, 0.0
    %v2330 = vmax.f32 %v2043, 0.0
    %v2331 = vmax.f32 %v2081, 0.0
    %v2332 = vmax.f32 %v2119, 0.0
    %v2333 = vmax.f32 %v2157, 0.0
    %v2334 = vmax.f32 %v2195, 0.0
    %v2335 = vmax.f32 %v2233, 0.0
    %v2336 = vmax.f32 %v2271, 0.0
    %v2337 = vpack.c.bf16 %v2289, %v2273
    %v2338 = vpack.c.bf16 %v2290, %v2274
    %v2339 = vpack.c.bf16 %v2291, %v2275
    %v2340 = vpack.c.bf16 %v2292, %v2276
    %v2341 = vpack.c.bf16 %v2293, %v2277
    %v2342 = vpack.c.bf16 %v2294, %v2278
    %v2343 = vpack.c.bf16 %v2295, %v2279
    %v2344 = vpack.c.bf16 %v2296, %v2280
    %v2345 = vpack.c.bf16 %v2297, %v2281
    %v2346 = vpack.c.bf16 %v2298, %v2282
    %v2347 = vpack.c.bf16 %v2299, %v2283
    %v2348 = vpack.c.bf16 %v2300, %v2284
    %v2349 = vpack.c.bf16 %v2301, %v2285
    %v2350 = vpack.c.bf16 %v2302, %v2286
    %v2351 = vpack.c.bf16 %v2303, %v2287
    %v2352 = vpack.c.bf16 %v2304, %v2288
    %v2353 = vpack.c.bf16 %v2321, %v2305
    %v2354 = vpack.c.bf16 %v2322, %v2306
    %v2355 = vpack.c.bf16 %v2323, %v2307
    %v2356 = vpack.c.bf16 %v2324, %v2308
    %v2357 = vpack.c.bf16 %v2325, %v2309
    %v2358 = vpack.c.bf16 %v2326, %v2310
    %v2359 = vpack.c.bf16 %v2327, %v2311
    %v2360 = vpack.c.bf16 %v2328, %v2312
    %v2361 = vpack.c.bf16 %v2329, %v2313
    %v2362 = vpack.c.bf16 %v2330, %v2314
    %v2363 = vpack.c.bf16 %v2331, %v2315
    %v2364 = vpack.c.bf16 %v2332, %v2316
    %v2365 = vpack.c.bf16 %v2333, %v2317
    %v2366 = vpack.c.bf16 %v2334, %v2318
    %v2367 = vpack.c.bf16 %v2335, %v2319
    %v2368 = vpack.c.bf16 %v2336, %v2320
    %v2369 = vld [vmem:[#allocation5] sm:$0xf]
    %v2370 = vld [vmem:[#allocation5 + $0x4] sm:$0xf]
    %v2371 = vld [vmem:[#allocation5 + $0x8] sm:$0xf]
    %v2372 = vld [vmem:[#allocation5 + $0xc] sm:$0xf]
    %v2373 = vld [vmem:[#allocation5 + $0x10] sm:$0xf]
    %v2374 = vld [vmem:[#allocation5 + $0x14] sm:$0xf]
    %v2375 = vld [vmem:[#allocation5 + $0x18] sm:$0xf]
    %v2376 = vld [vmem:[#allocation5 + $0x1c] sm:$0xf]
    %v2377 = vld [vmem:[#allocation5 + $0x20] sm:$0xf]
    %v2378 = vld [vmem:[#allocation5 + $0x24] sm:$0xf]
    %v2379 = vld [vmem:[#allocation5 + $0x28] sm:$0xf]
    %v2380 = vld [vmem:[#allocation5 + $0x2c] sm:$0xf]
    %v2381 = vld [vmem:[#allocation5 + $0x30] sm:$0xf]
    %v2382 = vld [vmem:[#allocation5 + $0x34] sm:$0xf]
    %v2383 = vld [vmem:[#allocation5 + $0x38] sm:$0xf]
    %v2384 = vld [vmem:[#allocation5 + $0x3c] sm:$0xf]
    %v2385 = vld [vmem:[#allocation5 + $0x40] sm:$0xf]
    %v2386 = vld [vmem:[#allocation5 + $0x44] sm:$0xf]
    %v2387 = vld [vmem:[#allocation5 + $0x48] sm:$0xf]
    %v2388 = vld [vmem:[#allocation5 + $0x4c] sm:$0xf]
    %v2389 = vld [vmem:[#allocation5 + $0x50] sm:$0xf]
    %v2390 = vld [vmem:[#allocation5 + $0x54] sm:$0xf]
    %v2391 = vld [vmem:[#allocation5 + $0x58] sm:$0xf]
    %v2392 = vld [vmem:[#allocation5 + $0x5c] sm:$0xf]
    %v2393 = vld [vmem:[#allocation5 + $0x60] sm:$0xf]
    %v2394 = vld [vmem:[#allocation5 + $0x64] sm:$0xf]
    %v2395 = vld [vmem:[#allocation5 + $0x68] sm:$0xf]
    %v2396 = vld [vmem:[#allocation5 + $0x6c] sm:$0xf]
    %v2397 = vld [vmem:[#allocation5 + $0x70] sm:$0xf]
    %v2398 = vld [vmem:[#allocation5 + $0x74] sm:$0xf]
    %v2399 = vld [vmem:[#allocation5 + $0x78] sm:$0xf]
    %v2400 = vld [vmem:[#allocation5 + $0x7c] sm:$0xf]
    %v2401 = vld [vmem:[#allocation5 + $0x80] sm:$0xf]
    %v2402 = vld [vmem:[#allocation5 + $0x84] sm:$0xf]
    %v2403 = vld [vmem:[#allocation5 + $0x88] sm:$0xf]
    %v2404 = vld [vmem:[#allocation5 + $0x8c] sm:$0xf]
    %v2405 = vld [vmem:[#allocation5 + $0x90] sm:$0xf]
    %v2406 = vld [vmem:[#allocation5 + $0x94] sm:$0xf]
    %v2407 = vld [vmem:[#allocation5 + $0x98] sm:$0xf]
    %v2408 = vld [vmem:[#allocation5 + $0x9c] sm:$0xf]
    %v2409 = vld [vmem:[#allocation5 + $0xa0] sm:$0xf]
    %v2410 = vld [vmem:[#allocation5 + $0xa4] sm:$0xf]
    %v2411 = vld [vmem:[#allocation5 + $0xa8] sm:$0xf]
    %v2412 = vld [vmem:[#allocation5 + $0xac] sm:$0xf]
    %v2413 = vld [vmem:[#allocation5 + $0xb0] sm:$0xf]
    %v2414 = vld [vmem:[#allocation5 + $0xb4] sm:$0xf]
    %v2415 = vld [vmem:[#allocation5 + $0xb8] sm:$0xf]
    %v2416 = vld [vmem:[#allocation5 + $0xbc] sm:$0xf]
    %v2417 = vld [vmem:[#allocation5 + $0xc0] sm:$0xf]
    %v2418 = vld [vmem:[#allocation5 + $0xc4] sm:$0xf]
    %v2419 = vld [vmem:[#allocation5 + $0xc8] sm:$0xf]
    %v2420 = vld [vmem:[#allocation5 + $0xcc] sm:$0xf]
    %v2421 = vld [vmem:[#allocation5 + $0xd0] sm:$0xf]
    %v2422 = vld [vmem:[#allocation5 + $0xd4] sm:$0xf]
    %v2423 = vld [vmem:[#allocation5 + $0xd8] sm:$0xf]
    %v2424 = vld [vmem:[#allocation5 + $0xdc] sm:$0xf]
    %v2425 = vld [vmem:[#allocation5 + $0xe0] sm:$0xf]
    %v2426 = vld [vmem:[#allocation5 + $0xe4] sm:$0xf]
    %v2427 = vld [vmem:[#allocation5 + $0xe8] sm:$0xf]
    %v2428 = vld [vmem:[#allocation5 + $0xec] sm:$0xf]
    %v2429 = vld [vmem:[#allocation5 + $0xf0] sm:$0xf]
    %v2430 = vld [vmem:[#allocation5 + $0xf4] sm:$0xf]
    %v2431 = vld [vmem:[#allocation5 + $0xf8] sm:$0xf]
    %v2432 = vld [vmem:[#allocation5 + $0xfc] sm:$0xf]
    %v2433 = vld [vmem:[#allocation5 + $0x100] sm:$0xf]
    %v2434 = vld [vmem:[#allocation5 + $0x104] sm:$0xf]
    %v2435 = vld [vmem:[#allocation5 + $0x108] sm:$0xf]
    %v2436 = vld [vmem:[#allocation5 + $0x10c] sm:$0xf]
    %v2437 = vld [vmem:[#allocation5 + $0x110] sm:$0xf]
    %v2438 = vld [vmem:[#allocation5 + $0x114] sm:$0xf]
    %v2439 = vld [vmem:[#allocation5 + $0x118] sm:$0xf]
    %v2440 = vld [vmem:[#allocation5 + $0x11c] sm:$0xf]
    %v2441 = vld [vmem:[#allocation5 + $0x120] sm:$0xf]
    %v2442 = vld [vmem:[#allocation5 + $0x124] sm:$0xf]
    %v2443 = vld [vmem:[#allocation5 + $0x128] sm:$0xf]
    %v2444 = vld [vmem:[#allocation5 + $0x12c] sm:$0xf]
    %v2445 = vld [vmem:[#allocation5 + $0x130] sm:$0xf]
    %v2446 = vld [vmem:[#allocation5 + $0x134] sm:$0xf]
    %v2447 = vld [vmem:[#allocation5 + $0x138] sm:$0xf]
    %v2448 = vld [vmem:[#allocation5 + $0x13c] sm:$0xf]
    %v2449 = vld [vmem:[#allocation5 + $0x140] sm:$0xf]
    %v2450 = vld [vmem:[#allocation5 + $0x144] sm:$0xf]
    %v2451 = vld [vmem:[#allocation5 + $0x148] sm:$0xf]
    %v2452 = vld [vmem:[#allocation5 + $0x14c] sm:$0xf]
    %v2453 = vld [vmem:[#allocation5 + $0x150] sm:$0xf]
    %v2454 = vld [vmem:[#allocation5 + $0x154] sm:$0xf]
    %v2455 = vld [vmem:[#allocation5 + $0x158] sm:$0xf]
    %v2456 = vld [vmem:[#allocation5 + $0x15c] sm:$0xf]
    %v2457 = vld [vmem:[#allocation5 + $0x160] sm:$0xf]
    %v2458 = vld [vmem:[#allocation5 + $0x164] sm:$0xf]
    %v2459 = vld [vmem:[#allocation5 + $0x168] sm:$0xf]
    %v2460 = vld [vmem:[#allocation5 + $0x16c] sm:$0xf]
    %v2461 = vld [vmem:[#allocation5 + $0x170] sm:$0xf]
    %v2462 = vld [vmem:[#allocation5 + $0x174] sm:$0xf]
    %v2463 = vld [vmem:[#allocation5 + $0x178] sm:$0xf]
    %v2464 = vld [vmem:[#allocation5 + $0x17c] sm:$0xf]
    %v2465 = vld [vmem:[#allocation5 + $0x180] sm:$0xf]
    %v2466 = vld [vmem:[#allocation5 + $0x184] sm:$0xf]
    %v2467 = vld [vmem:[#allocation5 + $0x188] sm:$0xf]
    %v2468 = vld [vmem:[#allocation5 + $0x18c] sm:$0xf]
    %v2469 = vld [vmem:[#allocation5 + $0x190] sm:$0xf]
    %v2470 = vld [vmem:[#allocation5 + $0x194] sm:$0xf]
    %v2471 = vld [vmem:[#allocation5 + $0x198] sm:$0xf]
    %v2472 = vld [vmem:[#allocation5 + $0x19c] sm:$0xf]
    %v2473 = vld [vmem:[#allocation5 + $0x1a0] sm:$0xf]
    %v2474 = vld [vmem:[#allocation5 + $0x1a4] sm:$0xf]
    %v2475 = vld [vmem:[#allocation5 + $0x1a8] sm:$0xf]
    %v2476 = vld [vmem:[#allocation5 + $0x1ac] sm:$0xf]
    %v2477 = vld [vmem:[#allocation5 + $0x1b0] sm:$0xf]
    %v2478 = vld [vmem:[#allocation5 + $0x1b4] sm:$0xf]
    %v2479 = vld [vmem:[#allocation5 + $0x1b8] sm:$0xf]
    %v2480 = vld [vmem:[#allocation5 + $0x1bc] sm:$0xf]
    %v2481 = vld [vmem:[#allocation5 + $0x1c0] sm:$0xf]
    %v2482 = vld [vmem:[#allocation5 + $0x1c4] sm:$0xf]
    %v2483 = vld [vmem:[#allocation5 + $0x1c8] sm:$0xf]
    %v2484 = vld [vmem:[#allocation5 + $0x1cc] sm:$0xf]
    %v2485 = vld [vmem:[#allocation5 + $0x1d0] sm:$0xf]
    %v2486 = vld [vmem:[#allocation5 + $0x1d4] sm:$0xf]
    %v2487 = vld [vmem:[#allocation5 + $0x1d8] sm:$0xf]
    %v2488 = vld [vmem:[#allocation5 + $0x1dc] sm:$0xf]
    %v2489 = vld [vmem:[#allocation5 + $0x1e0] sm:$0xf]
    %v2490 = vld [vmem:[#allocation5 + $0x1e4] sm:$0xf]
    %v2491 = vld [vmem:[#allocation5 + $0x1e8] sm:$0xf]
    %v2492 = vld [vmem:[#allocation5 + $0x1ec] sm:$0xf]
    %v2493 = vld [vmem:[#allocation5 + $0x1f0] sm:$0xf]
    %v2494 = vld [vmem:[#allocation5 + $0x1f4] sm:$0xf]
    %v2495 = vld [vmem:[#allocation5 + $0x1f8] sm:$0xf]
    %v2496 = vld [vmem:[#allocation5 + $0x1fc] sm:$0xf]
    %v2497 = vld [vmem:[#allocation5 + $0x200] sm:$0xf]
    %v2498 = vld [vmem:[#allocation5 + $0x204] sm:$0xf]
    %v2499 = vld [vmem:[#allocation5 + $0x208] sm:$0xf]
    %v2500 = vld [vmem:[#allocation5 + $0x20c] sm:$0xf]
    %v2501 = vld [vmem:[#allocation5 + $0x210] sm:$0xf]
    %v2502 = vld [vmem:[#allocation5 + $0x214] sm:$0xf]
    %v2503 = vld [vmem:[#allocation5 + $0x218] sm:$0xf]
    %v2504 = vld [vmem:[#allocation5 + $0x21c] sm:$0xf]
    %v2505 = vld [vmem:[#allocation5 + $0x220] sm:$0xf]
    %v2506 = vld [vmem:[#allocation5 + $0x224] sm:$0xf]
    %v2507 = vld [vmem:[#allocation5 + $0x228] sm:$0xf]
    %v2508 = vld [vmem:[#allocation5 + $0x22c] sm:$0xf]
    %v2509 = vld [vmem:[#allocation5 + $0x230] sm:$0xf]
    %v2510 = vld [vmem:[#allocation5 + $0x234] sm:$0xf]
    %v2511 = vld [vmem:[#allocation5 + $0x238] sm:$0xf]
    %v2512 = vld [vmem:[#allocation5 + $0x23c] sm:$0xf]
    %v2513 = vld [vmem:[#allocation5 + $0x240] sm:$0xf]
    %v2514 = vld [vmem:[#allocation5 + $0x244] sm:$0xf]
    %v2515 = vld [vmem:[#allocation5 + $0x248] sm:$0xf]
    %v2516 = vld [vmem:[#allocation5 + $0x24c] sm:$0xf]
    %v2517 = vld [vmem:[#allocation5 + $0x250] sm:$0xf]
    %v2518 = vld [vmem:[#allocation5 + $0x254] sm:$0xf]
    %v2519 = vld [vmem:[#allocation5 + $0x258] sm:$0xf]
    %v2520 = vld [vmem:[#allocation5 + $0x25c] sm:$0xf]
    %v2521 = vld [vmem:[#allocation5 + $0x260] sm:$0xf]
    %v2522 = vld [vmem:[#allocation5 + $0x264] sm:$0xf]
    %v2523 = vld [vmem:[#allocation5 + $0x268] sm:$0xf]
    %v2524 = vld [vmem:[#allocation5 + $0x26c] sm:$0xf]
    %v2525 = vld [vmem:[#allocation5 + $0x270] sm:$0xf]
    %v2526 = vld [vmem:[#allocation5 + $0x274] sm:$0xf]
    %v2527 = vld [vmem:[#allocation5 + $0x278] sm:$0xf]
    %v2528 = vld [vmem:[#allocation5 + $0x27c] sm:$0xf]
    %v2529 = vld [vmem:[#allocation5 + $0x280] sm:$0xf]
    %v2530 = vld [vmem:[#allocation5 + $0x284] sm:$0xf]
    %v2531 = vld [vmem:[#allocation5 + $0x288] sm:$0xf]
    %v2532 = vld [vmem:[#allocation5 + $0x28c] sm:$0xf]
    %v2533 = vld [vmem:[#allocation5 + $0x290] sm:$0xf]
    %v2534 = vld [vmem:[#allocation5 + $0x294] sm:$0xf]
    %v2535 = vld [vmem:[#allocation5 + $0x298] sm:$0xf]
    %v2536 = vld [vmem:[#allocation5 + $0x29c] sm:$0xf]
    %v2537 = vld [vmem:[#allocation5 + $0x2a0] sm:$0xf]
    %v2538 = vld [vmem:[#allocation5 + $0x2a4] sm:$0xf]
    %v2539 = vld [vmem:[#allocation5 + $0x2a8] sm:$0xf]
    %v2540 = vld [vmem:[#allocation5 + $0x2ac] sm:$0xf]
    %v2541 = vld [vmem:[#allocation5 + $0x2b0] sm:$0xf]
    %v2542 = vld [vmem:[#allocation5 + $0x2b4] sm:$0xf]
    %v2543 = vld [vmem:[#allocation5 + $0x2b8] sm:$0xf]
    %v2544 = vld [vmem:[#allocation5 + $0x2bc] sm:$0xf]
    %v2545 = vld [vmem:[#allocation5 + $0x2c0] sm:$0xf]
    %v2546 = vld [vmem:[#allocation5 + $0x2c4] sm:$0xf]
    %v2547 = vld [vmem:[#allocation5 + $0x2c8] sm:$0xf]
    %v2548 = vld [vmem:[#allocation5 + $0x2cc] sm:$0xf]
    %v2549 = vld [vmem:[#allocation5 + $0x2d0] sm:$0xf]
    %v2550 = vld [vmem:[#allocation5 + $0x2d4] sm:$0xf]
    %v2551 = vld [vmem:[#allocation5 + $0x2d8] sm:$0xf]
    %v2552 = vld [vmem:[#allocation5 + $0x2dc] sm:$0xf]
    %v2553 = vld [vmem:[#allocation5 + $0x2e0] sm:$0xf]
    %v2554 = vld [vmem:[#allocation5 + $0x2e4] sm:$0xf]
    %v2555 = vld [vmem:[#allocation5 + $0x2e8] sm:$0xf]
    %v2556 = vld [vmem:[#allocation5 + $0x2ec] sm:$0xf]
    %v2557 = vld [vmem:[#allocation5 + $0x2f0] sm:$0xf]
    %v2558 = vld [vmem:[#allocation5 + $0x2f4] sm:$0xf]
    %v2559 = vld [vmem:[#allocation5 + $0x2f8] sm:$0xf]
    %v2560 = vld [vmem:[#allocation5 + $0x2fc] sm:$0xf]
    %v2561 = vld [vmem:[#allocation5 + $0x300] sm:$0xf]
    %v2562 = vld [vmem:[#allocation5 + $0x304] sm:$0xf]
    %v2563 = vld [vmem:[#allocation5 + $0x308] sm:$0xf]
    %v2564 = vld [vmem:[#allocation5 + $0x30c] sm:$0xf]
    %v2565 = vld [vmem:[#allocation5 + $0x310] sm:$0xf]
    %v2566 = vld [vmem:[#allocation5 + $0x314] sm:$0xf]
    %v2567 = vld [vmem:[#allocation5 + $0x318] sm:$0xf]
    %v2568 = vld [vmem:[#allocation5 + $0x31c] sm:$0xf]
    %v2569 = vld [vmem:[#allocation5 + $0x320] sm:$0xf]
    %v2570 = vld [vmem:[#allocation5 + $0x324] sm:$0xf]
    %v2571 = vld [vmem:[#allocation5 + $0x328] sm:$0xf]
    %v2572 = vld [vmem:[#allocation5 + $0x32c] sm:$0xf]
    %v2573 = vld [vmem:[#allocation5 + $0x330] sm:$0xf]
    %v2574 = vld [vmem:[#allocation5 + $0x334] sm:$0xf]
    %v2575 = vld [vmem:[#allocation5 + $0x338] sm:$0xf]
    %v2576 = vld [vmem:[#allocation5 + $0x33c] sm:$0xf]
    %v2577 = vld [vmem:[#allocation5 + $0x340] sm:$0xf]
    %v2578 = vld [vmem:[#allocation5 + $0x344] sm:$0xf]
    %v2579 = vld [vmem:[#allocation5 + $0x348] sm:$0xf]
    %v2580 = vld [vmem:[#allocation5 + $0x34c] sm:$0xf]
    %v2581 = vld [vmem:[#allocation5 + $0x350] sm:$0xf]
    %v2582 = vld [vmem:[#allocation5 + $0x354] sm:$0xf]
    %v2583 = vld [vmem:[#allocation5 + $0x358] sm:$0xf]
    %v2584 = vld [vmem:[#allocation5 + $0x35c] sm:$0xf]
    %v2585 = vld [vmem:[#allocation5 + $0x360] sm:$0xf]
    %v2586 = vld [vmem:[#allocation5 + $0x364] sm:$0xf]
    %v2587 = vld [vmem:[#allocation5 + $0x368] sm:$0xf]
    %v2588 = vld [vmem:[#allocation5 + $0x36c] sm:$0xf]
    %v2589 = vld [vmem:[#allocation5 + $0x370] sm:$0xf]
    %v2590 = vld [vmem:[#allocation5 + $0x374] sm:$0xf]
    %v2591 = vld [vmem:[#allocation5 + $0x378] sm:$0xf]
    %v2592 = vld [vmem:[#allocation5 + $0x37c] sm:$0xf]
    %v2593 = vld [vmem:[#allocation5 + $0x380] sm:$0xf]
    %v2594 = vld [vmem:[#allocation5 + $0x384] sm:$0xf]
    %v2595 = vld [vmem:[#allocation5 + $0x388] sm:$0xf]
    %v2596 = vld [vmem:[#allocation5 + $0x38c] sm:$0xf]
    %v2597 = vld [vmem:[#allocation5 + $0x390] sm:$0xf]
    %v2598 = vld [vmem:[#allocation5 + $0x394] sm:$0xf]
    %v2599 = vld [vmem:[#allocation5 + $0x398] sm:$0xf]
    %v2600 = vld [vmem:[#allocation5 + $0x39c] sm:$0xf]
    %v2601 = vld [vmem:[#allocation5 + $0x3a0] sm:$0xf]
    %v2602 = vld [vmem:[#allocation5 + $0x3a4] sm:$0xf]
    %v2603 = vld [vmem:[#allocation5 + $0x3a8] sm:$0xf]
    %v2604 = vld [vmem:[#allocation5 + $0x3ac] sm:$0xf]
    %v2605 = vld [vmem:[#allocation5 + $0x3b0] sm:$0xf]
    %v2606 = vld [vmem:[#allocation5 + $0x3b4] sm:$0xf]
    %v2607 = vld [vmem:[#allocation5 + $0x3b8] sm:$0xf]
    %v2608 = vld [vmem:[#allocation5 + $0x3bc] sm:$0xf]
    %v2609 = vld [vmem:[#allocation5 + $0x3c0] sm:$0xf]
    %v2610 = vld [vmem:[#allocation5 + $0x3c4] sm:$0xf]
    %v2611 = vld [vmem:[#allocation5 + $0x3c8] sm:$0xf]
    %v2612 = vld [vmem:[#allocation5 + $0x3cc] sm:$0xf]
    %v2613 = vld [vmem:[#allocation5 + $0x3d0] sm:$0xf]
    %v2614 = vld [vmem:[#allocation5 + $0x3d4] sm:$0xf]
    %v2615 = vld [vmem:[#allocation5 + $0x3d8] sm:$0xf]
    %v2616 = vld [vmem:[#allocation5 + $0x3dc] sm:$0xf]
    %v2617 = vld [vmem:[#allocation5 + $0x3e0] sm:$0xf]
    %v2618 = vld [vmem:[#allocation5 + $0x3e4] sm:$0xf]
    %v2619 = vld [vmem:[#allocation5 + $0x3e8] sm:$0xf]
    %v2620 = vld [vmem:[#allocation5 + $0x3ec] sm:$0xf]
    %v2621 = vld [vmem:[#allocation5 + $0x3f0] sm:$0xf]
    %v2622 = vld [vmem:[#allocation5 + $0x3f4] sm:$0xf]
    %v2623 = vld [vmem:[#allocation5 + $0x3f8] sm:$0xf]
    %v2624 = vld [vmem:[#allocation5 + $0x3fc] sm:$0xf]
    %v2625 = vld [vmem:[%s6] sm:$0x1]
    %v2627 = vperm.slane %v2625, 0
    %v2885 = vunpack.c.l.b16 %v2369
    %v2886 = vunpack.c.l.b16 %v2370
    %v2887 = vunpack.c.l.b16 %v2371
    %v2888 = vunpack.c.l.b16 %v2372
    %v2889 = vunpack.c.l.b16 %v2373
    %v2890 = vunpack.c.l.b16 %v2374
    %v2891 = vunpack.c.l.b16 %v2375
    %v2892 = vunpack.c.l.b16 %v2376
    %v2893 = vunpack.c.l.b16 %v2377
    %v2894 = vunpack.c.l.b16 %v2378
    %v2895 = vunpack.c.l.b16 %v2379
    %v2896 = vunpack.c.l.b16 %v2380
    %v2897 = vunpack.c.l.b16 %v2381
    %v2898 = vunpack.c.l.b16 %v2382
    %v2899 = vunpack.c.l.b16 %v2383
    %v2900 = vunpack.c.l.b16 %v2384
    %v2901 = vunpack.c.l.b16 %v2385
    %v2902 = vunpack.c.l.b16 %v2386
    %v2903 = vunpack.c.l.b16 %v2387
    %v2904 = vunpack.c.l.b16 %v2388
    %v2905 = vunpack.c.l.b16 %v2389
    %v2906 = vunpack.c.l.b16 %v2390
    %v2907 = vunpack.c.l.b16 %v2391
    %v2908 = vunpack.c.l.b16 %v2392
    %v2909 = vunpack.c.l.b16 %v2393
    %v2910 = vunpack.c.l.b16 %v2394
    %v2911 = vunpack.c.l.b16 %v2395
    %v2912 = vunpack.c.l.b16 %v2396
    %v2913 = vunpack.c.l.b16 %v2397
    %v2914 = vunpack.c.l.b16 %v2398
    %v2915 = vunpack.c.l.b16 %v2399
    %v2916 = vunpack.c.l.b16 %v2400
    %v2917 = vunpack.c.l.b16 %v2401
    %v2918 = vunpack.c.l.b16 %v2402
    %v2919 = vunpack.c.l.b16 %v2403
    %v2920 = vunpack.c.l.b16 %v2404
    %v2921 = vunpack.c.l.b16 %v2405
    %v2922 = vunpack.c.l.b16 %v2406
    %v2923 = vunpack.c.l.b16 %v2407
    %v2924 = vunpack.c.l.b16 %v2408
    %v2925 = vunpack.c.l.b16 %v2409
    %v2926 = vunpack.c.l.b16 %v2410
    %v2927 = vunpack.c.l.b16 %v2411
    %v2928 = vunpack.c.l.b16 %v2412
    %v2929 = vunpack.c.l.b16 %v2413
    %v2930 = vunpack.c.l.b16 %v2414
    %v2931 = vunpack.c.l.b16 %v2415
    %v2932 = vunpack.c.l.b16 %v2416
    %v2933 = vunpack.c.l.b16 %v2417
    %v2934 = vunpack.c.l.b16 %v2418
    %v2935 = vunpack.c.l.b16 %v2419
    %v2936 = vunpack.c.l.b16 %v2420
    %v2937 = vunpack.c.l.b16 %v2421
    %v2938 = vunpack.c.l.b16 %v2422
    %v2939 = vunpack.c.l.b16 %v2423
    %v2940 = vunpack.c.l.b16 %v2424
    %v2941 = vunpack.c.l.b16 %v2425
    %v2942 = vunpack.c.l.b16 %v2426
    %v2943 = vunpack.c.l.b16 %v2427
    %v2944 = vunpack.c.l.b16 %v2428
    %v2945 = vunpack.c.l.b16 %v2429
    %v2946 = vunpack.c.l.b16 %v2430
    %v2947 = vunpack.c.l.b16 %v2431
    %v2948 = vunpack.c.l.b16 %v2432
    %v2949 = vunpack.c.l.b16 %v2433
    %v2950 = vunpack.c.l.b16 %v2434
    %v2951 = vunpack.c.l.b16 %v2435
    %v2952 = vunpack.c.l.b16 %v2436
    %v2953 = vunpack.c.l.b16 %v2437
    %v2954 = vunpack.c.l.b16 %v2438
    %v2955 = vunpack.c.l.b16 %v2439
    %v2956 = vunpack.c.l.b16 %v2440
    %v2957 = vunpack.c.l.b16 %v2441
    %v2958 = vunpack.c.l.b16 %v2442
    %v2959 = vunpack.c.l.b16 %v2443
    %v2960 = vunpack.c.l.b16 %v2444
    %v2961 = vunpack.c.l.b16 %v2445
    %v2962 = vunpack.c.l.b16 %v2446
    %v2963 = vunpack.c.l.b16 %v2447
    %v2964 = vunpack.c.l.b16 %v2448
    %v2965 = vunpack.c.l.b16 %v2449
    %v2966 = vunpack.c.l.b16 %v2450
    %v2967 = vunpack.c.l.b16 %v2451
    %v2968 = vunpack.c.l.b16 %v2452
    %v2969 = vunpack.c.l.b16 %v2453
    %v2970 = vunpack.c.l.b16 %v2454
    %v2971 = vunpack.c.l.b16 %v2455
    %v2972 = vunpack.c.l.b16 %v2456
    %v2973 = vunpack.c.l.b16 %v2457
    %v2974 = vunpack.c.l.b16 %v2458
    %v2975 = vunpack.c.l.b16 %v2459
    %v2976 = vunpack.c.l.b16 %v2460
    %v2977 = vunpack.c.l.b16 %v2461
    %v2978 = vunpack.c.l.b16 %v2462
    %v2979 = vunpack.c.l.b16 %v2463
    %v2980 = vunpack.c.l.b16 %v2464
    %v2981 = vunpack.c.l.b16 %v2465
    %v2982 = vunpack.c.l.b16 %v2466
    %v2983 = vunpack.c.l.b16 %v2467
    %v2984 = vunpack.c.l.b16 %v2468
    %v2985 = vunpack.c.l.b16 %v2469
    %v2986 = vunpack.c.l.b16 %v2470
    %v2987 = vunpack.c.l.b16 %v2471
    %v2988 = vunpack.c.l.b16 %v2472
    %v2989 = vunpack.c.l.b16 %v2473
    %v2990 = vunpack.c.l.b16 %v2474
    %v2991 = vunpack.c.l.b16 %v2475
    %v2992 = vunpack.c.l.b16 %v2476
    %v2993 = vunpack.c.l.b16 %v2477
    %v2994 = vunpack.c.l.b16 %v2478
    %v2995 = vunpack.c.l.b16 %v2479
    %v2996 = vunpack.c.l.b16 %v2480
    %v2997 = vunpack.c.l.b16 %v2481
    %v2998 = vunpack.c.l.b16 %v2482
    %v2999 = vunpack.c.l.b16 %v2483
    %v3000 = vunpack.c.l.b16 %v2484
    %v3001 = vunpack.c.l.b16 %v2485
    %v3002 = vunpack.c.l.b16 %v2486
    %v3003 = vunpack.c.l.b16 %v2487
    %v3004 = vunpack.c.l.b16 %v2488
    %v3005 = vunpack.c.l.b16 %v2489
    %v3006 = vunpack.c.l.b16 %v2490
    %v3007 = vunpack.c.l.b16 %v2491
    %v3008 = vunpack.c.l.b16 %v2492
    %v3009 = vunpack.c.l.b16 %v2493
    %v3010 = vunpack.c.l.b16 %v2494
    %v3011 = vunpack.c.l.b16 %v2495
    %v3012 = vunpack.c.l.b16 %v2496
    %v3013 = vunpack.c.l.b16 %v2497
    %v3014 = vunpack.c.l.b16 %v2498
    %v3015 = vunpack.c.l.b16 %v2499
    %v3016 = vunpack.c.l.b16 %v2500
    %v3017 = vunpack.c.l.b16 %v2501
    %v3018 = vunpack.c.l.b16 %v2502
    %v3019 = vunpack.c.l.b16 %v2503
    %v3020 = vunpack.c.l.b16 %v2504
    %v3021 = vunpack.c.l.b16 %v2505
    %v3022 = vunpack.c.l.b16 %v2506
    %v3023 = vunpack.c.l.b16 %v2507
    %v3024 = vunpack.c.l.b16 %v2508
    %v3025 = vunpack.c.l.b16 %v2509
    %v3026 = vunpack.c.l.b16 %v2510
    %v3027 = vunpack.c.l.b16 %v2511
    %v3028 = vunpack.c.l.b16 %v2512
    %v3029 = vunpack.c.l.b16 %v2513
    %v3030 = vunpack.c.l.b16 %v2514
    %v3031 = vunpack.c.l.b16 %v2515
    %v3032 = vunpack.c.l.b16 %v2516
    %v3033 = vunpack.c.l.b16 %v2517
    %v3034 = vunpack.c.l.b16 %v2518
    %v3035 = vunpack.c.l.b16 %v2519
    %v3036 = vunpack.c.l.b16 %v2520
    %v3037 = vunpack.c.l.b16 %v2521
    %v3038 = vunpack.c.l.b16 %v2522
    %v3039 = vunpack.c.l.b16 %v2523
    %v3040 = vunpack.c.l.b16 %v2524
    %v3041 = vunpack.c.l.b16 %v2525
    %v3042 = vunpack.c.l.b16 %v2526
    %v3043 = vunpack.c.l.b16 %v2527
    %v3044 = vunpack.c.l.b16 %v2528
    %v3045 = vunpack.c.l.b16 %v2529
    %v3046 = vunpack.c.l.b16 %v2530
    %v3047 = vunpack.c.l.b16 %v2531
    %v3048 = vunpack.c.l.b16 %v2532
    %v3049 = vunpack.c.l.b16 %v2533
    %v3050 = vunpack.c.l.b16 %v2534
    %v3051 = vunpack.c.l.b16 %v2535
    %v3052 = vunpack.c.l.b16 %v2536
    %v3053 = vunpack.c.l.b16 %v2537
    %v3054 = vunpack.c.l.b16 %v2538
    %v3055 = vunpack.c.l.b16 %v2539
    %v3056 = vunpack.c.l.b16 %v2540
    %v3057 = vunpack.c.l.b16 %v2541
    %v3058 = vunpack.c.l.b16 %v2542
    %v3059 = vunpack.c.l.b16 %v2543
    %v3060 = vunpack.c.l.b16 %v2544
    %v3061 = vunpack.c.l.b16 %v2545
    %v3062 = vunpack.c.l.b16 %v2546
    %v3063 = vunpack.c.l.b16 %v2547
    %v3064 = vunpack.c.l.b16 %v2548
    %v3065 = vunpack.c.l.b16 %v2549
    %v3066 = vunpack.c.l.b16 %v2550
    %v3067 = vunpack.c.l.b16 %v2551
    %v3068 = vunpack.c.l.b16 %v2552
    %v3069 = vunpack.c.l.b16 %v2553
    %v3070 = vunpack.c.l.b16 %v2554
    %v3071 = vunpack.c.l.b16 %v2555
    %v3072 = vunpack.c.l.b16 %v2556
    %v3073 = vunpack.c.l.b16 %v2557
    %v3074 = vunpack.c.l.b16 %v2558
    %v3075 = vunpack.c.l.b16 %v2559
    %v3076 = vunpack.c.l.b16 %v2560
    %v3077 = vunpack.c.l.b16 %v2561
    %v3078 = vunpack.c.l.b16 %v2562
    %v3079 = vunpack.c.l.b16 %v2563
    %v3080 = vunpack.c.l.b16 %v2564
    %v3081 = vunpack.c.l.b16 %v2565
    %v3082 = vunpack.c.l.b16 %v2566
    %v3083 = vunpack.c.l.b16 %v2567
    %v3084 = vunpack.c.l.b16 %v2568
    %v3085 = vunpack.c.l.b16 %v2569
    %v3086 = vunpack.c.l.b16 %v2570
    %v3087 = vunpack.c.l.b16 %v2571
    %v3088 = vunpack.c.l.b16 %v2572
    %v3089 = vunpack.c.l.b16 %v2573
    %v3090 = vunpack.c.l.b16 %v2574
    %v3091 = vunpack.c.l.b16 %v2575
    %v3092 = vunpack.c.l.b16 %v2576
    %v3093 = vunpack.c.l.b16 %v2577
    %v3094 = vunpack.c.l.b16 %v2578
    %v3095 = vunpack.c.l.b16 %v2579
    %v3096 = vunpack.c.l.b16 %v2580
    %v3097 = vunpack.c.l.b16 %v2581
    %v3098 = vunpack.c.l.b16 %v2582
    %v3099 = vunpack.c.l.b16 %v2583
    %v3100 = vunpack.c.l.b16 %v2584
    %v3101 = vunpack.c.l.b16 %v2585
    %v3102 = vunpack.c.l.b16 %v2586
    %v3103 = vunpack.c.l.b16 %v2587
    %v3104 = vunpack.c.l.b16 %v2588
    %v3105 = vunpack.c.l.b16 %v2589
    %v3106 = vunpack.c.l.b16 %v2590
    %v3107 = vunpack.c.l.b16 %v2591
    %v3108 = vunpack.c.l.b16 %v2592
    %v3109 = vunpack.c.l.b16 %v2593
    %v3110 = vunpack.c.l.b16 %v2594
    %v3111 = vunpack.c.l.b16 %v2595
    %v3112 = vunpack.c.l.b16 %v2596
    %v3113 = vunpack.c.l.b16 %v2597
    %v3114 = vunpack.c.l.b16 %v2598
    %v3115 = vunpack.c.l.b16 %v2599
    %v3116 = vunpack.c.l.b16 %v2600
    %v3117 = vunpack.c.l.b16 %v2601
    %v3118 = vunpack.c.l.b16 %v2602
    %v3119 = vunpack.c.l.b16 %v2603
    %v3120 = vunpack.c.l.b16 %v2604
    %v3121 = vunpack.c.l.b16 %v2605
    %v3122 = vunpack.c.l.b16 %v2606
    %v3123 = vunpack.c.l.b16 %v2607
    %v3124 = vunpack.c.l.b16 %v2608
    %v3125 = vunpack.c.l.b16 %v2609
    %v3126 = vunpack.c.l.b16 %v2610
    %v3127 = vunpack.c.l.b16 %v2611
    %v3128 = vunpack.c.l.b16 %v2612
    %v3129 = vunpack.c.l.b16 %v2613
    %v3130 = vunpack.c.l.b16 %v2614
    %v3131 = vunpack.c.l.b16 %v2615
    %v3132 = vunpack.c.l.b16 %v2616
    %v3133 = vunpack.c.l.b16 %v2617
    %v3134 = vunpack.c.l.b16 %v2618
    %v3135 = vunpack.c.l.b16 %v2619
    %v3136 = vunpack.c.l.b16 %v2620
    %v3137 = vunpack.c.l.b16 %v2621
    %v3138 = vunpack.c.l.b16 %v2622
    %v3139 = vunpack.c.l.b16 %v2623
    %v3140 = vunpack.c.l.b16 %v2624
    %v3141 = vpack.c.b16 %v2886, %v2885
    %v3142 = vpack.c.b16 %v2888, %v2887
    %v3143 = vpack.c.b16 %v2890, %v2889
    %v3144 = vpack.c.b16 %v2892, %v2891
    %v3145 = vpack.c.b16 %v2894, %v2893
    %v3146 = vpack.c.b16 %v2896, %v2895
    %v3147 = vpack.c.b16 %v2898, %v2897
    %v3148 = vpack.c.b16 %v2900, %v2899
    %v3149 = vpack.c.b16 %v2902, %v2901
    %v3150 = vpack.c.b16 %v2904, %v2903
    %v3151 = vpack.c.b16 %v2906, %v2905
    %v3152 = vpack.c.b16 %v2908, %v2907
    %v3153 = vpack.c.b16 %v2910, %v2909
    %v3154 = vpack.c.b16 %v2912, %v2911
    %v3155 = vpack.c.b16 %v2914, %v2913
    %v3156 = vpack.c.b16 %v2916, %v2915
    %v3157 = vpack.c.b16 %v2918, %v2917
    %v3158 = vpack.c.b16 %v2920, %v2919
    %v3159 = vpack.c.b16 %v2922, %v2921
    %v3160 = vpack.c.b16 %v2924, %v2923
    %v3161 = vpack.c.b16 %v2926, %v2925
    %v3162 = vpack.c.b16 %v2928, %v2927
    %v3163 = vpack.c.b16 %v2930, %v2929
    %v3164 = vpack.c.b16 %v2932, %v2931
    %v3165 = vpack.c.b16 %v2934, %v2933
    %v3166 = vpack.c.b16 %v2936, %v2935
    %v3167 = vpack.c.b16 %v2938, %v2937
    %v3168 = vpack.c.b16 %v2940, %v2939
    %v3169 = vpack.c.b16 %v2942, %v2941
    %v3170 = vpack.c.b16 %v2944, %v2943
    %v3171 = vpack.c.b16 %v2946, %v2945
    %v3172 = vpack.c.b16 %v2948, %v2947
    %v3173 = vpack.c.b16 %v2950, %v2949
    %v3174 = vpack.c.b16 %v2952, %v2951
    %v3175 = vpack.c.b16 %v2954, %v2953
    %v3176 = vpack.c.b16 %v2956, %v2955
    %v3177 = vpack.c.b16 %v2958, %v2957
    %v3178 = vpack.c.b16 %v2960, %v2959
    %v3179 = vpack.c.b16 %v2962, %v2961
    %v3180 = vpack.c.b16 %v2964, %v2963
    %v3181 = vpack.c.b16 %v2966, %v2965
    %v3182 = vpack.c.b16 %v2968, %v2967
    %v3183 = vpack.c.b16 %v2970, %v2969
    %v3184 = vpack.c.b16 %v2972, %v2971
    %v3185 = vpack.c.b16 %v2974, %v2973
    %v3186 = vpack.c.b16 %v2976, %v2975
    %v3187 = vpack.c.b16 %v2978, %v2977
    %v3188 = vpack.c.b16 %v2980, %v2979
    %v3189 = vpack.c.b16 %v2982, %v2981
    %v3190 = vpack.c.b16 %v2984, %v2983
    %v3191 = vpack.c.b16 %v2986, %v2985
    %v3192 = vpack.c.b16 %v2988, %v2987
    %v3193 = vpack.c.b16 %v2990, %v2989
    %v3194 = vpack.c.b16 %v2992, %v2991
    %v3195 = vpack.c.b16 %v2994, %v2993
    %v3196 = vpack.c.b16 %v2996, %v2995
    %v3197 = vpack.c.b16 %v2998, %v2997
    %v3198 = vpack.c.b16 %v3000, %v2999
    %v3199 = vpack.c.b16 %v3002, %v3001
    %v3200 = vpack.c.b16 %v3004, %v3003
    %v3201 = vpack.c.b16 %v3006, %v3005
    %v3202 = vpack.c.b16 %v3008, %v3007
    %v3203 = vpack.c.b16 %v3010, %v3009
    %v3204 = vpack.c.b16 %v3012, %v3011
    %v3205 = vpack.c.b16 %v3014, %v3013
    %v3206 = vpack.c.b16 %v3016, %v3015
    %v3207 = vpack.c.b16 %v3018, %v3017
    %v3208 = vpack.c.b16 %v3020, %v3019
    %v3209 = vpack.c.b16 %v3022, %v3021
    %v3210 = vpack.c.b16 %v3024, %v3023
    %v3211 = vpack.c.b16 %v3026, %v3025
    %v3212 = vpack.c.b16 %v3028, %v3027
    %v3213 = vpack.c.b16 %v3030, %v3029
    %v3214 = vpack.c.b16 %v3032, %v3031
    %v3215 = vpack.c.b16 %v3034, %v3033
    %v3216 = vpack.c.b16 %v3036, %v3035
    %v3217 = vpack.c.b16 %v3038, %v3037
    %v3218 = vpack.c.b16 %v3040, %v3039
    %v3219 = vpack.c.b16 %v3042, %v3041
    %v3220 = vpack.c.b16 %v3044, %v3043
    %v3221 = vpack.c.b16 %v3046, %v3045
    %v3222 = vpack.c.b16 %v3048, %v3047
    %v3223 = vpack.c.b16 %v3050, %v3049
    %v3224 = vpack.c.b16 %v3052, %v3051
    %v3225 = vpack.c.b16 %v3054, %v3053
    %v3226 = vpack.c.b16 %v3056, %v3055
    %v3227 = vpack.c.b16 %v3058, %v3057
    %v3228 = vpack.c.b16 %v3060, %v3059
    %v3229 = vpack.c.b16 %v3062, %v3061
    %v3230 = vpack.c.b16 %v3064, %v3063
    %v3231 = vpack.c.b16 %v3066, %v3065
    %v3232 = vpack.c.b16 %v3068, %v3067
    %v3233 = vpack.c.b16 %v3070, %v3069
    %v3234 = vpack.c.b16 %v3072, %v3071
    %v3235 = vpack.c.b16 %v3074, %v3073
    %v3236 = vpack.c.b16 %v3076, %v3075
    %v3237 = vpack.c.b16 %v3078, %v3077
    %v3238 = vpack.c.b16 %v3080, %v3079
    %v3239 = vpack.c.b16 %v3082, %v3081
    %v3240 = vpack.c.b16 %v3084, %v3083
    %v3241 = vpack.c.b16 %v3086, %v3085
    %v3242 = vpack.c.b16 %v3088, %v3087
    %v3243 = vpack.c.b16 %v3090, %v3089
    %v3244 = vpack.c.b16 %v3092, %v3091
    %v3245 = vpack.c.b16 %v3094, %v3093
    %v3246 = vpack.c.b16 %v3096, %v3095
    %v3247 = vpack.c.b16 %v3098, %v3097
    %v3248 = vpack.c.b16 %v3100, %v3099
    %v3249 = vpack.c.b16 %v3102, %v3101
    %v3250 = vpack.c.b16 %v3104, %v3103
    %v3251 = vpack.c.b16 %v3106, %v3105
    %v3252 = vpack.c.b16 %v3108, %v3107
    %v3253 = vpack.c.b16 %v3110, %v3109
    %v3254 = vpack.c.b16 %v3112, %v3111
    %v3255 = vpack.c.b16 %v3114, %v3113
    %v3256 = vpack.c.b16 %v3116, %v3115
    %v3257 = vpack.c.b16 %v3118, %v3117
    %v3258 = vpack.c.b16 %v3120, %v3119
    %v3259 = vpack.c.b16 %v3122, %v3121
    %v3260 = vpack.c.b16 %v3124, %v3123
    %v3261 = vpack.c.b16 %v3126, %v3125
    %v3262 = vpack.c.b16 %v3128, %v3127
    %v3263 = vpack.c.b16 %v3130, %v3129
    %v3264 = vpack.c.b16 %v3132, %v3131
    %v3265 = vpack.c.b16 %v3134, %v3133
    %v3266 = vpack.c.b16 %v3136, %v3135
    %v3267 = vpack.c.b16 %v3138, %v3137
    %v3268 = vpack.c.b16 %v3140, %v3139
    %3397 = vmatpush.bf16.msra.mxu0 %v3148
    %3398 = vmatpush.bf16.msra.mxu0 %v3147
    %3399 = vmatpush.bf16.msra.mxu0 %v3146
    %3400 = vmatpush.bf16.msra.mxu0 %v3145
    %3401 = vmatpush.bf16.msra.mxu0 %v3144
    %3402 = vmatpush.bf16.msra.mxu0 %v3143
    %3403 = vmatpush.bf16.msra.mxu0 %v3142
    %3404 = vmatpush.bf16.msra.mxu0 %v3141
    %3405 = vmatmul.bf16.gmra.mxu0 %v2337
    %v3406 = vpop.f32.mrf.mxu0
    %v3407 = vadd.f32 %v2627, %v3406
    %v3408 = vpop.f32.mrf.mxu0
    %v3409 = vadd.f32 %v2627, %v3408
    %3410 = vmatmul.bf16.gmra.mxu0 %v2353
    %v3411 = vpop.f32.mrf.mxu0
    %v3412 = vadd.f32 %v2627, %v3411
    %v3413 = vpop.f32.mrf.mxu0
    %v3414 = vadd.f32 %v2627, %v3413
    %3415 = vdwg.mxu0
    %3416 = vmatpush.bf16.msra.mxu0 %v3156
    %3417 = vmatpush.bf16.msra.mxu0 %v3155
    %3418 = vmatpush.bf16.msra.mxu0 %v3154
    %3419 = vmatpush.bf16.msra.mxu0 %v3153
    %3420 = vmatpush.bf16.msra.mxu0 %v3152
    %3421 = vmatpush.bf16.msra.mxu0 %v3151
    %3422 = vmatpush.bf16.msra.mxu0 %v3150
    %3423 = vmatpush.bf16.msra.mxu0 %v3149
    %3424 = vmatmul.bf16.gmra.mxu0 %v2338
    %v3425 = vpop.f32.mrf.mxu0
    %v3426 = vadd.f32 %v3407, %v3425
    %v3427 = vpop.f32.mrf.mxu0
    %v3428 = vadd.f32 %v3409, %v3427
    %3429 = vmatmul.bf16.gmra.mxu0 %v2354
    %v3430 = vpop.f32.mrf.mxu0
    %v3431 = vadd.f32 %v3412, %v3430
    %v3432 = vpop.f32.mrf.mxu0
    %v3433 = vadd.f32 %v3414, %v3432
    %3434 = vdwg.mxu0
    %3435 = vmatpush.bf16.msra.mxu0 %v3164
    %3436 = vmatpush.bf16.msra.mxu0 %v3163
    %3437 = vmatpush.bf16.msra.mxu0 %v3162
    %3438 = vmatpush.bf16.msra.mxu0 %v3161
    %3439 = vmatpush.bf16.msra.mxu0 %v3160
    %3440 = vmatpush.bf16.msra.mxu0 %v3159
    %3441 = vmatpush.bf16.msra.mxu0 %v3158
    %3442 = vmatpush.bf16.msra.mxu0 %v3157
    %3443 = vmatmul.bf16.gmra.mxu0 %v2339
    %v3444 = vpop.f32.mrf.mxu0
    %v3445 = vadd.f32 %v3426, %v3444
    %v3446 = vpop.f32.mrf.mxu0
    %v3447 = vadd.f32 %v3428, %v3446
    %3448 = vmatmul.bf16.gmra.mxu0 %v2355
    %v3449 = vpop.f32.mrf.mxu0
    %v3450 = vadd.f32 %v3431, %v3449
    %v3451 = vpop.f32.mrf.mxu0
    %v3452 = vadd.f32 %v3433, %v3451
    %3453 = vdwg.mxu0
    %3454 = vmatpush.bf16.msra.mxu0 %v3172
    %3455 = vmatpush.bf16.msra.mxu0 %v3171
    %3456 = vmatpush.bf16.msra.mxu0 %v3170
    %3457 = vmatpush.bf16.msra.mxu0 %v3169
    %3458 = vmatpush.bf16.msra.mxu0 %v3168
    %3459 = vmatpush.bf16.msra.mxu0 %v3167
    %3460 = vmatpush.bf16.msra.mxu0 %v3166
    %3461 = vmatpush.bf16.msra.mxu0 %v3165
    %3462 = vmatmul.bf16.gmra.mxu0 %v2340
    %v3463 = vpop.f32.mrf.mxu0
    %v3464 = vadd.f32 %v3445, %v3463
    %v3465 = vpop.f32.mrf.mxu0
    %v3466 = vadd.f32 %v3447, %v3465
    %3467 = vmatmul.bf16.gmra.mxu0 %v2356
    %v3468 = vpop.f32.mrf.mxu0
    %v3469 = vadd.f32 %v3450, %v3468
    %v3470 = vpop.f32.mrf.mxu0
    %v3471 = vadd.f32 %v3452, %v3470
    %3472 = vdwg.mxu0
    %3473 = vmatpush.bf16.msra.mxu0 %v3180
    %3474 = vmatpush.bf16.msra.mxu0 %v3179
    %3475 = vmatpush.bf16.msra.mxu0 %v3178
    %3476 = vmatpush.bf16.msra.mxu0 %v3177
    %3477 = vmatpush.bf16.msra.mxu0 %v3176
    %3478 = vmatpush.bf16.msra.mxu0 %v3175
    %3479 = vmatpush.bf16.msra.mxu0 %v3174
    %3480 = vmatpush.bf16.msra.mxu0 %v3173
    %3481 = vmatmul.bf16.gmra.mxu0 %v2341
    %v3482 = vpop.f32.mrf.mxu0
    %v3483 = vadd.f32 %v3464, %v3482
    %v3484 = vpop.f32.mrf.mxu0
    %v3485 = vadd.f32 %v3466, %v3484
    %3486 = vmatmul.bf16.gmra.mxu0 %v2357
    %v3487 = vpop.f32.mrf.mxu0
    %v3488 = vadd.f32 %v3469, %v3487
    %v3489 = vpop.f32.mrf.mxu0
    %v3490 = vadd.f32 %v3471, %v3489
    %3491 = vdwg.mxu0
    %3492 = vmatpush.bf16.msra.mxu0 %v3188
    %3493 = vmatpush.bf16.msra.mxu0 %v3187
    %3494 = vmatpush.bf16.msra.mxu0 %v3186
    %3495 = vmatpush.bf16.msra.mxu0 %v3185
    %3496 = vmatpush.bf16.msra.mxu0 %v3184
    %3497 = vmatpush.bf16.msra.mxu0 %v3183
    %3498 = vmatpush.bf16.msra.mxu0 %v3182
    %3499 = vmatpush.bf16.msra.mxu0 %v3181
    %3500 = vmatmul.bf16.gmra.mxu0 %v2342
    %v3501 = vpop.f32.mrf.mxu0
    %v3502 = vadd.f32 %v3483, %v3501
    %v3503 = vpop.f32.mrf.mxu0
    %v3504 = vadd.f32 %v3485, %v3503
    %3505 = vmatmul.bf16.gmra.mxu0 %v2358
    %v3506 = vpop.f32.mrf.mxu0
    %v3507 = vadd.f32 %v3488, %v3506
    %v3508 = vpop.f32.mrf.mxu0
    %v3509 = vadd.f32 %v3490, %v3508
    %3510 = vdwg.mxu0
    %3511 = vmatpush.bf16.msra.mxu0 %v3196
    %3512 = vmatpush.bf16.msra.mxu0 %v3195
    %3513 = vmatpush.bf16.msra.mxu0 %v3194
    %3514 = vmatpush.bf16.msra.mxu0 %v3193
    %3515 = vmatpush.bf16.msra.mxu0 %v3192
    %3516 = vmatpush.bf16.msra.mxu0 %v3191
    %3517 = vmatpush.bf16.msra.mxu0 %v3190
    %3518 = vmatpush.bf16.msra.mxu0 %v3189
    %3519 = vmatmul.bf16.gmra.mxu0 %v2343
    %v3520 = vpop.f32.mrf.mxu0
    %v3521 = vadd.f32 %v3502, %v3520
    %v3522 = vpop.f32.mrf.mxu0
    %v3523 = vadd.f32 %v3504, %v3522
    %3524 = vmatmul.bf16.gmra.mxu0 %v2359
    %v3525 = vpop.f32.mrf.mxu0
    %v3526 = vadd.f32 %v3507, %v3525
    %v3527 = vpop.f32.mrf.mxu0
    %v3528 = vadd.f32 %v3509, %v3527
    %3529 = vdwg.mxu0
    %3530 = vmatpush.bf16.msra.mxu0 %v3204
    %3531 = vmatpush.bf16.msra.mxu0 %v3203
    %3532 = vmatpush.bf16.msra.mxu0 %v3202
    %3533 = vmatpush.bf16.msra.mxu0 %v3201
    %3534 = vmatpush.bf16.msra.mxu0 %v3200
    %3535 = vmatpush.bf16.msra.mxu0 %v3199
    %3536 = vmatpush.bf16.msra.mxu0 %v3198
    %3537 = vmatpush.bf16.msra.mxu0 %v3197
    %3538 = vmatmul.bf16.gmra.mxu0 %v2344
    %v3539 = vpop.f32.mrf.mxu0
    %v3540 = vadd.f32 %v3521, %v3539
    %v3541 = vpop.f32.mrf.mxu0
    %v3542 = vadd.f32 %v3523, %v3541
    %3543 = vmatmul.bf16.gmra.mxu0 %v2360
    %v3544 = vpop.f32.mrf.mxu0
    %v3545 = vadd.f32 %v3526, %v3544
    %v3546 = vpop.f32.mrf.mxu0
    %v3547 = vadd.f32 %v3528, %v3546
    %3548 = vdwg.mxu0
    %3549 = vmatpush.bf16.msra.mxu0 %v3212
    %3550 = vmatpush.bf16.msra.mxu0 %v3211
    %3551 = vmatpush.bf16.msra.mxu0 %v3210
    %3552 = vmatpush.bf16.msra.mxu0 %v3209
    %3553 = vmatpush.bf16.msra.mxu0 %v3208
    %3554 = vmatpush.bf16.msra.mxu0 %v3207
    %3555 = vmatpush.bf16.msra.mxu0 %v3206
    %3556 = vmatpush.bf16.msra.mxu0 %v3205
    %3557 = vmatmul.bf16.gmra.mxu0 %v2345
    %v3558 = vpop.f32.mrf.mxu0
    %v3559 = vadd.f32 %v3540, %v3558
    %v3560 = vpop.f32.mrf.mxu0
    %v3561 = vadd.f32 %v3542, %v3560
    %3562 = vmatmul.bf16.gmra.mxu0 %v2361
    %v3563 = vpop.f32.mrf.mxu0
    %v3564 = vadd.f32 %v3545, %v3563
    %v3565 = vpop.f32.mrf.mxu0
    %v3566 = vadd.f32 %v3547, %v3565
    %3567 = vdwg.mxu0
    %3568 = vmatpush.bf16.msra.mxu0 %v3220
    %3569 = vmatpush.bf16.msra.mxu0 %v3219
    %3570 = vmatpush.bf16.msra.mxu0 %v3218
    %3571 = vmatpush.bf16.msra.mxu0 %v3217
    %3572 = vmatpush.bf16.msra.mxu0 %v3216
    %3573 = vmatpush.bf16.msra.mxu0 %v3215
    %3574 = vmatpush.bf16.msra.mxu0 %v3214
    %3575 = vmatpush.bf16.msra.mxu0 %v3213
    %3576 = vmatmul.bf16.gmra.mxu0 %v2346
    %v3577 = vpop.f32.mrf.mxu0
    %v3578 = vadd.f32 %v3559, %v3577
    %v3579 = vpop.f32.mrf.mxu0
    %v3580 = vadd.f32 %v3561, %v3579
    %3581 = vmatmul.bf16.gmra.mxu0 %v2362
    %v3582 = vpop.f32.mrf.mxu0
    %v3583 = vadd.f32 %v3564, %v3582
    %v3584 = vpop.f32.mrf.mxu0
    %v3585 = vadd.f32 %v3566, %v3584
    %3586 = vdwg.mxu0
    %3587 = vmatpush.bf16.msra.mxu0 %v3228
    %3588 = vmatpush.bf16.msra.mxu0 %v3227
    %3589 = vmatpush.bf16.msra.mxu0 %v3226
    %3590 = vmatpush.bf16.msra.mxu0 %v3225
    %3591 = vmatpush.bf16.msra.mxu0 %v3224
    %3592 = vmatpush.bf16.msra.mxu0 %v3223
    %3593 = vmatpush.bf16.msra.mxu0 %v3222
    %3594 = vmatpush.bf16.msra.mxu0 %v3221
    %3595 = vmatmul.bf16.gmra.mxu0 %v2347
    %v3596 = vpop.f32.mrf.mxu0
    %v3597 = vadd.f32 %v3578, %v3596
    %v3598 = vpop.f32.mrf.mxu0
    %v3599 = vadd.f32 %v3580, %v3598
    %3600 = vmatmul.bf16.gmra.mxu0 %v2363
    %v3601 = vpop.f32.mrf.mxu0
    %v3602 = vadd.f32 %v3583, %v3601
    %v3603 = vpop.f32.mrf.mxu0
    %v3604 = vadd.f32 %v3585, %v3603
    %3605 = vdwg.mxu0
    %3606 = vmatpush.bf16.msra.mxu0 %v3236
    %3607 = vmatpush.bf16.msra.mxu0 %v3235
    %3608 = vmatpush.bf16.msra.mxu0 %v3234
    %3609 = vmatpush.bf16.msra.mxu0 %v3233
    %3610 = vmatpush.bf16.msra.mxu0 %v3232
    %3611 = vmatpush.bf16.msra.mxu0 %v3231
    %3612 = vmatpush.bf16.msra.mxu0 %v3230
    %3613 = vmatpush.bf16.msra.mxu0 %v3229
    %3614 = vmatmul.bf16.gmra.mxu0 %v2348
    %v3615 = vpop.f32.mrf.mxu0
    %v3616 = vadd.f32 %v3597, %v3615
    %v3617 = vpop.f32.mrf.mxu0
    %v3618 = vadd.f32 %v3599, %v3617
    %3619 = vmatmul.bf16.gmra.mxu0 %v2364
    %v3620 = vpop.f32.mrf.mxu0
    %v3621 = vadd.f32 %v3602, %v3620
    %v3622 = vpop.f32.mrf.mxu0
    %v3623 = vadd.f32 %v3604, %v3622
    %3624 = vdwg.mxu0
    %3625 = vmatpush.bf16.msra.mxu0 %v3244
    %3626 = vmatpush.bf16.msra.mxu0 %v3243
    %3627 = vmatpush.bf16.msra.mxu0 %v3242
    %3628 = vmatpush.bf16.msra.mxu0 %v3241
    %3629 = vmatpush.bf16.msra.mxu0 %v3240
    %3630 = vmatpush.bf16.msra.mxu0 %v3239
    %3631 = vmatpush.bf16.msra.mxu0 %v3238
    %3632 = vmatpush.bf16.msra.mxu0 %v3237
    %3633 = vmatmul.bf16.gmra.mxu0 %v2349
    %v3634 = vpop.f32.mrf.mxu0
    %v3635 = vadd.f32 %v3616, %v3634
    %v3636 = vpop.f32.mrf.mxu0
    %v3637 = vadd.f32 %v3618, %v3636
    %3638 = vmatmul.bf16.gmra.mxu0 %v2365
    %v3639 = vpop.f32.mrf.mxu0
    %v3640 = vadd.f32 %v3621, %v3639
    %v3641 = vpop.f32.mrf.mxu0
    %v3642 = vadd.f32 %v3623, %v3641
    %3643 = vdwg.mxu0
    %3644 = vmatpush.bf16.msra.mxu0 %v3252
    %3645 = vmatpush.bf16.msra.mxu0 %v3251
    %3646 = vmatpush.bf16.msra.mxu0 %v3250
    %3647 = vmatpush.bf16.msra.mxu0 %v3249
    %3648 = vmatpush.bf16.msra.mxu0 %v3248
    %3649 = vmatpush.bf16.msra.mxu0 %v3247
    %3650 = vmatpush.bf16.msra.mxu0 %v3246
    %3651 = vmatpush.bf16.msra.mxu0 %v3245
    %3652 = vmatmul.bf16.gmra.mxu0 %v2350
    %v3653 = vpop.f32.mrf.mxu0
    %v3654 = vadd.f32 %v3635, %v3653
    %v3655 = vpop.f32.mrf.mxu0
    %v3656 = vadd.f32 %v3637, %v3655
    %3657 = vmatmul.bf16.gmra.mxu0 %v2366
    %v3658 = vpop.f32.mrf.mxu0
    %v3659 = vadd.f32 %v3640, %v3658
    %v3660 = vpop.f32.mrf.mxu0
    %v3661 = vadd.f32 %v3642, %v3660
    %3662 = vdwg.mxu0
    %3663 = vmatpush.bf16.msra.mxu0 %v3260
    %3664 = vmatpush.bf16.msra.mxu0 %v3259
    %3665 = vmatpush.bf16.msra.mxu0 %v3258
    %3666 = vmatpush.bf16.msra.mxu0 %v3257
    %3667 = vmatpush.bf16.msra.mxu0 %v3256
    %3668 = vmatpush.bf16.msra.mxu0 %v3255
    %3669 = vmatpush.bf16.msra.mxu0 %v3254
    %3670 = vmatpush.bf16.msra.mxu0 %v3253
    %3671 = vmatmul.bf16.gmra.mxu0 %v2351
    %v3672 = vpop.f32.mrf.mxu0
    %v3673 = vadd.f32 %v3654, %v3672
    %v3674 = vpop.f32.mrf.mxu0
    %v3675 = vadd.f32 %v3656, %v3674
    %3676 = vmatmul.bf16.gmra.mxu0 %v2367
    %v3677 = vpop.f32.mrf.mxu0
    %v3678 = vadd.f32 %v3659, %v3677
    %v3679 = vpop.f32.mrf.mxu0
    %v3680 = vadd.f32 %v3661, %v3679
    %3681 = vdwg.mxu0
    %3682 = vmatpush.bf16.msra.mxu0 %v3268
    %3683 = vmatpush.bf16.msra.mxu0 %v3267
    %3684 = vmatpush.bf16.msra.mxu0 %v3266
    %3685 = vmatpush.bf16.msra.mxu0 %v3265
    %3686 = vmatpush.bf16.msra.mxu0 %v3264
    %3687 = vmatpush.bf16.msra.mxu0 %v3263
    %3688 = vmatpush.bf16.msra.mxu0 %v3262
    %3689 = vmatpush.bf16.msra.mxu0 %v3261
    %3690 = vmatmul.bf16.gmra.mxu0 %v2352
    %v3691 = vpop.f32.mrf.mxu0
    %v3692 = vadd.f32 %v3673, %v3691
    %v3693 = vpop.f32.mrf.mxu0
    %v3694 = vadd.f32 %v3675, %v3693
    %3695 = vmatmul.bf16.gmra.mxu0 %v2368
    %v3696 = vpop.f32.mrf.mxu0
    %v3697 = vadd.f32 %v3678, %v3696
    %v3698 = vpop.f32.mrf.mxu0
    %v3699 = vadd.f32 %v3680, %v3698
    %3700 = vdwg.mxu0
    %v3701 = vmax.f32 %v3692, 0.0
    %v3702 = vmax.f32 %v3694, 0.0
    %v3703 = vmax.f32 %v3697, 0.0
    %v3704 = vmax.f32 %v3699, 0.0
    %v3705 = vpack.c.bf16 %v3702, %v3701
    %v3706 = vpack.c.bf16 %v3704, %v3703
    %v3707 = vld [vmem:[%s7] sm:$0xf]
    %v3708 = vld [vmem:[%s7 + $0x4] sm:$0xf]
    %v3709 = vld [vmem:[%s7 + $0x8] sm:$0xf]
    %v3710 = vld [vmem:[%s7 + $0xc] sm:$0xf]
    %v3711 = vld [vmem:[%s7 + $0x10] sm:$0xf]
    %v3712 = vld [vmem:[%s7 + $0x14] sm:$0xf]
    %v3713 = vld [vmem:[%s7 + $0x18] sm:$0xf]
    %v3714 = vld [vmem:[%s7 + $0x1c] sm:$0xf]
    %v3715 = vld [vmem:[%s7 + $0x20] sm:$0xf]
    %v3716 = vld [vmem:[%s7 + $0x24] sm:$0xf]
    %v3717 = vld [vmem:[%s7 + $0x28] sm:$0xf]
    %v3718 = vld [vmem:[%s7 + $0x2c] sm:$0xf]
    %v3719 = vld [vmem:[%s7 + $0x30] sm:$0xf]
    %v3720 = vld [vmem:[%s7 + $0x34] sm:$0xf]
    %v3721 = vld [vmem:[%s7 + $0x38] sm:$0xf]
    %v3722 = vld [vmem:[%s7 + $0x3c] sm:$0xf]
    %v3723 = vld [vmem:[%s8] sm:$0x1]
    %v3725 = vperm.slane %v3723, 0
    %v3743 = vunpack.c.l.b16 %v3707
    %v3744 = vunpack.c.l.b16 %v3708
    %v3745 = vunpack.c.l.b16 %v3709
    %v3746 = vunpack.c.l.b16 %v3710
    %v3747 = vunpack.c.l.b16 %v3711
    %v3748 = vunpack.c.l.b16 %v3712
    %v3749 = vunpack.c.l.b16 %v3713
    %v3750 = vunpack.c.l.b16 %v3714
    %v3751 = vunpack.c.l.b16 %v3715
    %v3752 = vunpack.c.l.b16 %v3716
    %v3753 = vunpack.c.l.b16 %v3717
    %v3754 = vunpack.c.l.b16 %v3718
    %v3755 = vunpack.c.l.b16 %v3719
    %v3756 = vunpack.c.l.b16 %v3720
    %v3757 = vunpack.c.l.b16 %v3721
    %v3758 = vunpack.c.l.b16 %v3722
    %v3759 = vpack.c.b16 %v3744, %v3743
    %v3760 = vpack.c.b16 %v3746, %v3745
    %v3761 = vpack.c.b16 %v3748, %v3747
    %v3762 = vpack.c.b16 %v3750, %v3749
    %v3763 = vpack.c.b16 %v3752, %v3751
    %v3764 = vpack.c.b16 %v3754, %v3753
    %v3765 = vpack.c.b16 %v3756, %v3755
    %v3766 = vpack.c.b16 %v3758, %v3757
    %3775 = vmatpush.bf16.msra.mxu0 %v3766
    %3776 = vmatpush.bf16.msra.mxu0 %v3765
    %3777 = vmatpush.bf16.msra.mxu0 %v3764
    %3778 = vmatpush.bf16.msra.mxu0 %v3763
    %3779 = vmatpush.bf16.msra.mxu0 %v3762
    %3780 = vmatpush.bf16.msra.mxu0 %v3761
    %3781 = vmatpush.bf16.msra.mxu0 %v3760
    %3782 = vmatpush.bf16.msra.mxu0 %v3759
    %3783 = vmatmul.bf16.gmra.mxu0 %v3705
    %v3784 = vpop.f32.mrf.mxu0
    %v3785 = vadd.f32 %v3725, %v3784
    %v3786 = vpop.f32.mrf.mxu0
    %v3787 = vadd.f32 %v3725, %v3786
    %3788 = vmatmul.bf16.gmra.mxu0 %v3706
    %v3789 = vpop.f32.mrf.mxu0
    %v3790 = vadd.f32 %v3725, %v3789
    %v3791 = vpop.f32.mrf.mxu0
    %v3792 = vadd.f32 %v3725, %v3791
    %3793 = vdwg.mxu0
    %3794 = vst [vmem:[%s11] sm:$0xff] %v3785
    %3795 = vst [vmem:[%s11 + $0x8] sm:$0xff] %v3787
    %3796 = vst [vmem:[%s11 + $0x10] sm:$0xff] %v3790
    %3797 = vst [vmem:[%s11 + $0x18] sm:$0xff] %v3792
    %v3798 = vadd.f32 %v2273, %v2289
    %v3799 = vrot.slane %v3798, 4
    %v3800 = vadd.f32 %v3798, %v3799
    %v3801 = vrot.slane %v3800, 2
    %v3802 = vadd.f32 %v3800, %v3801
    %v3803 = vrot.slane %v3802, 1
    %v3804 = vadd.f32 %v3802, %v3803
    %v3805 = vadd.f32 %v2274, %v2290
    %v3806 = vrot.slane %v3805, 4
    %v3807 = vadd.f32 %v3805, %v3806
    %v3808 = vrot.slane %v3807, 2
    %v3809 = vadd.f32 %v3807, %v3808
    %v3810 = vrot.slane %v3809, 1
    %v3811 = vadd.f32 %v3809, %v3810
    %v3812 = vadd.f32 %v2275, %v2291
    %v3813 = vrot.slane %v3812, 4
    %v3814 = vadd.f32 %v3812, %v3813
    %v3815 = vrot.slane %v3814, 2
    %v3816 = vadd.f32 %v3814, %v3815
    %v3817 = vrot.slane %v3816, 1
    %v3818 = vadd.f32 %v3816, %v3817
    %v3819 = vadd.f32 %v2276, %v2292
    %v3820 = vrot.slane %v3819, 4
    %v3821 = vadd.f32 %v3819, %v3820
    %v3822 = vrot.slane %v3821, 2
    %v3823 = vadd.f32 %v3821, %v3822
    %v3824 = vrot.slane %v3823, 1
    %v3825 = vadd.f32 %v3823, %v3824
    %v3826 = vadd.f32 %v2277, %v2293
    %v3827 = vrot.slane %v3826, 4
    %v3828 = vadd.f32 %v3826, %v3827
    %v3829 = vrot.slane %v3828, 2
    %v3830 = vadd.f32 %v3828, %v3829
    %v3831 = vrot.slane %v3830, 1
    %v3832 = vadd.f32 %v3830, %v3831
    %v3833 = vadd.f32 %v2278, %v2294
    %v3834 = vrot.slane %v3833, 4
    %v3835 = vadd.f32 %v3833, %v3834
    %v3836 = vrot.slane %v3835, 2
    %v3837 = vadd.f32 %v3835, %v3836
    %v3838 = vrot.slane %v3837, 1
    %v3839 = vadd.f32 %v3837, %v3838
    %v3840 = vadd.f32 %v2279, %v2295
    %v3841 = vrot.slane %v3840, 4
    %v3842 = vadd.f32 %v3840, %v3841
    %v3843 = vrot.slane %v3842, 2
    %v3844 = vadd.f32 %v3842, %v3843
    %v3845 = vrot.slane %v3844, 1
    %v3846 = vadd.f32 %v3844, %v3845
    %v3847 = vadd.f32 %v2280, %v2296
    %v3848 = vrot.slane %v3847, 4
    %v3849 = vadd.f32 %v3847, %v3848
    %v3850 = vrot.slane %v3849, 2
    %v3851 = vadd.f32 %v3849, %v3850
    %v3852 = vrot.slane %v3851, 1
    %v3853 = vadd.f32 %v3851, %v3852
    %v3854 = vadd.f32 %v2281, %v2297
    %v3855 = vrot.slane %v3854, 4
    %v3856 = vadd.f32 %v3854, %v3855
    %v3857 = vrot.slane %v3856, 2
    %v3858 = vadd.f32 %v3856, %v3857
    %v3859 = vrot.slane %v3858, 1
    %v3860 = vadd.f32 %v3858, %v3859
    %v3861 = vadd.f32 %v2282, %v2298
    %v3862 = vrot.slane %v3861, 4
    %v3863 = vadd.f32 %v3861, %v3862
    %v3864 = vrot.slane %v3863, 2
    %v3865 = vadd.f32 %v3863, %v3864
    %v3866 = vrot.slane %v3865, 1
    %v3867 = vadd.f32 %v3865, %v3866
    %v3868 = vadd.f32 %v2283, %v2299
    %v3869 = vrot.slane %v3868, 4
    %v3870 = vadd.f32 %v3868, %v3869
    %v3871 = vrot.slane %v3870, 2
    %v3872 = vadd.f32 %v3870, %v3871
    %v3873 = vrot.slane %v3872, 1
    %v3874 = vadd.f32 %v3872, %v3873
    %v3875 = vadd.f32 %v2284, %v2300
    %v3876 = vrot.slane %v3875, 4
    %v3877 = vadd.f32 %v3875, %v3876
    %v3878 = vrot.slane %v3877, 2
    %v3879 = vadd.f32 %v3877, %v3878
    %v3880 = vrot.slane %v3879, 1
    %v3881 = vadd.f32 %v3879, %v3880
    %v3882 = vadd.f32 %v2285, %v2301
    %v3883 = vrot.slane %v3882, 4
    %v3884 = vadd.f32 %v3882, %v3883
    %v3885 = vrot.slane %v3884, 2
    %v3886 = vadd.f32 %v3884, %v3885
    %v3887 = vrot.slane %v3886, 1
    %v3888 = vadd.f32 %v3886, %v3887
    %v3889 = vadd.f32 %v2286, %v2302
    %v3890 = vrot.slane %v3889, 4
    %v3891 = vadd.f32 %v3889, %v3890
    %v3892 = vrot.slane %v3891, 2
    %v3893 = vadd.f32 %v3891, %v3892
    %v3894 = vrot.slane %v3893, 1
    %v3895 = vadd.f32 %v3893, %v3894
    %v3896 = vadd.f32 %v2287, %v2303
    %v3897 = vrot.slane %v3896, 4
    %v3898 = vadd.f32 %v3896, %v3897
    %v3899 = vrot.slane %v3898, 2
    %v3900 = vadd.f32 %v3898, %v3899
    %v3901 = vrot.slane %v3900, 1
    %v3902 = vadd.f32 %v3900, %v3901
    %v3903 = vadd.f32 %v2288, %v2304
    %v3904 = vrot.slane %v3903, 4
    %v3905 = vadd.f32 %v3903, %v3904
    %v3906 = vrot.slane %v3905, 2
    %v3907 = vadd.f32 %v3905, %v3906
    %v3908 = vrot.slane %v3907, 1
    %v3909 = vadd.f32 %v3907, %v3908
    %v3910 = vadd.f32 %v2305, %v2321
    %v3911 = vrot.slane %v3910, 4
    %v3912 = vadd.f32 %v3910, %v3911
    %v3913 = vrot.slane %v3912, 2
    %v3914 = vadd.f32 %v3912, %v3913
    %v3915 = vrot.slane %v3914, 1
    %v3916 = vadd.f32 %v3914, %v3915
    %v3917 = vadd.f32 %v2306, %v2322
    %v3918 = vrot.slane %v3917, 4
    %v3919 = vadd.f32 %v3917, %v3918
    %v3920 = vrot.slane %v3919, 2
    %v3921 = vadd.f32 %v3919, %v3920
    %v3922 = vrot.slane %v3921, 1
    %v3923 = vadd.f32 %v3921, %v3922
    %v3924 = vadd.f32 %v2307, %v2323
    %v3925 = vrot.slane %v3924, 4
    %v3926 = vadd.f32 %v3924, %v3925
    %v3927 = vrot.slane %v3926, 2
    %v3928 = vadd.f32 %v3926, %v3927
    %v3929 = vrot.slane %v3928, 1
    %v3930 = vadd.f32 %v3928, %v3929
    %v3931 = vadd.f32 %v2308, %v2324
    %v3932 = vrot.slane %v3931, 4
    %v3933 = vadd.f32 %v3931, %v3932
    %v3934 = vrot.slane %v3933, 2
    %v3935 = vadd.f32 %v3933, %v3934
    %v3936 = vrot.slane %v3935, 1
    %v3937 = vadd.f32 %v3935, %v3936
    %v3938 = vadd.f32 %v2309, %v2325
    %v3939 = vrot.slane %v3938, 4
    %v3940 = vadd.f32 %v3938, %v3939
    %v3941 = vrot.slane %v3940, 2
    %v3942 = vadd.f32 %v3940, %v3941
    %v3943 = vrot.slane %v3942, 1
    %v3944 = vadd.f32 %v3942, %v3943
    %v3945 = vadd.f32 %v2310, %v2326
    %v3946 = vrot.slane %v3945, 4
    %v3947 = vadd.f32 %v3945, %v3946
    %v3948 = vrot.slane %v3947, 2
    %v3949 = vadd.f32 %v3947, %v3948
    %v3950 = vrot.slane %v3949, 1
    %v3951 = vadd.f32 %v3949, %v3950
    %v3952 = vadd.f32 %v2311, %v2327
    %v3953 = vrot.slane %v3952, 4
    %v3954 = vadd.f32 %v3952, %v3953
    %v3955 = vrot.slane %v3954, 2
    %v3956 = vadd.f32 %v3954, %v3955
    %v3957 = vrot.slane %v3956, 1
    %v3958 = vadd.f32 %v3956, %v3957
    %v3959 = vadd.f32 %v2312, %v2328
    %v3960 = vrot.slane %v3959, 4
    %v3961 = vadd.f32 %v3959, %v3960
    %v3962 = vrot.slane %v3961, 2
    %v3963 = vadd.f32 %v3961, %v3962
    %v3964 = vrot.slane %v3963, 1
    %v3965 = vadd.f32 %v3963, %v3964
    %v3966 = vadd.f32 %v2313, %v2329
    %v3967 = vrot.slane %v3966, 4
    %v3968 = vadd.f32 %v3966, %v3967
    %v3969 = vrot.slane %v3968, 2
    %v3970 = vadd.f32 %v3968, %v3969
    %v3971 = vrot.slane %v3970, 1
    %v3972 = vadd.f32 %v3970, %v3971
    %v3973 = vadd.f32 %v2314, %v2330
    %v3974 = vrot.slane %v3973, 4
    %v3975 = vadd.f32 %v3973, %v3974
    %v3976 = vrot.slane %v3975, 2
    %v3977 = vadd.f32 %v3975, %v3976
    %v3978 = vrot.slane %v3977, 1
    %v3979 = vadd.f32 %v3977, %v3978
    %v3980 = vadd.f32 %v2315, %v2331
    %v3981 = vrot.slane %v3980, 4
    %v3982 = vadd.f32 %v3980, %v3981
    %v3983 = vrot.slane %v3982, 2
    %v3984 = vadd.f32 %v3982, %v3983
    %v3985 = vrot.slane %v3984, 1
    %v3986 = vadd.f32 %v3984, %v3985
    %v3987 = vadd.f32 %v2316, %v2332
    %v3988 = vrot.slane %v3987, 4
    %v3989 = vadd.f32 %v3987, %v3988
    %v3990 = vrot.slane %v3989, 2
    %v3991 = vadd.f32 %v3989, %v3990
    %v3992 = vrot.slane %v3991, 1
    %v3993 = vadd.f32 %v3991, %v3992
    %v3994 = vadd.f32 %v2317, %v2333
    %v3995 = vrot.slane %v3994, 4
    %v3996 = vadd.f32 %v3994, %v3995
    %v3997 = vrot.slane %v3996, 2
    %v3998 = vadd.f32 %v3996, %v3997
    %v3999 = vrot.slane %v3998, 1
    %v4000 = vadd.f32 %v3998, %v3999
    %v4001 = vadd.f32 %v2318, %v2334
    %v4002 = vrot.slane %v4001, 4
    %v4003 = vadd.f32 %v4001, %v4002
    %v4004 = vrot.slane %v4003, 2
    %v4005 = vadd.f32 %v4003, %v4004
    %v4006 = vrot.slane %v4005, 1
    %v4007 = vadd.f32 %v4005, %v4006
    %v4008 = vadd.f32 %v2319, %v2335
    %v4009 = vrot.slane %v4008, 4
    %v4010 = vadd.f32 %v4008, %v4009
    %v4011 = vrot.slane %v4010, 2
    %v4012 = vadd.f32 %v4010, %v4011
    %v4013 = vrot.slane %v4012, 1
    %v4014 = vadd.f32 %v4012, %v4013
    %v4015 = vadd.f32 %v2320, %v2336
    %v4016 = vrot.slane %v4015, 4
    %v4017 = vadd.f32 %v4015, %v4016
    %v4018 = vrot.slane %v4017, 2
    %v4019 = vadd.f32 %v4017, %v4018
    %v4020 = vrot.slane %v4019, 1
    %v4021 = vadd.f32 %v4019, %v4020
    %v4022 = vrcp.pop 16.0
    %v4023 = vmul.f32 16.0, %v4022
    %v4024 = vsub.f32 1.0, %v4023
    %v4025 = vmul.f32 %v4022, %v4024
    %v4026 = vadd.f32 %v4022, %v4025
    %vm4027 = vweird.f32 %v4022
    %v4028 = vsel %vm4027, %v4022, %v4026
    %v4029 = vmul.f32 %v3804, %v4028
    %v4030 = vmul.f32 %v3811, %v4028
    %v4031 = vmul.f32 %v3818, %v4028
    %v4032 = vmul.f32 %v3825, %v4028
    %v4033 = vmul.f32 %v3832, %v4028
    %v4034 = vmul.f32 %v3839, %v4028
    %v4035 = vmul.f32 %v3846, %v4028
    %v4036 = vmul.f32 %v3853, %v4028
    %v4037 = vmul.f32 %v3860, %v4028
    %v4038 = vmul.f32 %v3867, %v4028
    %v4039 = vmul.f32 %v3874, %v4028
    %v4040 = vmul.f32 %v3881, %v4028
    %v4041 = vmul.f32 %v3888, %v4028
    %v4042 = vmul.f32 %v3895, %v4028
    %v4043 = vmul.f32 %v3902, %v4028
    %v4044 = vmul.f32 %v3909, %v4028
    %v4045 = vmul.f32 %v3916, %v4028
    %v4046 = vmul.f32 %v3923, %v4028
    %v4047 = vmul.f32 %v3930, %v4028
    %v4048 = vmul.f32 %v3937, %v4028
    %v4049 = vmul.f32 %v3944, %v4028
    %v4050 = vmul.f32 %v3951, %v4028
    %v4051 = vmul.f32 %v3958, %v4028
    %v4052 = vmul.f32 %v3965, %v4028
    %v4053 = vmul.f32 %v3972, %v4028
    %v4054 = vmul.f32 %v3979, %v4028
    %v4055 = vmul.f32 %v3986, %v4028
    %v4056 = vmul.f32 %v3993, %v4028
    %v4057 = vmul.f32 %v4000, %v4028
    %v4058 = vmul.f32 %v4007, %v4028
    %v4059 = vmul.f32 %v4014, %v4028
    %v4060 = vmul.f32 %v4021, %v4028
    %v4093 = vrot.slane %v4030, 6
    %v4094 = vrot.slane %v4031, 4
    %v4095 = vrot.slane %v4032, 2
    %v4096 = vrot.slane %v4034, 6
    %v4097 = vrot.slane %v4035, 4
    %v4098 = vrot.slane %v4036, 2
    %v4099 = vrot.slane %v4038, 6
    %v4100 = vrot.slane %v4039, 4
    %v4101 = vrot.slane %v4040, 2
    %v4102 = vrot.slane %v4042, 6
    %v4103 = vrot.slane %v4043, 4
    %v4104 = vrot.slane %v4044, 2
    %v4105 = vrot.slane %v4046, 6
    %v4106 = vrot.slane %v4047, 4
    %v4107 = vrot.slane %v4048, 2
    %v4108 = vrot.slane %v4050, 6
    %v4109 = vrot.slane %v4051, 4
    %v4110 = vrot.slane %v4052, 2
    %v4111 = vrot.slane %v4054, 6
    %v4112 = vrot.slane %v4055, 4
    %v4113 = vrot.slane %v4056, 2
    %v4114 = vrot.slane %v4058, 6
    %v4115 = vrot.slane %v4059, 4
    %v4116 = vrot.slane %v4060, 2
    %vm4117 = vcmask 1041408
    %v4118 = vsel %vm4117, %v4029, %v4093
    %vm4119 = vcmask 1045508
    %v4120 = vsel %vm4119, %v4094, %v4095
    %vm4121 = vcmask 1043456
    %v4122 = vsel %vm4121, %v4118, %v4120
    %v4123 = vsel %vm4117, %v4033, %v4096
    %v4124 = vsel %vm4119, %v4097, %v4098
    %v4125 = vsel %vm4121, %v4123, %v4124
    %v4126 = vsel %vm4117, %v4037, %v4099
    %v4127 = vsel %vm4119, %v4100, %v4101
    %v4128 = vsel %vm4121, %v4126, %v4127
    %v4129 = vsel %vm4117, %v4041, %v4102
    %v4130 = vsel %vm4119, %v4103, %v4104
    %v4131 = vsel %vm4121, %v4129, %v4130
    %v4132 = vsel %vm4117, %v4045, %v4105
    %v4133 = vsel %vm4119, %v4106, %v4107
    %v4134 = vsel %vm4121, %v4132, %v4133
    %v4135 = vsel %vm4117, %v4049, %v4108
    %v4136 = vsel %vm4119, %v4109, %v4110
    %v4137 = vsel %vm4121, %v4135, %v4136
    %v4138 = vsel %vm4117, %v4053, %v4111
    %v4139 = vsel %vm4119, %v4112, %v4113
    %v4140 = vsel %vm4121, %v4138, %v4139
    %v4141 = vsel %vm4117, %v4057, %v4114
    %v4142 = vsel %vm4119, %v4115, %v4116
    %v4143 = vsel %vm4121, %v4141, %v4142
    %vm4144 = vcmask 1044484
    %v4145 = vsel %vm4144, %v4122, %v4122
    %vm4146 = vcmask 1046534
    %v4147 = vsel %vm4146, %v4122, %v4145
    %v4148 = vrot.slane %v4134, 7
    %vm4149 = vcmask 1041409
    %v4150 = vsel %vm4149, %v4148, %v4147
    %vm4151 = vcmask 1043459
    %v4152 = vsel %vm4151, %v4148, %v4150
    %vm4153 = vcmask 1045509
    %v4154 = vsel %vm4153, %v4148, %v4152
    %vm4155 = vcmask 1047559
    %v4156 = vsel %vm4155, %v4148, %v4154
    %v4157 = vsel %vm4144, %v4125, %v4125
    %v4158 = vsel %vm4146, %v4125, %v4157
    %v4159 = vrot.slane %v4137, 7
    %v4160 = vsel %vm4149, %v4159, %v4158
    %v4161 = vsel %vm4151, %v4159, %v4160
    %v4162 = vsel %vm4153, %v4159, %v4161
    %v4163 = vsel %vm4155, %v4159, %v4162
    %v4164 = vsel %vm4144, %v4128, %v4128
    %v4165 = vsel %vm4146, %v4128, %v4164
    %v4166 = vrot.slane %v4140, 7
    %v4167 = vsel %vm4149, %v4166, %v4165
    %v4168 = vsel %vm4151, %v4166, %v4167
    %v4169 = vsel %vm4153, %v4166, %v4168
    %v4170 = vsel %vm4155, %v4166, %v4169
    %v4171 = vsel %vm4144, %v4131, %v4131
    %v4172 = vsel %vm4146, %v4131, %v4171
    %v4173 = vrot.slane %v4143, 7
    %v4174 = vsel %vm4149, %v4173, %v4172
    %v4175 = vsel %vm4151, %v4173, %v4174
    %v4176 = vsel %vm4153, %v4173, %v4175
    %v4177 = vsel %vm4155, %v4173, %v4176
    %4182 = vst [vmem:[#allocation7] sm:$0xff] %v4156
    %4183 = vst [vmem:[#allocation7 + $0x8] sm:$0xff] %v4163
    %4184 = vst [vmem:[#allocation7 + $0x10] sm:$0xff] %v4170
    %4185 = vst [vmem:[#allocation7 + $0x18] sm:$0xff] %v4177
    %v4186 = vpack.c.bf16 %v4029, %v4029
    %v4187 = vpack.c.bf16 %v4030, %v4030
    %v4188 = vpack.c.bf16 %v4031, %v4031
    %v4189 = vpack.c.bf16 %v4032, %v4032
    %v4190 = vpack.c.bf16 %v4033, %v4033
    %v4191 = vpack.c.bf16 %v4034, %v4034
    %v4192 = vpack.c.bf16 %v4035, %v4035
    %v4193 = vpack.c.bf16 %v4036, %v4036
    %v4194 = vpack.c.bf16 %v4037, %v4037
    %v4195 = vpack.c.bf16 %v4038, %v4038
    %v4196 = vpack.c.bf16 %v4039, %v4039
    %v4197 = vpack.c.bf16 %v4040, %v4040
    %v4198 = vpack.c.bf16 %v4041, %v4041
    %v4199 = vpack.c.bf16 %v4042, %v4042
    %v4200 = vpack.c.bf16 %v4043, %v4043
    %v4201 = vpack.c.bf16 %v4044, %v4044
    %v4202 = vpack.c.bf16 %v4045, %v4045
    %v4203 = vpack.c.bf16 %v4046, %v4046
    %v4204 = vpack.c.bf16 %v4047, %v4047
    %v4205 = vpack.c.bf16 %v4048, %v4048
    %v4206 = vpack.c.bf16 %v4049, %v4049
    %v4207 = vpack.c.bf16 %v4050, %v4050
    %v4208 = vpack.c.bf16 %v4051, %v4051
    %v4209 = vpack.c.bf16 %v4052, %v4052
    %v4210 = vpack.c.bf16 %v4053, %v4053
    %v4211 = vpack.c.bf16 %v4054, %v4054
    %v4212 = vpack.c.bf16 %v4055, %v4055
    %v4213 = vpack.c.bf16 %v4056, %v4056
    %v4214 = vpack.c.bf16 %v4057, %v4057
    %v4215 = vpack.c.bf16 %v4058, %v4058
    %v4216 = vpack.c.bf16 %v4059, %v4059
    %v4217 = vpack.c.bf16 %v4060, %v4060
    %v4218 = vld [vmem:[%s3] sm:$0xf]
    %v4219 = vld [vmem:[%s3 + $0x4] sm:$0xf]
    %v4220 = vld [vmem:[%s3 + $0x8] sm:$0xf]
    %v4221 = vld [vmem:[%s3 + $0xc] sm:$0xf]
    %v4222 = vld [vmem:[%s3 + $0x10] sm:$0xf]
    %v4223 = vld [vmem:[%s3 + $0x14] sm:$0xf]
    %v4224 = vld [vmem:[%s3 + $0x18] sm:$0xf]
    %v4225 = vld [vmem:[%s3 + $0x1c] sm:$0xf]
    %v4226 = vld [vmem:[%s3 + $0x20] sm:$0xf]
    %v4227 = vld [vmem:[%s3 + $0x24] sm:$0xf]
    %v4228 = vld [vmem:[%s3 + $0x28] sm:$0xf]
    %v4229 = vld [vmem:[%s3 + $0x2c] sm:$0xf]
    %v4230 = vld [vmem:[%s3 + $0x30] sm:$0xf]
    %v4231 = vld [vmem:[%s3 + $0x34] sm:$0xf]
    %v4232 = vld [vmem:[%s3 + $0x38] sm:$0xf]
    %v4233 = vld [vmem:[%s3 + $0x3c] sm:$0xf]
    %v4234 = vld [vmem:[%s3 + $0x40] sm:$0xf]
    %v4235 = vld [vmem:[%s3 + $0x44] sm:$0xf]
    %v4236 = vld [vmem:[%s3 + $0x48] sm:$0xf]
    %v4237 = vld [vmem:[%s3 + $0x4c] sm:$0xf]
    %v4238 = vld [vmem:[%s3 + $0x50] sm:$0xf]
    %v4239 = vld [vmem:[%s3 + $0x54] sm:$0xf]
    %v4240 = vld [vmem:[%s3 + $0x58] sm:$0xf]
    %v4241 = vld [vmem:[%s3 + $0x5c] sm:$0xf]
    %v4242 = vld [vmem:[%s3 + $0x60] sm:$0xf]
    %v4243 = vld [vmem:[%s3 + $0x64] sm:$0xf]
    %v4244 = vld [vmem:[%s3 + $0x68] sm:$0xf]
    %v4245 = vld [vmem:[%s3 + $0x6c] sm:$0xf]
    %v4246 = vld [vmem:[%s3 + $0x70] sm:$0xf]
    %v4247 = vld [vmem:[%s3 + $0x74] sm:$0xf]
    %v4248 = vld [vmem:[%s3 + $0x78] sm:$0xf]
    %v4249 = vld [vmem:[%s3 + $0x7c] sm:$0xf]
    %v4250 = vld [vmem:[%s3 + $0x80] sm:$0xf]
    %v4251 = vld [vmem:[%s3 + $0x84] sm:$0xf]
    %v4252 = vld [vmem:[%s3 + $0x88] sm:$0xf]
    %v4253 = vld [vmem:[%s3 + $0x8c] sm:$0xf]
    %v4254 = vld [vmem:[%s3 + $0x90] sm:$0xf]
    %v4255 = vld [vmem:[%s3 + $0x94] sm:$0xf]
    %v4256 = vld [vmem:[%s3 + $0x98] sm:$0xf]
    %v4257 = vld [vmem:[%s3 + $0x9c] sm:$0xf]
    %v4258 = vld [vmem:[%s3 + $0xa0] sm:$0xf]
    %v4259 = vld [vmem:[%s3 + $0xa4] sm:$0xf]
    %v4260 = vld [vmem:[%s3 + $0xa8] sm:$0xf]
    %v4261 = vld [vmem:[%s3 + $0xac] sm:$0xf]
    %v4262 = vld [vmem:[%s3 + $0xb0] sm:$0xf]
    %v4263 = vld [vmem:[%s3 + $0xb4] sm:$0xf]
    %v4264 = vld [vmem:[%s3 + $0xb8] sm:$0xf]
    %v4265 = vld [vmem:[%s3 + $0xbc] sm:$0xf]
    %v4266 = vld [vmem:[%s3 + $0xc0] sm:$0xf]
    %v4267 = vld [vmem:[%s3 + $0xc4] sm:$0xf]
    %v4268 = vld [vmem:[%s3 + $0xc8] sm:$0xf]
    %v4269 = vld [vmem:[%s3 + $0xcc] sm:$0xf]
    %v4270 = vld [vmem:[%s3 + $0xd0] sm:$0xf]
    %v4271 = vld [vmem:[%s3 + $0xd4] sm:$0xf]
    %v4272 = vld [vmem:[%s3 + $0xd8] sm:$0xf]
    %v4273 = vld [vmem:[%s3 + $0xdc] sm:$0xf]
    %v4274 = vld [vmem:[%s3 + $0xe0] sm:$0xf]
    %v4275 = vld [vmem:[%s3 + $0xe4] sm:$0xf]
    %v4276 = vld [vmem:[%s3 + $0xe8] sm:$0xf]
    %v4277 = vld [vmem:[%s3 + $0xec] sm:$0xf]
    %v4278 = vld [vmem:[%s3 + $0xf0] sm:$0xf]
    %v4279 = vld [vmem:[%s3 + $0xf4] sm:$0xf]
    %v4280 = vld [vmem:[%s3 + $0xf8] sm:$0xf]
    %v4281 = vld [vmem:[%s3 + $0xfc] sm:$0xf]
    %v4282 = vld [vmem:[%s3 + $0x100] sm:$0xf]
    %v4283 = vld [vmem:[%s3 + $0x104] sm:$0xf]
    %v4284 = vld [vmem:[%s3 + $0x108] sm:$0xf]
    %v4285 = vld [vmem:[%s3 + $0x10c] sm:$0xf]
    %v4286 = vld [vmem:[%s3 + $0x110] sm:$0xf]
    %v4287 = vld [vmem:[%s3 + $0x114] sm:$0xf]
    %v4288 = vld [vmem:[%s3 + $0x118] sm:$0xf]
    %v4289 = vld [vmem:[%s3 + $0x11c] sm:$0xf]
    %v4290 = vld [vmem:[%s3 + $0x120] sm:$0xf]
    %v4291 = vld [vmem:[%s3 + $0x124] sm:$0xf]
    %v4292 = vld [vmem:[%s3 + $0x128] sm:$0xf]
    %v4293 = vld [vmem:[%s3 + $0x12c] sm:$0xf]
    %v4294 = vld [vmem:[%s3 + $0x130] sm:$0xf]
    %v4295 = vld [vmem:[%s3 + $0x134] sm:$0xf]
    %v4296 = vld [vmem:[%s3 + $0x138] sm:$0xf]
    %v4297 = vld [vmem:[%s3 + $0x13c] sm:$0xf]
    %v4298 = vld [vmem:[%s3 + $0x140] sm:$0xf]
    %v4299 = vld [vmem:[%s3 + $0x144] sm:$0xf]
    %v4300 = vld [vmem:[%s3 + $0x148] sm:$0xf]
    %v4301 = vld [vmem:[%s3 + $0x14c] sm:$0xf]
    %v4302 = vld [vmem:[%s3 + $0x150] sm:$0xf]
    %v4303 = vld [vmem:[%s3 + $0x154] sm:$0xf]
    %v4304 = vld [vmem:[%s3 + $0x158] sm:$0xf]
    %v4305 = vld [vmem:[%s3 + $0x15c] sm:$0xf]
    %v4306 = vld [vmem:[%s3 + $0x160] sm:$0xf]
    %v4307 = vld [vmem:[%s3 + $0x164] sm:$0xf]
    %v4308 = vld [vmem:[%s3 + $0x168] sm:$0xf]
    %v4309 = vld [vmem:[%s3 + $0x16c] sm:$0xf]
    %v4310 = vld [vmem:[%s3 + $0x170] sm:$0xf]
    %v4311 = vld [vmem:[%s3 + $0x174] sm:$0xf]
    %v4312 = vld [vmem:[%s3 + $0x178] sm:$0xf]
    %v4313 = vld [vmem:[%s3 + $0x17c] sm:$0xf]
    %v4314 = vld [vmem:[%s3 + $0x180] sm:$0xf]
    %v4315 = vld [vmem:[%s3 + $0x184] sm:$0xf]
    %v4316 = vld [vmem:[%s3 + $0x188] sm:$0xf]
    %v4317 = vld [vmem:[%s3 + $0x18c] sm:$0xf]
    %v4318 = vld [vmem:[%s3 + $0x190] sm:$0xf]
    %v4319 = vld [vmem:[%s3 + $0x194] sm:$0xf]
    %v4320 = vld [vmem:[%s3 + $0x198] sm:$0xf]
    %v4321 = vld [vmem:[%s3 + $0x19c] sm:$0xf]
    %v4322 = vld [vmem:[%s3 + $0x1a0] sm:$0xf]
    %v4323 = vld [vmem:[%s3 + $0x1a4] sm:$0xf]
    %v4324 = vld [vmem:[%s3 + $0x1a8] sm:$0xf]
    %v4325 = vld [vmem:[%s3 + $0x1ac] sm:$0xf]
    %v4326 = vld [vmem:[%s3 + $0x1b0] sm:$0xf]
    %v4327 = vld [vmem:[%s3 + $0x1b4] sm:$0xf]
    %v4328 = vld [vmem:[%s3 + $0x1b8] sm:$0xf]
    %v4329 = vld [vmem:[%s3 + $0x1bc] sm:$0xf]
    %v4330 = vld [vmem:[%s3 + $0x1c0] sm:$0xf]
    %v4331 = vld [vmem:[%s3 + $0x1c4] sm:$0xf]
    %v4332 = vld [vmem:[%s3 + $0x1c8] sm:$0xf]
    %v4333 = vld [vmem:[%s3 + $0x1cc] sm:$0xf]
    %v4334 = vld [vmem:[%s3 + $0x1d0] sm:$0xf]
    %v4335 = vld [vmem:[%s3 + $0x1d4] sm:$0xf]
    %v4336 = vld [vmem:[%s3 + $0x1d8] sm:$0xf]
    %v4337 = vld [vmem:[%s3 + $0x1dc] sm:$0xf]
    %v4338 = vld [vmem:[%s3 + $0x1e0] sm:$0xf]
    %v4339 = vld [vmem:[%s3 + $0x1e4] sm:$0xf]
    %v4340 = vld [vmem:[%s3 + $0x1e8] sm:$0xf]
    %v4341 = vld [vmem:[%s3 + $0x1ec] sm:$0xf]
    %v4342 = vld [vmem:[%s3 + $0x1f0] sm:$0xf]
    %v4343 = vld [vmem:[%s3 + $0x1f4] sm:$0xf]
    %v4344 = vld [vmem:[%s3 + $0x1f8] sm:$0xf]
    %v4345 = vld [vmem:[%s3 + $0x1fc] sm:$0xf]
    %v4346 = vld [vmem:[%s3 + $0x200] sm:$0xf]
    %v4347 = vld [vmem:[%s3 + $0x204] sm:$0xf]
    %v4348 = vld [vmem:[%s3 + $0x208] sm:$0xf]
    %v4349 = vld [vmem:[%s3 + $0x20c] sm:$0xf]
    %v4350 = vld [vmem:[%s3 + $0x210] sm:$0xf]
    %v4351 = vld [vmem:[%s3 + $0x214] sm:$0xf]
    %v4352 = vld [vmem:[%s3 + $0x218] sm:$0xf]
    %v4353 = vld [vmem:[%s3 + $0x21c] sm:$0xf]
    %v4354 = vld [vmem:[%s3 + $0x220] sm:$0xf]
    %v4355 = vld [vmem:[%s3 + $0x224] sm:$0xf]
    %v4356 = vld [vmem:[%s3 + $0x228] sm:$0xf]
    %v4357 = vld [vmem:[%s3 + $0x22c] sm:$0xf]
    %v4358 = vld [vmem:[%s3 + $0x230] sm:$0xf]
    %v4359 = vld [vmem:[%s3 + $0x234] sm:$0xf]
    %v4360 = vld [vmem:[%s3 + $0x238] sm:$0xf]
    %v4361 = vld [vmem:[%s3 + $0x23c] sm:$0xf]
    %v4362 = vld [vmem:[%s3 + $0x240] sm:$0xf]
    %v4363 = vld [vmem:[%s3 + $0x244] sm:$0xf]
    %v4364 = vld [vmem:[%s3 + $0x248] sm:$0xf]
    %v4365 = vld [vmem:[%s3 + $0x24c] sm:$0xf]
    %v4366 = vld [vmem:[%s3 + $0x250] sm:$0xf]
    %v4367 = vld [vmem:[%s3 + $0x254] sm:$0xf]
    %v4368 = vld [vmem:[%s3 + $0x258] sm:$0xf]
    %v4369 = vld [vmem:[%s3 + $0x25c] sm:$0xf]
    %v4370 = vld [vmem:[%s3 + $0x260] sm:$0xf]
    %v4371 = vld [vmem:[%s3 + $0x264] sm:$0xf]
    %v4372 = vld [vmem:[%s3 + $0x268] sm:$0xf]
    %v4373 = vld [vmem:[%s3 + $0x26c] sm:$0xf]
    %v4374 = vld [vmem:[%s3 + $0x270] sm:$0xf]
    %v4375 = vld [vmem:[%s3 + $0x274] sm:$0xf]
    %v4376 = vld [vmem:[%s3 + $0x278] sm:$0xf]
    %v4377 = vld [vmem:[%s3 + $0x27c] sm:$0xf]
    %v4378 = vld [vmem:[%s3 + $0x280] sm:$0xf]
    %v4379 = vld [vmem:[%s3 + $0x284] sm:$0xf]
    %v4380 = vld [vmem:[%s3 + $0x288] sm:$0xf]
    %v4381 = vld [vmem:[%s3 + $0x28c] sm:$0xf]
    %v4382 = vld [vmem:[%s3 + $0x290] sm:$0xf]
    %v4383 = vld [vmem:[%s3 + $0x294] sm:$0xf]
    %v4384 = vld [vmem:[%s3 + $0x298] sm:$0xf]
    %v4385 = vld [vmem:[%s3 + $0x29c] sm:$0xf]
    %v4386 = vld [vmem:[%s3 + $0x2a0] sm:$0xf]
    %v4387 = vld [vmem:[%s3 + $0x2a4] sm:$0xf]
    %v4388 = vld [vmem:[%s3 + $0x2a8] sm:$0xf]
    %v4389 = vld [vmem:[%s3 + $0x2ac] sm:$0xf]
    %v4390 = vld [vmem:[%s3 + $0x2b0] sm:$0xf]
    %v4391 = vld [vmem:[%s3 + $0x2b4] sm:$0xf]
    %v4392 = vld [vmem:[%s3 + $0x2b8] sm:$0xf]
    %v4393 = vld [vmem:[%s3 + $0x2bc] sm:$0xf]
    %v4394 = vld [vmem:[%s3 + $0x2c0] sm:$0xf]
    %v4395 = vld [vmem:[%s3 + $0x2c4] sm:$0xf]
    %v4396 = vld [vmem:[%s3 + $0x2c8] sm:$0xf]
    %v4397 = vld [vmem:[%s3 + $0x2cc] sm:$0xf]
    %v4398 = vld [vmem:[%s3 + $0x2d0] sm:$0xf]
    %v4399 = vld [vmem:[%s3 + $0x2d4] sm:$0xf]
    %v4400 = vld [vmem:[%s3 + $0x2d8] sm:$0xf]
    %v4401 = vld [vmem:[%s3 + $0x2dc] sm:$0xf]
    %v4402 = vld [vmem:[%s3 + $0x2e0] sm:$0xf]
    %v4403 = vld [vmem:[%s3 + $0x2e4] sm:$0xf]
    %v4404 = vld [vmem:[%s3 + $0x2e8] sm:$0xf]
    %v4405 = vld [vmem:[%s3 + $0x2ec] sm:$0xf]
    %v4406 = vld [vmem:[%s3 + $0x2f0] sm:$0xf]
    %v4407 = vld [vmem:[%s3 + $0x2f4] sm:$0xf]
    %v4408 = vld [vmem:[%s3 + $0x2f8] sm:$0xf]
    %v4409 = vld [vmem:[%s3 + $0x2fc] sm:$0xf]
    %v4410 = vld [vmem:[%s3 + $0x300] sm:$0xf]
    %v4411 = vld [vmem:[%s3 + $0x304] sm:$0xf]
    %v4412 = vld [vmem:[%s3 + $0x308] sm:$0xf]
    %v4413 = vld [vmem:[%s3 + $0x30c] sm:$0xf]
    %v4414 = vld [vmem:[%s3 + $0x310] sm:$0xf]
    %v4415 = vld [vmem:[%s3 + $0x314] sm:$0xf]
    %v4416 = vld [vmem:[%s3 + $0x318] sm:$0xf]
    %v4417 = vld [vmem:[%s3 + $0x31c] sm:$0xf]
    %v4418 = vld [vmem:[%s3 + $0x320] sm:$0xf]
    %v4419 = vld [vmem:[%s3 + $0x324] sm:$0xf]
    %v4420 = vld [vmem:[%s3 + $0x328] sm:$0xf]
    %v4421 = vld [vmem:[%s3 + $0x32c] sm:$0xf]
    %v4422 = vld [vmem:[%s3 + $0x330] sm:$0xf]
    %v4423 = vld [vmem:[%s3 + $0x334] sm:$0xf]
    %v4424 = vld [vmem:[%s3 + $0x338] sm:$0xf]
    %v4425 = vld [vmem:[%s3 + $0x33c] sm:$0xf]
    %v4426 = vld [vmem:[%s3 + $0x340] sm:$0xf]
    %v4427 = vld [vmem:[%s3 + $0x344] sm:$0xf]
    %v4428 = vld [vmem:[%s3 + $0x348] sm:$0xf]
    %v4429 = vld [vmem:[%s3 + $0x34c] sm:$0xf]
    %v4430 = vld [vmem:[%s3 + $0x350] sm:$0xf]
    %v4431 = vld [vmem:[%s3 + $0x354] sm:$0xf]
    %v4432 = vld [vmem:[%s3 + $0x358] sm:$0xf]
    %v4433 = vld [vmem:[%s3 + $0x35c] sm:$0xf]
    %v4434 = vld [vmem:[%s3 + $0x360] sm:$0xf]
    %v4435 = vld [vmem:[%s3 + $0x364] sm:$0xf]
    %v4436 = vld [vmem:[%s3 + $0x368] sm:$0xf]
    %v4437 = vld [vmem:[%s3 + $0x36c] sm:$0xf]
    %v4438 = vld [vmem:[%s3 + $0x370] sm:$0xf]
    %v4439 = vld [vmem:[%s3 + $0x374] sm:$0xf]
    %v4440 = vld [vmem:[%s3 + $0x378] sm:$0xf]
    %v4441 = vld [vmem:[%s3 + $0x37c] sm:$0xf]
    %v4442 = vld [vmem:[%s3 + $0x380] sm:$0xf]
    %v4443 = vld [vmem:[%s3 + $0x384] sm:$0xf]
    %v4444 = vld [vmem:[%s3 + $0x388] sm:$0xf]
    %v4445 = vld [vmem:[%s3 + $0x38c] sm:$0xf]
    %v4446 = vld [vmem:[%s3 + $0x390] sm:$0xf]
    %v4447 = vld [vmem:[%s3 + $0x394] sm:$0xf]
    %v4448 = vld [vmem:[%s3 + $0x398] sm:$0xf]
    %v4449 = vld [vmem:[%s3 + $0x39c] sm:$0xf]
    %v4450 = vld [vmem:[%s3 + $0x3a0] sm:$0xf]
    %v4451 = vld [vmem:[%s3 + $0x3a4] sm:$0xf]
    %v4452 = vld [vmem:[%s3 + $0x3a8] sm:$0xf]
    %v4453 = vld [vmem:[%s3 + $0x3ac] sm:$0xf]
    %v4454 = vld [vmem:[%s3 + $0x3b0] sm:$0xf]
    %v4455 = vld [vmem:[%s3 + $0x3b4] sm:$0xf]
    %v4456 = vld [vmem:[%s3 + $0x3b8] sm:$0xf]
    %v4457 = vld [vmem:[%s3 + $0x3bc] sm:$0xf]
    %v4458 = vld [vmem:[%s3 + $0x3c0] sm:$0xf]
    %v4459 = vld [vmem:[%s3 + $0x3c4] sm:$0xf]
    %v4460 = vld [vmem:[%s3 + $0x3c8] sm:$0xf]
    %v4461 = vld [vmem:[%s3 + $0x3cc] sm:$0xf]
    %v4462 = vld [vmem:[%s3 + $0x3d0] sm:$0xf]
    %v4463 = vld [vmem:[%s3 + $0x3d4] sm:$0xf]
    %v4464 = vld [vmem:[%s3 + $0x3d8] sm:$0xf]
    %v4465 = vld [vmem:[%s3 + $0x3dc] sm:$0xf]
    %v4466 = vld [vmem:[%s3 + $0x3e0] sm:$0xf]
    %v4467 = vld [vmem:[%s3 + $0x3e4] sm:$0xf]
    %v4468 = vld [vmem:[%s3 + $0x3e8] sm:$0xf]
    %v4469 = vld [vmem:[%s3 + $0x3ec] sm:$0xf]
    %v4470 = vld [vmem:[%s3 + $0x3f0] sm:$0xf]
    %v4471 = vld [vmem:[%s3 + $0x3f4] sm:$0xf]
    %v4472 = vld [vmem:[%s3 + $0x3f8] sm:$0xf]
    %v4473 = vld [vmem:[%s3 + $0x3fc] sm:$0xf]
    %v4474 = vld [vmem:[%s4] sm:$0x1]
    %v4476 = vperm.slane %v4474, 0
    %v4510 = vunpack.c.l.b16 %v4186
    %v4511 = vunpack.c.l.b16 %v4187
    %v4512 = vunpack.c.l.b16 %v4188
    %v4513 = vunpack.c.l.b16 %v4189
    %v4514 = vunpack.c.l.b16 %v4190
    %v4515 = vunpack.c.l.b16 %v4191
    %v4516 = vunpack.c.l.b16 %v4192
    %v4517 = vunpack.c.l.b16 %v4193
    %v4518 = vunpack.c.l.b16 %v4194
    %v4519 = vunpack.c.l.b16 %v4195
    %v4520 = vunpack.c.l.b16 %v4196
    %v4521 = vunpack.c.l.b16 %v4197
    %v4522 = vunpack.c.l.b16 %v4198
    %v4523 = vunpack.c.l.b16 %v4199
    %v4524 = vunpack.c.l.b16 %v4200
    %v4525 = vunpack.c.l.b16 %v4201
    %v4526 = vunpack.c.l.b16 %v4202
    %v4527 = vunpack.c.l.b16 %v4203
    %v4528 = vunpack.c.l.b16 %v4204
    %v4529 = vunpack.c.l.b16 %v4205
    %v4530 = vunpack.c.l.b16 %v4206
    %v4531 = vunpack.c.l.b16 %v4207
    %v4532 = vunpack.c.l.b16 %v4208
    %v4533 = vunpack.c.l.b16 %v4209
    %v4534 = vunpack.c.l.b16 %v4210
    %v4535 = vunpack.c.l.b16 %v4211
    %v4536 = vunpack.c.l.b16 %v4212
    %v4537 = vunpack.c.l.b16 %v4213
    %v4538 = vunpack.c.l.b16 %v4214
    %v4539 = vunpack.c.l.b16 %v4215
    %v4540 = vunpack.c.l.b16 %v4216
    %v4541 = vunpack.c.l.b16 %v4217
    %v4542 = vsel %vm4149, %v4526, %v4510
    %v4543 = vsel %vm4149, %v4527, %v4511
    %v4544 = vsel %vm4149, %v4528, %v4512
    %v4545 = vsel %vm4149, %v4529, %v4513
    %v4546 = vsel %vm4149, %v4530, %v4514
    %v4547 = vsel %vm4149, %v4531, %v4515
    %v4548 = vsel %vm4149, %v4532, %v4516
    %v4549 = vsel %vm4149, %v4533, %v4517
    %v4550 = vsel %vm4149, %v4534, %v4518
    %v4551 = vsel %vm4149, %v4535, %v4519
    %v4552 = vsel %vm4149, %v4536, %v4520
    %v4553 = vsel %vm4149, %v4537, %v4521
    %v4554 = vsel %vm4149, %v4538, %v4522
    %v4555 = vsel %vm4149, %v4539, %v4523
    %v4556 = vsel %vm4149, %v4540, %v4524
    %v4557 = vsel %vm4149, %v4541, %v4525
    %v4558 = vpack.c.b16 %v4542, %v4542
    %v4559 = vpack.c.b16 %v4543, %v4543
    %v4560 = vpack.c.b16 %v4544, %v4544
    %v4561 = vpack.c.b16 %v4545, %v4545
    %v4562 = vpack.c.b16 %v4546, %v4546
    %v4563 = vpack.c.b16 %v4547, %v4547
    %v4564 = vpack.c.b16 %v4548, %v4548
    %v4565 = vpack.c.b16 %v4549, %v4549
    %v4566 = vpack.c.b16 %v4550, %v4550
    %v4567 = vpack.c.b16 %v4551, %v4551
    %v4568 = vpack.c.b16 %v4552, %v4552
    %v4569 = vpack.c.b16 %v4553, %v4553
    %v4570 = vpack.c.b16 %v4554, %v4554
    %v4571 = vpack.c.b16 %v4555, %v4555
    %v4572 = vpack.c.b16 %v4556, %v4556
    %v4573 = vpack.c.b16 %v4557, %v4557
    %v4846 = vunpack.c.l.b16 %v4218
    %v4847 = vunpack.c.l.b16 %v4219
    %v4848 = vunpack.c.l.b16 %v4220
    %v4849 = vunpack.c.l.b16 %v4221
    %v4850 = vunpack.c.l.b16 %v4222
    %v4851 = vunpack.c.l.b16 %v4223
    %v4852 = vunpack.c.l.b16 %v4224
    %v4853 = vunpack.c.l.b16 %v4225
    %v4854 = vunpack.c.l.b16 %v4226
    %v4855 = vunpack.c.l.b16 %v4227
    %v4856 = vunpack.c.l.b16 %v4228
    %v4857 = vunpack.c.l.b16 %v4229
    %v4858 = vunpack.c.l.b16 %v4230
    %v4859 = vunpack.c.l.b16 %v4231
    %v4860 = vunpack.c.l.b16 %v4232
    %v4861 = vunpack.c.l.b16 %v4233
    %v4862 = vunpack.c.l.b16 %v4234
    %v4863 = vunpack.c.l.b16 %v4235
    %v4864 = vunpack.c.l.b16 %v4236
    %v4865 = vunpack.c.l.b16 %v4237
    %v4866 = vunpack.c.l.b16 %v4238
    %v4867 = vunpack.c.l.b16 %v4239
    %v4868 = vunpack.c.l.b16 %v4240
    %v4869 = vunpack.c.l.b16 %v4241
    %v4870 = vunpack.c.l.b16 %v4242
    %v4871 = vunpack.c.l.b16 %v4243
    %v4872 = vunpack.c.l.b16 %v4244
    %v4873 = vunpack.c.l.b16 %v4245
    %v4874 = vunpack.c.l.b16 %v4246
    %v4875 = vunpack.c.l.b16 %v4247
    %v4876 = vunpack.c.l.b16 %v4248
    %v4877 = vunpack.c.l.b16 %v4249
    %v4878 = vunpack.c.l.b16 %v4250
    %v4879 = vunpack.c.l.b16 %v4251
    %v4880 = vunpack.c.l.b16 %v4252
    %v4881 = vunpack.c.l.b16 %v4253
    %v4882 = vunpack.c.l.b16 %v4254
    %v4883 = vunpack.c.l.b16 %v4255
    %v4884 = vunpack.c.l.b16 %v4256
    %v4885 = vunpack.c.l.b16 %v4257
    %v4886 = vunpack.c.l.b16 %v4258
    %v4887 = vunpack.c.l.b16 %v4259
    %v4888 = vunpack.c.l.b16 %v4260
    %v4889 = vunpack.c.l.b16 %v4261
    %v4890 = vunpack.c.l.b16 %v4262
    %v4891 = vunpack.c.l.b16 %v4263
    %v4892 = vunpack.c.l.b16 %v4264
    %v4893 = vunpack.c.l.b16 %v4265
    %v4894 = vunpack.c.l.b16 %v4266
    %v4895 = vunpack.c.l.b16 %v4267
    %v4896 = vunpack.c.l.b16 %v4268
    %v4897 = vunpack.c.l.b16 %v4269
    %v4898 = vunpack.c.l.b16 %v4270
    %v4899 = vunpack.c.l.b16 %v4271
    %v4900 = vunpack.c.l.b16 %v4272
    %v4901 = vunpack.c.l.b16 %v4273
    %v4902 = vunpack.c.l.b16 %v4274
    %v4903 = vunpack.c.l.b16 %v4275
    %v4904 = vunpack.c.l.b16 %v4276
    %v4905 = vunpack.c.l.b16 %v4277
    %v4906 = vunpack.c.l.b16 %v4278
    %v4907 = vunpack.c.l.b16 %v4279
    %v4908 = vunpack.c.l.b16 %v4280
    %v4909 = vunpack.c.l.b16 %v4281
    %v4910 = vunpack.c.l.b16 %v4282
    %v4911 = vunpack.c.l.b16 %v4283
    %v4912 = vunpack.c.l.b16 %v4284
    %v4913 = vunpack.c.l.b16 %v4285
    %v4914 = vunpack.c.l.b16 %v4286
    %v4915 = vunpack.c.l.b16 %v4287
    %v4916 = vunpack.c.l.b16 %v4288
    %v4917 = vunpack.c.l.b16 %v4289
    %v4918 = vunpack.c.l.b16 %v4290
    %v4919 = vunpack.c.l.b16 %v4291
    %v4920 = vunpack.c.l.b16 %v4292
    %v4921 = vunpack.c.l.b16 %v4293
    %v4922 = vunpack.c.l.b16 %v4294
    %v4923 = vunpack.c.l.b16 %v4295
    %v4924 = vunpack.c.l.b16 %v4296
    %v4925 = vunpack.c.l.b16 %v4297
    %v4926 = vunpack.c.l.b16 %v4298
    %v4927 = vunpack.c.l.b16 %v4299
    %v4928 = vunpack.c.l.b16 %v4300
    %v4929 = vunpack.c.l.b16 %v4301
    %v4930 = vunpack.c.l.b16 %v4302
    %v4931 = vunpack.c.l.b16 %v4303
    %v4932 = vunpack.c.l.b16 %v4304
    %v4933 = vunpack.c.l.b16 %v4305
    %v4934 = vunpack.c.l.b16 %v4306
    %v4935 = vunpack.c.l.b16 %v4307
    %v4936 = vunpack.c.l.b16 %v4308
    %v4937 = vunpack.c.l.b16 %v4309
    %v4938 = vunpack.c.l.b16 %v4310
    %v4939 = vunpack.c.l.b16 %v4311
    %v4940 = vunpack.c.l.b16 %v4312
    %v4941 = vunpack.c.l.b16 %v4313
    %v4942 = vunpack.c.l.b16 %v4314
    %v4943 = vunpack.c.l.b16 %v4315
    %v4944 = vunpack.c.l.b16 %v4316
    %v4945 = vunpack.c.l.b16 %v4317
    %v4946 = vunpack.c.l.b16 %v4318
    %v4947 = vunpack.c.l.b16 %v4319
    %v4948 = vunpack.c.l.b16 %v4320
    %v4949 = vunpack.c.l.b16 %v4321
    %v4950 = vunpack.c.l.b16 %v4322
    %v4951 = vunpack.c.l.b16 %v4323
    %v4952 = vunpack.c.l.b16 %v4324
    %v4953 = vunpack.c.l.b16 %v4325
    %v4954 = vunpack.c.l.b16 %v4326
    %v4955 = vunpack.c.l.b16 %v4327
    %v4956 = vunpack.c.l.b16 %v4328
    %v4957 = vunpack.c.l.b16 %v4329
    %v4958 = vunpack.c.l.b16 %v4330
    %v4959 = vunpack.c.l.b16 %v4331
    %v4960 = vunpack.c.l.b16 %v4332
    %v4961 = vunpack.c.l.b16 %v4333
    %v4962 = vunpack.c.l.b16 %v4334
    %v4963 = vunpack.c.l.b16 %v4335
    %v4964 = vunpack.c.l.b16 %v4336
    %v4965 = vunpack.c.l.b16 %v4337
    %v4966 = vunpack.c.l.b16 %v4338
    %v4967 = vunpack.c.l.b16 %v4339
    %v4968 = vunpack.c.l.b16 %v4340
    %v4969 = vunpack.c.l.b16 %v4341
    %v4970 = vunpack.c.l.b16 %v4342
    %v4971 = vunpack.c.l.b16 %v4343
    %v4972 = vunpack.c.l.b16 %v4344
    %v4973 = vunpack.c.l.b16 %v4345
    %v4974 = vunpack.c.l.b16 %v4346
    %v4975 = vunpack.c.l.b16 %v4347
    %v4976 = vunpack.c.l.b16 %v4348
    %v4977 = vunpack.c.l.b16 %v4349
    %v4978 = vunpack.c.l.b16 %v4350
    %v4979 = vunpack.c.l.b16 %v4351
    %v4980 = vunpack.c.l.b16 %v4352
    %v4981 = vunpack.c.l.b16 %v4353
    %v4982 = vunpack.c.l.b16 %v4354
    %v4983 = vunpack.c.l.b16 %v4355
    %v4984 = vunpack.c.l.b16 %v4356
    %v4985 = vunpack.c.l.b16 %v4357
    %v4986 = vunpack.c.l.b16 %v4358
    %v4987 = vunpack.c.l.b16 %v4359
    %v4988 = vunpack.c.l.b16 %v4360
    %v4989 = vunpack.c.l.b16 %v4361
    %v4990 = vunpack.c.l.b16 %v4362
    %v4991 = vunpack.c.l.b16 %v4363
    %v4992 = vunpack.c.l.b16 %v4364
    %v4993 = vunpack.c.l.b16 %v4365
    %v4994 = vunpack.c.l.b16 %v4366
    %v4995 = vunpack.c.l.b16 %v4367
    %v4996 = vunpack.c.l.b16 %v4368
    %v4997 = vunpack.c.l.b16 %v4369
    %v4998 = vunpack.c.l.b16 %v4370
    %v4999 = vunpack.c.l.b16 %v4371
    %v5000 = vunpack.c.l.b16 %v4372
    %v5001 = vunpack.c.l.b16 %v4373
    %v5002 = vunpack.c.l.b16 %v4374
    %v5003 = vunpack.c.l.b16 %v4375
    %v5004 = vunpack.c.l.b16 %v4376
    %v5005 = vunpack.c.l.b16 %v4377
    %v5006 = vunpack.c.l.b16 %v4378
    %v5007 = vunpack.c.l.b16 %v4379
    %v5008 = vunpack.c.l.b16 %v4380
    %v5009 = vunpack.c.l.b16 %v4381
    %v5010 = vunpack.c.l.b16 %v4382
    %v5011 = vunpack.c.l.b16 %v4383
    %v5012 = vunpack.c.l.b16 %v4384
    %v5013 = vunpack.c.l.b16 %v4385
    %v5014 = vunpack.c.l.b16 %v4386
    %v5015 = vunpack.c.l.b16 %v4387
    %v5016 = vunpack.c.l.b16 %v4388
    %v5017 = vunpack.c.l.b16 %v4389
    %v5018 = vunpack.c.l.b16 %v4390
    %v5019 = vunpack.c.l.b16 %v4391
    %v5020 = vunpack.c.l.b16 %v4392
    %v5021 = vunpack.c.l.b16 %v4393
    %v5022 = vunpack.c.l.b16 %v4394
    %v5023 = vunpack.c.l.b16 %v4395
    %v5024 = vunpack.c.l.b16 %v4396
    %v5025 = vunpack.c.l.b16 %v4397
    %v5026 = vunpack.c.l.b16 %v4398
    %v5027 = vunpack.c.l.b16 %v4399
    %v5028 = vunpack.c.l.b16 %v4400
    %v5029 = vunpack.c.l.b16 %v4401
    %v5030 = vunpack.c.l.b16 %v4402
    %v5031 = vunpack.c.l.b16 %v4403
    %v5032 = vunpack.c.l.b16 %v4404
    %v5033 = vunpack.c.l.b16 %v4405
    %v5034 = vunpack.c.l.b16 %v4406
    %v5035 = vunpack.c.l.b16 %v4407
    %v5036 = vunpack.c.l.b16 %v4408
    %v5037 = vunpack.c.l.b16 %v4409
    %v5038 = vunpack.c.l.b16 %v4410
    %v5039 = vunpack.c.l.b16 %v4411
    %v5040 = vunpack.c.l.b16 %v4412
    %v5041 = vunpack.c.l.b16 %v4413
    %v5042 = vunpack.c.l.b16 %v4414
    %v5043 = vunpack.c.l.b16 %v4415
    %v5044 = vunpack.c.l.b16 %v4416
    %v5045 = vunpack.c.l.b16 %v4417
    %v5046 = vunpack.c.l.b16 %v4418
    %v5047 = vunpack.c.l.b16 %v4419
    %v5048 = vunpack.c.l.b16 %v4420
    %v5049 = vunpack.c.l.b16 %v4421
    %v5050 = vunpack.c.l.b16 %v4422
    %v5051 = vunpack.c.l.b16 %v4423
    %v5052 = vunpack.c.l.b16 %v4424
    %v5053 = vunpack.c.l.b16 %v4425
    %v5054 = vunpack.c.l.b16 %v4426
    %v5055 = vunpack.c.l.b16 %v4427
    %v5056 = vunpack.c.l.b16 %v4428
    %v5057 = vunpack.c.l.b16 %v4429
    %v5058 = vunpack.c.l.b16 %v4430
    %v5059 = vunpack.c.l.b16 %v4431
    %v5060 = vunpack.c.l.b16 %v4432
    %v5061 = vunpack.c.l.b16 %v4433
    %v5062 = vunpack.c.l.b16 %v4434
    %v5063 = vunpack.c.l.b16 %v4435
    %v5064 = vunpack.c.l.b16 %v4436
    %v5065 = vunpack.c.l.b16 %v4437
    %v5066 = vunpack.c.l.b16 %v4438
    %v5067 = vunpack.c.l.b16 %v4439
    %v5068 = vunpack.c.l.b16 %v4440
    %v5069 = vunpack.c.l.b16 %v4441
    %v5070 = vunpack.c.l.b16 %v4442
    %v5071 = vunpack.c.l.b16 %v4443
    %v5072 = vunpack.c.l.b16 %v4444
    %v5073 = vunpack.c.l.b16 %v4445
    %v5074 = vunpack.c.l.b16 %v4446
    %v5075 = vunpack.c.l.b16 %v4447
    %v5076 = vunpack.c.l.b16 %v4448
    %v5077 = vunpack.c.l.b16 %v4449
    %v5078 = vunpack.c.l.b16 %v4450
    %v5079 = vunpack.c.l.b16 %v4451
    %v5080 = vunpack.c.l.b16 %v4452
    %v5081 = vunpack.c.l.b16 %v4453
    %v5082 = vunpack.c.l.b16 %v4454
    %v5083 = vunpack.c.l.b16 %v4455
    %v5084 = vunpack.c.l.b16 %v4456
    %v5085 = vunpack.c.l.b16 %v4457
    %v5086 = vunpack.c.l.b16 %v4458
    %v5087 = vunpack.c.l.b16 %v4459
    %v5088 = vunpack.c.l.b16 %v4460
    %v5089 = vunpack.c.l.b16 %v4461
    %v5090 = vunpack.c.l.b16 %v4462
    %v5091 = vunpack.c.l.b16 %v4463
    %v5092 = vunpack.c.l.b16 %v4464
    %v5093 = vunpack.c.l.b16 %v4465
    %v5094 = vunpack.c.l.b16 %v4466
    %v5095 = vunpack.c.l.b16 %v4467
    %v5096 = vunpack.c.l.b16 %v4468
    %v5097 = vunpack.c.l.b16 %v4469
    %v5098 = vunpack.c.l.b16 %v4470
    %v5099 = vunpack.c.l.b16 %v4471
    %v5100 = vunpack.c.l.b16 %v4472
    %v5101 = vunpack.c.l.b16 %v4473
    %v5102 = vpack.c.b16 %v4847, %v4846
    %v5103 = vpack.c.b16 %v4849, %v4848
    %v5104 = vpack.c.b16 %v4851, %v4850
    %v5105 = vpack.c.b16 %v4853, %v4852
    %v5106 = vpack.c.b16 %v4855, %v4854
    %v5107 = vpack.c.b16 %v4857, %v4856
    %v5108 = vpack.c.b16 %v4859, %v4858
    %v5109 = vpack.c.b16 %v4861, %v4860
    %v5110 = vpack.c.b16 %v4863, %v4862
    %v5111 = vpack.c.b16 %v4865, %v4864
    %v5112 = vpack.c.b16 %v4867, %v4866
    %v5113 = vpack.c.b16 %v4869, %v4868
    %v5114 = vpack.c.b16 %v4871, %v4870
    %v5115 = vpack.c.b16 %v4873, %v4872
    %v5116 = vpack.c.b16 %v4875, %v4874
    %v5117 = vpack.c.b16 %v4877, %v4876
    %v5118 = vpack.c.b16 %v4879, %v4878
    %v5119 = vpack.c.b16 %v4881, %v4880
    %v5120 = vpack.c.b16 %v4883, %v4882
    %v5121 = vpack.c.b16 %v4885, %v4884
    %v5122 = vpack.c.b16 %v4887, %v4886
    %v5123 = vpack.c.b16 %v4889, %v4888
    %v5124 = vpack.c.b16 %v4891, %v4890
    %v5125 = vpack.c.b16 %v4893, %v4892
    %v5126 = vpack.c.b16 %v4895, %v4894
    %v5127 = vpack.c.b16 %v4897, %v4896
    %v5128 = vpack.c.b16 %v4899, %v4898
    %v5129 = vpack.c.b16 %v4901, %v4900
    %v5130 = vpack.c.b16 %v4903, %v4902
    %v5131 = vpack.c.b16 %v4905, %v4904
    %v5132 = vpack.c.b16 %v4907, %v4906
    %v5133 = vpack.c.b16 %v4909, %v4908
    %v5134 = vpack.c.b16 %v4911, %v4910
    %v5135 = vpack.c.b16 %v4913, %v4912
    %v5136 = vpack.c.b16 %v4915, %v4914
    %v5137 = vpack.c.b16 %v4917, %v4916
    %v5138 = vpack.c.b16 %v4919, %v4918
    %v5139 = vpack.c.b16 %v4921, %v4920
    %v5140 = vpack.c.b16 %v4923, %v4922
    %v5141 = vpack.c.b16 %v4925, %v4924
    %v5142 = vpack.c.b16 %v4927, %v4926
    %v5143 = vpack.c.b16 %v4929, %v4928
    %v5144 = vpack.c.b16 %v4931, %v4930
    %v5145 = vpack.c.b16 %v4933, %v4932
    %v5146 = vpack.c.b16 %v4935, %v4934
    %v5147 = vpack.c.b16 %v4937, %v4936
    %v5148 = vpack.c.b16 %v4939, %v4938
    %v5149 = vpack.c.b16 %v4941, %v4940
    %v5150 = vpack.c.b16 %v4943, %v4942
    %v5151 = vpack.c.b16 %v4945, %v4944
    %v5152 = vpack.c.b16 %v4947, %v4946
    %v5153 = vpack.c.b16 %v4949, %v4948
    %v5154 = vpack.c.b16 %v4951, %v4950
    %v5155 = vpack.c.b16 %v4953, %v4952
    %v5156 = vpack.c.b16 %v4955, %v4954
    %v5157 = vpack.c.b16 %v4957, %v4956
    %v5158 = vpack.c.b16 %v4959, %v4958
    %v5159 = vpack.c.b16 %v4961, %v4960
    %v5160 = vpack.c.b16 %v4963, %v4962
    %v5161 = vpack.c.b16 %v4965, %v4964
    %v5162 = vpack.c.b16 %v4967, %v4966
    %v5163 = vpack.c.b16 %v4969, %v4968
    %v5164 = vpack.c.b16 %v4971, %v4970
    %v5165 = vpack.c.b16 %v4973, %v4972
    %v5166 = vpack.c.b16 %v4975, %v4974
    %v5167 = vpack.c.b16 %v4977, %v4976
    %v5168 = vpack.c.b16 %v4979, %v4978
    %v5169 = vpack.c.b16 %v4981, %v4980
    %v5170 = vpack.c.b16 %v4983, %v4982
    %v5171 = vpack.c.b16 %v4985, %v4984
    %v5172 = vpack.c.b16 %v4987, %v4986
    %v5173 = vpack.c.b16 %v4989, %v4988
    %v5174 = vpack.c.b16 %v4991, %v4990
    %v5175 = vpack.c.b16 %v4993, %v4992
    %v5176 = vpack.c.b16 %v4995, %v4994
    %v5177 = vpack.c.b16 %v4997, %v4996
    %v5178 = vpack.c.b16 %v4999, %v4998
    %v5179 = vpack.c.b16 %v5001, %v5000
    %v5180 = vpack.c.b16 %v5003, %v5002
    %v5181 = vpack.c.b16 %v5005, %v5004
    %v5182 = vpack.c.b16 %v5007, %v5006
    %v5183 = vpack.c.b16 %v5009, %v5008
    %v5184 = vpack.c.b16 %v5011, %v5010
    %v5185 = vpack.c.b16 %v5013, %v5012
    %v5186 = vpack.c.b16 %v5015, %v5014
    %v5187 = vpack.c.b16 %v5017, %v5016
    %v5188 = vpack.c.b16 %v5019, %v5018
    %v5189 = vpack.c.b16 %v5021, %v5020
    %v5190 = vpack.c.b16 %v5023, %v5022
    %v5191 = vpack.c.b16 %v5025, %v5024
    %v5192 = vpack.c.b16 %v5027, %v5026
    %v5193 = vpack.c.b16 %v5029, %v5028
    %v5194 = vpack.c.b16 %v5031, %v5030
    %v5195 = vpack.c.b16 %v5033, %v5032
    %v5196 = vpack.c.b16 %v5035, %v5034
    %v5197 = vpack.c.b16 %v5037, %v5036
    %v5198 = vpack.c.b16 %v5039, %v5038
    %v5199 = vpack.c.b16 %v5041, %v5040
    %v5200 = vpack.c.b16 %v5043, %v5042
    %v5201 = vpack.c.b16 %v5045, %v5044
    %v5202 = vpack.c.b16 %v5047, %v5046
    %v5203 = vpack.c.b16 %v5049, %v5048
    %v5204 = vpack.c.b16 %v5051, %v5050
    %v5205 = vpack.c.b16 %v5053, %v5052
    %v5206 = vpack.c.b16 %v5055, %v5054
    %v5207 = vpack.c.b16 %v5057, %v5056
    %v5208 = vpack.c.b16 %v5059, %v5058
    %v5209 = vpack.c.b16 %v5061, %v5060
    %v5210 = vpack.c.b16 %v5063, %v5062
    %v5211 = vpack.c.b16 %v5065, %v5064
    %v5212 = vpack.c.b16 %v5067, %v5066
    %v5213 = vpack.c.b16 %v5069, %v5068
    %v5214 = vpack.c.b16 %v5071, %v5070
    %v5215 = vpack.c.b16 %v5073, %v5072
    %v5216 = vpack.c.b16 %v5075, %v5074
    %v5217 = vpack.c.b16 %v5077, %v5076
    %v5218 = vpack.c.b16 %v5079, %v5078
    %v5219 = vpack.c.b16 %v5081, %v5080
    %v5220 = vpack.c.b16 %v5083, %v5082
    %v5221 = vpack.c.b16 %v5085, %v5084
    %v5222 = vpack.c.b16 %v5087, %v5086
    %v5223 = vpack.c.b16 %v5089, %v5088
    %v5224 = vpack.c.b16 %v5091, %v5090
    %v5225 = vpack.c.b16 %v5093, %v5092
    %v5226 = vpack.c.b16 %v5095, %v5094
    %v5227 = vpack.c.b16 %v5097, %v5096
    %v5228 = vpack.c.b16 %v5099, %v5098
    %v5229 = vpack.c.b16 %v5101, %v5100
    %5358 = vmatpush.bf16.msra.mxu0 %v5109
    %5359 = vmatpush.bf16.msra.mxu0 %v5108
    %5360 = vmatpush.bf16.msra.mxu0 %v5107
    %5361 = vmatpush.bf16.msra.mxu0 %v5106
    %5362 = vmatpush.bf16.msra.mxu0 %v5105
    %5363 = vmatpush.bf16.msra.mxu0 %v5104
    %5364 = vmatpush.bf16.msra.mxu0 %v5103
    %5365 = vmatpush.bf16.msra.mxu0 %v5102
    %5366 = vmatmul.bf16.gmra.mxu0 %v4558
    %v5367 = vpop.f32.mrf.mxu0
    %v5368 = vadd.f32 %v4476, %v5367
    %v5369 = vpop.f32.mrf.mxu0
    %5370 = vdwg.mxu0
    %5371 = vmatpush.bf16.msra.mxu0 %v5117
    %5372 = vmatpush.bf16.msra.mxu0 %v5116
    %5373 = vmatpush.bf16.msra.mxu0 %v5115
    %5374 = vmatpush.bf16.msra.mxu0 %v5114
    %5375 = vmatpush.bf16.msra.mxu0 %v5113
    %5376 = vmatpush.bf16.msra.mxu0 %v5112
    %5377 = vmatpush.bf16.msra.mxu0 %v5111
    %5378 = vmatpush.bf16.msra.mxu0 %v5110
    %5379 = vmatmul.bf16.gmra.mxu0 %v4559
    %v5380 = vpop.f32.mrf.mxu0
    %v5381 = vadd.f32 %v5368, %v5380
    %v5382 = vpop.f32.mrf.mxu0
    %5383 = vdwg.mxu0
    %5384 = vmatpush.bf16.msra.mxu0 %v5125
    %5385 = vmatpush.bf16.msra.mxu0 %v5124
    %5386 = vmatpush.bf16.msra.mxu0 %v5123
    %5387 = vmatpush.bf16.msra.mxu0 %v5122
    %5388 = vmatpush.bf16.msra.mxu0 %v5121
    %5389 = vmatpush.bf16.msra.mxu0 %v5120
    %5390 = vmatpush.bf16.msra.mxu0 %v5119
    %5391 = vmatpush.bf16.msra.mxu0 %v5118
    %5392 = vmatmul.bf16.gmra.mxu0 %v4560
    %v5393 = vpop.f32.mrf.mxu0
    %v5394 = vadd.f32 %v5381, %v5393
    %v5395 = vpop.f32.mrf.mxu0
    %5396 = vdwg.mxu0
    %5397 = vmatpush.bf16.msra.mxu0 %v5133
    %5398 = vmatpush.bf16.msra.mxu0 %v5132
    %5399 = vmatpush.bf16.msra.mxu0 %v5131
    %5400 = vmatpush.bf16.msra.mxu0 %v5130
    %5401 = vmatpush.bf16.msra.mxu0 %v5129
    %5402 = vmatpush.bf16.msra.mxu0 %v5128
    %5403 = vmatpush.bf16.msra.mxu0 %v5127
    %5404 = vmatpush.bf16.msra.mxu0 %v5126
    %5405 = vmatmul.bf16.gmra.mxu0 %v4561
    %v5406 = vpop.f32.mrf.mxu0
    %v5407 = vadd.f32 %v5394, %v5406
    %v5408 = vpop.f32.mrf.mxu0
    %5409 = vdwg.mxu0
    %5410 = vmatpush.bf16.msra.mxu0 %v5141
    %5411 = vmatpush.bf16.msra.mxu0 %v5140
    %5412 = vmatpush.bf16.msra.mxu0 %v5139
    %5413 = vmatpush.bf16.msra.mxu0 %v5138
    %5414 = vmatpush.bf16.msra.mxu0 %v5137
    %5415 = vmatpush.bf16.msra.mxu0 %v5136
    %5416 = vmatpush.bf16.msra.mxu0 %v5135
    %5417 = vmatpush.bf16.msra.mxu0 %v5134
    %5418 = vmatmul.bf16.gmra.mxu0 %v4562
    %v5419 = vpop.f32.mrf.mxu0
    %v5420 = vadd.f32 %v5407, %v5419
    %v5421 = vpop.f32.mrf.mxu0
    %5422 = vdwg.mxu0
    %5423 = vmatpush.bf16.msra.mxu0 %v5149
    %5424 = vmatpush.bf16.msra.mxu0 %v5148
    %5425 = vmatpush.bf16.msra.mxu0 %v5147
    %5426 = vmatpush.bf16.msra.mxu0 %v5146
    %5427 = vmatpush.bf16.msra.mxu0 %v5145
    %5428 = vmatpush.bf16.msra.mxu0 %v5144
    %5429 = vmatpush.bf16.msra.mxu0 %v5143
    %5430 = vmatpush.bf16.msra.mxu0 %v5142
    %5431 = vmatmul.bf16.gmra.mxu0 %v4563
    %v5432 = vpop.f32.mrf.mxu0
    %v5433 = vadd.f32 %v5420, %v5432
    %v5434 = vpop.f32.mrf.mxu0
    %5435 = vdwg.mxu0
    %5436 = vmatpush.bf16.msra.mxu0 %v5157
    %5437 = vmatpush.bf16.msra.mxu0 %v5156
    %5438 = vmatpush.bf16.msra.mxu0 %v5155
    %5439 = vmatpush.bf16.msra.mxu0 %v5154
    %5440 = vmatpush.bf16.msra.mxu0 %v5153
    %5441 = vmatpush.bf16.msra.mxu0 %v5152
    %5442 = vmatpush.bf16.msra.mxu0 %v5151
    %5443 = vmatpush.bf16.msra.mxu0 %v5150
    %5444 = vmatmul.bf16.gmra.mxu0 %v4564
    %v5445 = vpop.f32.mrf.mxu0
    %v5446 = vadd.f32 %v5433, %v5445
    %v5447 = vpop.f32.mrf.mxu0
    %5448 = vdwg.mxu0
    %5449 = vmatpush.bf16.msra.mxu0 %v5165
    %5450 = vmatpush.bf16.msra.mxu0 %v5164
    %5451 = vmatpush.bf16.msra.mxu0 %v5163
    %5452 = vmatpush.bf16.msra.mxu0 %v5162
    %5453 = vmatpush.bf16.msra.mxu0 %v5161
    %5454 = vmatpush.bf16.msra.mxu0 %v5160
    %5455 = vmatpush.bf16.msra.mxu0 %v5159
    %5456 = vmatpush.bf16.msra.mxu0 %v5158
    %5457 = vmatmul.bf16.gmra.mxu0 %v4565
    %v5458 = vpop.f32.mrf.mxu0
    %v5459 = vadd.f32 %v5446, %v5458
    %v5460 = vpop.f32.mrf.mxu0
    %5461 = vdwg.mxu0
    %5462 = vmatpush.bf16.msra.mxu0 %v5173
    %5463 = vmatpush.bf16.msra.mxu0 %v5172
    %5464 = vmatpush.bf16.msra.mxu0 %v5171
    %5465 = vmatpush.bf16.msra.mxu0 %v5170
    %5466 = vmatpush.bf16.msra.mxu0 %v5169
    %5467 = vmatpush.bf16.msra.mxu0 %v5168
    %5468 = vmatpush.bf16.msra.mxu0 %v5167
    %5469 = vmatpush.bf16.msra.mxu0 %v5166
    %5470 = vmatmul.bf16.gmra.mxu0 %v4566
    %v5471 = vpop.f32.mrf.mxu0
    %v5472 = vadd.f32 %v5459, %v5471
    %v5473 = vpop.f32.mrf.mxu0
    %5474 = vdwg.mxu0
    %5475 = vmatpush.bf16.msra.mxu0 %v5181
    %5476 = vmatpush.bf16.msra.mxu0 %v5180
    %5477 = vmatpush.bf16.msra.mxu0 %v5179
    %5478 = vmatpush.bf16.msra.mxu0 %v5178
    %5479 = vmatpush.bf16.msra.mxu0 %v5177
    %5480 = vmatpush.bf16.msra.mxu0 %v5176
    %5481 = vmatpush.bf16.msra.mxu0 %v5175
    %5482 = vmatpush.bf16.msra.mxu0 %v5174
    %5483 = vmatmul.bf16.gmra.mxu0 %v4567
    %v5484 = vpop.f32.mrf.mxu0
    %v5485 = vadd.f32 %v5472, %v5484
    %v5486 = vpop.f32.mrf.mxu0
    %5487 = vdwg.mxu0
    %5488 = vmatpush.bf16.msra.mxu0 %v5189
    %5489 = vmatpush.bf16.msra.mxu0 %v5188
    %5490 = vmatpush.bf16.msra.mxu0 %v5187
    %5491 = vmatpush.bf16.msra.mxu0 %v5186
    %5492 = vmatpush.bf16.msra.mxu0 %v5185
    %5493 = vmatpush.bf16.msra.mxu0 %v5184
    %5494 = vmatpush.bf16.msra.mxu0 %v5183
    %5495 = vmatpush.bf16.msra.mxu0 %v5182
    %5496 = vmatmul.bf16.gmra.mxu0 %v4568
    %v5497 = vpop.f32.mrf.mxu0
    %v5498 = vadd.f32 %v5485, %v5497
    %v5499 = vpop.f32.mrf.mxu0
    %5500 = vdwg.mxu0
    %5501 = vmatpush.bf16.msra.mxu0 %v5197
    %5502 = vmatpush.bf16.msra.mxu0 %v5196
    %5503 = vmatpush.bf16.msra.mxu0 %v5195
    %5504 = vmatpush.bf16.msra.mxu0 %v5194
    %5505 = vmatpush.bf16.msra.mxu0 %v5193
    %5506 = vmatpush.bf16.msra.mxu0 %v5192
    %5507 = vmatpush.bf16.msra.mxu0 %v5191
    %5508 = vmatpush.bf16.msra.mxu0 %v5190
    %5509 = vmatmul.bf16.gmra.mxu0 %v4569
    %v5510 = vpop.f32.mrf.mxu0
    %v5511 = vadd.f32 %v5498, %v5510
    %v5512 = vpop.f32.mrf.mxu0
    %5513 = vdwg.mxu0
    %5514 = vmatpush.bf16.msra.mxu0 %v5205
    %5515 = vmatpush.bf16.msra.mxu0 %v5204
    %5516 = vmatpush.bf16.msra.mxu0 %v5203
    %5517 = vmatpush.bf16.msra.mxu0 %v5202
    %5518 = vmatpush.bf16.msra.mxu0 %v5201
    %5519 = vmatpush.bf16.msra.mxu0 %v5200
    %5520 = vmatpush.bf16.msra.mxu0 %v5199
    %5521 = vmatpush.bf16.msra.mxu0 %v5198
    %5522 = vmatmul.bf16.gmra.mxu0 %v4570
    %v5523 = vpop.f32.mrf.mxu0
    %v5524 = vadd.f32 %v5511, %v5523
    %v5525 = vpop.f32.mrf.mxu0
    %5526 = vdwg.mxu0
    %5527 = vmatpush.bf16.msra.mxu0 %v5213
    %5528 = vmatpush.bf16.msra.mxu0 %v5212
    %5529 = vmatpush.bf16.msra.mxu0 %v5211
    %5530 = vmatpush.bf16.msra.mxu0 %v5210
    %5531 = vmatpush.bf16.msra.mxu0 %v5209
    %5532 = vmatpush.bf16.msra.mxu0 %v5208
    %5533 = vmatpush.bf16.msra.mxu0 %v5207
    %5534 = vmatpush.bf16.msra.mxu0 %v5206
    %5535 = vmatmul.bf16.gmra.mxu0 %v4571
    %v5536 = vpop.f32.mrf.mxu0
    %v5537 = vadd.f32 %v5524, %v5536
    %v5538 = vpop.f32.mrf.mxu0
    %5539 = vdwg.mxu0
    %5540 = vmatpush.bf16.msra.mxu0 %v5221
    %5541 = vmatpush.bf16.msra.mxu0 %v5220
    %5542 = vmatpush.bf16.msra.mxu0 %v5219
    %5543 = vmatpush.bf16.msra.mxu0 %v5218
    %5544 = vmatpush.bf16.msra.mxu0 %v5217
    %5545 = vmatpush.bf16.msra.mxu0 %v5216
    %5546 = vmatpush.bf16.msra.mxu0 %v5215
    %5547 = vmatpush.bf16.msra.mxu0 %v5214
    %5548 = vmatmul.bf16.gmra.mxu0 %v4572
    %v5549 = vpop.f32.mrf.mxu0
    %v5550 = vadd.f32 %v5537, %v5549
    %v5551 = vpop.f32.mrf.mxu0
    %5552 = vdwg.mxu0
    %5553 = vmatpush.bf16.msra.mxu0 %v5229
    %5554 = vmatpush.bf16.msra.mxu0 %v5228
    %5555 = vmatpush.bf16.msra.mxu0 %v5227
    %5556 = vmatpush.bf16.msra.mxu0 %v5226
    %5557 = vmatpush.bf16.msra.mxu0 %v5225
    %5558 = vmatpush.bf16.msra.mxu0 %v5224
    %5559 = vmatpush.bf16.msra.mxu0 %v5223
    %5560 = vmatpush.bf16.msra.mxu0 %v5222
    %5561 = vmatmul.bf16.gmra.mxu0 %v4573
    %v5562 = vpop.f32.mrf.mxu0
    %v5563 = vadd.f32 %v5550, %v5562
    %v5564 = vpop.f32.mrf.mxu0
    %5565 = vdwg.mxu0
    %5566 = vst [vmem:[#allocation8] sm:$0x3] %v5563
    // Predicated region
    $region46: #{_stage1.1} parent=1 // pred_check
      _
    $region47: #{_stage1.1} parent=1 // pred_check_branch
      %5568 = sbr.rel (0) target = $region49
    $region48: #{_stage1.1} parent=1 // pred_region
      %5570 = vsyncadd [#allocation4], 0
      %s5572 = sshll.u32 [#allocation7], 4
      %s5573 = int_to_ptr.vmem [resolvable:$true] %s5572
      %s5574 = sshll.u32 %s9, 4
      %s5575 = int_to_ptr.hbm [resolvable:$true] %s5574
      %5577 = dma.vmem_to_hbm [thread:$0]  %s5573, 512, %s5575, [#allocation4]
    $region49: #{_stage1.1} parent=1 // pred_fallthru
      _
    // Predicated region
    $region50: #{_stage1.1} parent=1 // pred_check
      _
    $region51: #{_stage1.1} parent=1 // pred_check_branch
      %5579 = sbr.rel (0) target = $region53
    $region52: #{_stage1.1} parent=1 // pred_region
      %5581 = vsyncadd [#allocation9], 0
      %s5583 = sshll.u32 [#allocation8], 4
      %s5584 = int_to_ptr.vmem [resolvable:$true] %s5583
      %s5585 = sshll.u32 %s10, 4
      %s5586 = int_to_ptr.hbm [resolvable:$true] %s5585
      %5588 = dma.vmem_to_hbm [thread:$0]  %s5584, 32, %s5586, [#allocation9]
    $region53: #{_stage1.1} parent=1 // pred_fallthru
      _
    // Predicated region
    $region54: #{_stage1.1} parent=1 // pred_check
      _
    $region55: #{_stage1.1} parent=1 // pred_check_branch
      %5590 = sbr.rel (0) target = $region57
    $region56: #{_stage1.1} parent=1 // pred_region
      _
    $region57: #{_stage1.1} parent=1 // pred_fallthru
      _
    // Predicated region
    $region58: #{_stage1.1} parent=1 // pred_check
      _
    $region59: #{_stage1.1} parent=1 // pred_check_branch
      %5592 = sbr.rel (0) target = $region61
    $region60: #{_stage1.1} parent=1 // pred_region
      %5594 = dma.done [#allocation4], 512
    $region61: #{_stage1.1} parent=1 // pred_fallthru
      _
    // Predicated region
    $region62: #{_stage1.1} parent=1 // pred_check
      _
    $region63: #{_stage1.1} parent=1 // pred_check_branch
      %5596 = sbr.rel (0) target = $region65
    $region64: #{_stage1.1} parent=1 // pred_region
      %5598 = dma.done [#allocation9], 32
    $region65: #{_stage1.1} parent=1 // pred_fallthru
      _
    // Predicated region
    $region66: #{_stage1.1} parent=1 // pred_check
      _
    $region67: #{_stage1.1} parent=1 // pred_check_branch
      %5600 = sbr.rel (0) target = $region69
    $region68: #{_stage1.1} parent=1 // pred_region
      _
    $region69: #{_stage1.1} parent=1 // pred_fallthru
      _
    %5601 = vsyncpa [#allocation3], 1
    %5602 = vsyncpa [#allocation6], 1
    %5603 = vsyncpa [#allocation4], 1
    %5604 = vsyncpa [#allocation9], 1

</llo_original>
